<compile_context>
chip_gen: v7x
topology: tpu7x:2x2x1
jax: 0.10.0
libtpu: 0.0.40
codegen_flags: <defaults>
</compile_context>

<pallas_src>
import functools

import jax
import jax.numpy as jnp
from jax.experimental import pallas as pl
from jax.experimental.pallas import tpu as pltpu


# ----------------------------- in-kernel helpers -----------------------------

def _layernorm(x, gamma, beta, eps=1e-5):
    mu = jnp.mean(x, axis=-1, keepdims=True)
    var = jnp.mean((x - mu) ** 2, axis=-1, keepdims=True)
    return (x - mu) * jax.lax.rsqrt(var + eps) * gamma + beta


def _softmax_last(s, approx=True):
    s = s - jnp.max(s, axis=-1, keepdims=True)
    e = jnp.exp(s)
    denom = jnp.sum(e, axis=-1, keepdims=True)
    if approx:
        return e * pl.reciprocal(denom, approx=True)
    return e / denom                       # exact (used for the returned attention)


def _gelu_exact(x):
    # F.gelu default (erf-based) -- kept exact to preserve PyTorch semantics.
    return 0.5 * x * (1.0 + jax.lax.erf(x * 0.7071067811865476))


# --------------------------------- kernel ------------------------------------

def memto_fused_kernel(xs_ref, pos_ref, wtok_ref,
                       wq_ref, bq_ref, wk_ref, bk_ref, wv_ref, bv_ref,
                       wo_ref, bo_ref,
                       ln1g_ref, ln1b_ref, w1_ref, c1_ref, w2_ref, c2_ref,
                       ln2g_ref, ln2b_ref,
                       encg_ref, encb_ref,
                       mem_ref, memt_ref, wdq_ref, wdm_ref, bdec_ref,
                       out_ref, *,
                       n_layers, n_heads, seq_len, d_model, d_out, n_mem):
    L, D, H = seq_len, d_model, n_heads
    bf16 = jnp.bfloat16
    f32 = jnp.float32

    # Zero the packed output once so the pad lanes stay zero.
    out_ref[...] = jnp.zeros_like(out_ref)

    # --- DataEmbedding: circular k=3 token conv (pre-shifted -> matmul) + pos.
    h = (jnp.dot(xs_ref[...], wtok_ref[...], preferred_element_type=f32)
         + pos_ref[...])                                                # [L, D] f32

    # --- Encoder stack (statically unrolled; weights resident in VMEM).
    # TODO(synk): for non-toy model sizes, stream per-layer weights via a grid
    # axis over layers instead of keeping every layer resident.
    for li in range(n_layers):
        hb = jnp.broadcast_to(h.astype(bf16), (H, L, D))                # [H, L, D]
        # Head-batched Q/K/V projections (weights pre-split per head on host,
        # attention scale folded into wq/bq at pack time).
        q = (jnp.einsum('hld,hde->hle', hb, wq_ref[li],
                        preferred_element_type=f32) + bq_ref[li])       # [H, L, dh]
        k = (jnp.einsum('hld,hde->hle', hb, wk_ref[li],
                        preferred_element_type=f32) + bk_ref[li])
        v = (jnp.einsum('hld,hde->hle', hb, wv_ref[li],
                        preferred_element_type=f32) + bv_ref[li])

        s = jnp.einsum('hqd,hkd->hqk', q.astype(bf16), k.astype(bf16),
                       preferred_element_type=f32)                      # [H, L, L]
        p = _softmax_last(s, approx=True)
        ctx = jnp.einsum('hqk,hkd->hqd', p.astype(bf16), v.astype(bf16),
                         preferred_element_type=f32)                    # [H, L, dh]
        # Fold every head straight into the output projection (wo pre-reshaped
        # to [H, dh, D]) and reduce over heads: no lane-axis head concat.
        parts = jnp.einsum('hqd,hde->hqe', ctx.astype(bf16), wo_ref[li],
                           preferred_element_type=f32)                  # [H, L, D]
        attn = jnp.sum(parts, axis=0) + bo_ref[li:li + 1]               # [L, D]

        x1 = _layernorm(h + attn, ln1g_ref[li:li + 1], ln1b_ref[li:li + 1])
        y = (jnp.dot(x1.astype(bf16), w1_ref[li], preferred_element_type=f32)
             + c1_ref[li:li + 1])                                       # conv1 (k=1)
        y = _gelu_exact(y)
        y = (jnp.dot(y.astype(bf16), w2_ref[li], preferred_element_type=f32)
             + c2_ref[li:li + 1])                                       # conv2 (k=1)
        h = _layernorm(x1 + y, ln2g_ref[li:li + 1], ln2b_ref[li:li + 1])

    # --- final encoder LayerNorm -> queries.
    queries = _layernorm(h, encg_ref[...], encb_ref[...])               # [L, D]
    q_bf = queries.astype(bf16)

    # --- MemoryLayer read (shrink_threshold=0.0) + weak_decoder (split halves).
    mem_scores = jnp.dot(q_bf, memt_ref[...], preferred_element_type=f32)
    p_mem = _softmax_last(mem_scores, approx=False)                     # returned
    add_mem = jnp.dot(p_mem.astype(bf16), mem_ref[...], preferred_element_type=f32)
    dec = (jnp.dot(q_bf, wdq_ref[...], preferred_element_type=f32)
           + jnp.dot(add_mem.astype(bf16), wdm_ref[...], preferred_element_type=f32)
           + bdec_ref[...])                                             # [L, C_out]

    # --- pack (queries | output | attention) via direct slice stores.
    out_ref[:, 0:D] = queries
    out_ref[:, D:D + d_out] = dec
    out_ref[:, D + d_out:D + d_out + n_mem] = p_mem


# ------------------------------ model glue ------------------------------------

_PACK = 128


def positional_embedding(L, D):
    pos = jnp.arange(L, dtype=jnp.float32)[:, None]
    div = jnp.exp(jnp.arange(0, D, 2, dtype=jnp.float32)
                  * (-(jnp.log(10000.0) / D)))
    pe = jnp.zeros((L, D), jnp.float32)
    pe = pe.at[:, 0::2].set(jnp.sin(pos * div))
    pe = pe.at[:, 1::2].set(jnp.cos(pos * div))
    return pe


def init_params(key, cfg):
    """PyTorch-layout parameters (random init for the demo)."""
    ks = iter(jax.random.split(key, 64))
    s = 0.05
    D, Cin, Dff = cfg["d_model"], cfg["input_channels"], cfg["dimension_fcl"]

    # TokenEmbedding Conv1d(Cin, D, k=3, circular, bias=False) -> flat [3*Cin, D]
    w_tok = jax.random.normal(next(ks), (D, Cin, 3), jnp.float32) * s
    w_tok_flat = jnp.transpose(w_tok, (2, 1, 0)).reshape(3 * Cin, D)

    layers = []
    for _ in range(cfg["encoder_layers"]):
        layers.append(dict(
            wqkv=jax.random.normal(next(ks), (3 * D, D), jnp.float32) * s,
            bqkv=jax.random.normal(next(ks), (3 * D,), jnp.float32) * s,
            wo=jax.random.normal(next(ks), (D, D), jnp.float32) * s,
            bo=jax.random.normal(next(ks), (D,), jnp.float32) * s,
            ln1_g=jnp.ones((D,), jnp.float32),
            ln1_b=jnp.zeros((D,), jnp.float32),
            w1=jax.random.normal(next(ks), (Dff, D), jnp.float32) * s,   # conv1 (k=1)
            c1=jax.random.normal(next(ks), (Dff,), jnp.float32) * s,
            w2=jax.random.normal(next(ks), (D, Dff), jnp.float32) * s,   # conv2 (k=1)
            c2=jax.random.normal(next(ks), (D,), jnp.float32) * s,
            ln2_g=jnp.ones((D,), jnp.float32),
            ln2_b=jnp.zeros((D,), jnp.float32),
        ))

    return dict(
        w_tok_flat=w_tok_flat,
        layers=layers,
        enc_ln_g=jnp.ones((D,), jnp.float32),
        enc_ln_b=jnp.zeros((D,), jnp.float32),
        memory=jax.random.normal(next(ks), (cfg["num_memory"], D), jnp.float32) * s,
        w_dec=jax.random.normal(next(ks), (cfg["output_channels"], 2 * D),
                                jnp.float32) * s,
        b_dec=jax.random.normal(next(ks), (cfg["output_channels"],),
                                jnp.float32) * s,
    )


def pack_params(params, cfg):
    """Host-side packing: stack per-layer weights, pre-transpose, split Q/K/V
    and the output projection per head, fold the attention scale into Q, and
    cast matmul operands to bfloat16 (biases / LN params stay f32)."""
    D, H = cfg["d_model"], cfg["n_heads"]
    dh = D // H
    scale = 1.0 / (dh ** 0.5)
    bf16 = jnp.bfloat16
    layers = params["layers"]

    def qkv_heads(lp):
        W, b = lp["wqkv"], lp["bqkv"]                      # [3D, D], [3D]
        def block(i):
            Wb = W[i * D:(i + 1) * D]                      # [D(out), D(in)]
            bb = b[i * D:(i + 1) * D]
            Wh = jnp.transpose(Wb.reshape(H, dh, D), (0, 2, 1))   # [H, D, dh]
            bh = bb.reshape(H, 1, dh)                             # [H, 1, dh]
            return Wh, bh
        (wq, bq), (wk, bk), (wv, bv) = block(0), block(1), block(2)
        return (wq * scale, bq * scale, wk, bk, wv, bv)    # fold attention scale

    per = [qkv_heads(lp) for lp in layers]
    stack_idx = lambda i: jnp.stack([p[i] for p in per])
    st = lambda k, t=False: jnp.stack([lp[k].T if t else lp[k] for lp in layers])

    return dict(
        w_tok=params["w_tok_flat"].astype(bf16),           # [3*Cin, D]
        wq=stack_idx(0).astype(bf16), bq=stack_idx(1),     # [NL,H,D,dh] / [NL,H,1,dh]
        wk=stack_idx(2).astype(bf16), bk=stack_idx(3),
        wv=stack_idx(4).astype(bf16), bv=stack_idx(5),
        wo=jnp.stack([lp["wo"].T.reshape(H, dh, D)
                      for lp in layers]).astype(bf16),     # [NL, H, dh, D]
        bo=st("bo"),                                       # [NL, D]
        ln1_g=st("ln1_g"), ln1_b=st("ln1_b"),              # [NL, D]
        w1=st("w1", True).astype(bf16),                    # [NL, D, Dff]
        c1=st("c1"),                                       # [NL, Dff]
        w2=st("w2", True).astype(bf16),                    # [NL, Dff, D]
        c2=st("c2"),                                       # [NL, D]
        ln2_g=st("ln2_g"), ln2_b=st("ln2_b"),              # [NL, D]
        enc_ln_g=params["enc_ln_g"][None, :],              # [1, D]
        enc_ln_b=params["enc_ln_b"][None, :],              # [1, D]
        memory=params["memory"],                           # f32 [M, D] (returned)
        memory_bf=params["memory"].astype(bf16),           # [M, D]
        memory_t_bf=params["memory"].T.astype(bf16),       # [D, M]
        w_dec_q=params["w_dec"][:, :D].T.astype(bf16),     # [D, C_out]
        w_dec_m=params["w_dec"][:, D:].T.astype(bf16),     # [D, C_out]
        b_dec=params["b_dec"][None, :],                    # [1, C_out]
    )


def _resident(arr):
    """Full-array VMEM-resident BlockSpec (constant block index across the grid)."""
    zeros = (0,) * arr.ndim
    return pl.BlockSpec(arr.shape, lambda b: zeros)


def memto_forward(packed, x, cfg):
    """x: [B, L, input_channels] -> dict(output, queries, memory, attention)."""
    B, L, Cin = x.shape
    D, M, C_out = cfg["d_model"], cfg["num_memory"], cfg["output_channels"]
    NL, H, Dff = cfg["encoder_layers"], cfg["n_heads"], cfg["dimension_fcl"]
    dh = D // H
    assert D % H == 0
    assert L % 8 == 0, "seq_len must be a multiple of 8 (sublane tiling)"
    assert D + M + C_out <= _PACK

    # Circular shift-stack for the k=3 conv, flatten batch*time to one slab.
    x_shifted = jnp.concatenate(
        [jnp.roll(x, 1, axis=1), x, jnp.roll(x, -1, axis=1)], axis=-1)
    xs2d = x_shifted.reshape(B * L, 3 * Cin).astype(jnp.bfloat16)
    pos = positional_embedding(L, D)                        # [L, D], shared over batch
    # TODO(synk): DataEmbedding / encoder / attention dropout omitted (inference).

    args = (xs2d, pos, packed["w_tok"],
            packed["wq"], packed["bq"], packed["wk"], packed["bk"],
            packed["wv"], packed["bv"], packed["wo"], packed["bo"],
            packed["ln1_g"], packed["ln1_b"], packed["w1"], packed["c1"],
            packed["w2"], packed["c2"], packed["ln2_g"], packed["ln2_b"],
            packed["enc_ln_g"], packed["enc_ln_b"],
            packed["memory_bf"], packed["memory_t_bf"],
            packed["w_dec_q"], packed["w_dec_m"], packed["b_dec"])

    in_specs = ([pl.BlockSpec((L, 3 * Cin), lambda b: (b, 0)),   # per-batch rows
                 pl.BlockSpec((L, D), lambda b: (0, 0))]         # shared pos table
                + [_resident(a) for a in args[2:]])
    out_spec = pl.BlockSpec((L, _PACK), lambda b: (b, 0))

    kernel = functools.partial(
        memto_fused_kernel,
        n_layers=NL, n_heads=H, seq_len=L, d_model=D, d_out=C_out, n_mem=M)

    flops = int(
        2 * B * L * (3 * Cin) * D
        + NL * (2 * B * L * D * (3 * D)            # q,k,v projections
                + 2 * 2 * B * H * L * L * dh       # scores + context
                + 2 * B * L * D * D                # output projection
                + 2 * 2 * B * L * D * Dff)         # FFN
        + 2 * 2 * B * L * D * M                    # memory read
        + 2 * B * L * 2 * D * C_out)               # weak decoder
    transcend = int(NL * (B * H * L * L + B * L * Dff) + B * L * M)
    bytes_acc = int(sum(v.size * v.dtype.itemsize for v in args)
                    + B * L * _PACK * 4)

    packed_out = pl.pallas_call(
        kernel,
        out_shape=jax.ShapeDtypeStruct((B * L, _PACK), jnp.float32),
        grid=(B,),
        in_specs=in_specs,
        out_specs=out_spec,
        compiler_params=pltpu.CompilerParams(
            dimension_semantics=("parallel",),     # batch blocks -> both TCs on v7x
            vmem_limit_bytes=32 * 1024 * 1024),
        cost_estimate=pl.CostEstimate(flops=flops, transcendentals=transcend,
                                      bytes_accessed=bytes_acc),
    )(*args)

    out3 = packed_out.reshape(B, L, _PACK)
    queries = out3[:, :, :D]
    output = out3[:, :, D:D + C_out]
    attention = out3[:, :, D + C_out:D + C_out + M]
    # TODO(synk): training-time memory-update branch of MemoryLayer not implemented.
    return {"output": output, "queries": queries,
            "memory": packed["memory"], "attention": attention}


# ----------------------------------- main --------------------------------------

if __name__ == "__main__":
    cfg = dict(
        input_channels=4,
        output_channels=4,
        d_model=32,
        n_heads=4,
        dimension_fcl=64,
        encoder_layers=2,
        num_memory=10,
        dropout=0.1,
    )
    B, L = 2, 8

    key = jax.random.PRNGKey(0)
    k_x, k_p = jax.random.split(key)
    x = jax.random.normal(k_x, (B, L, cfg["input_channels"]), jnp.float32)
    packed = pack_params(init_params(k_p, cfg), cfg)

    fwd = jax.jit(functools.partial(memto_forward, cfg=cfg))
    out = fwd(packed, x)
    jax.block_until_ready(out)

    assert out["output"].shape == (B, L, cfg["output_channels"])
    assert out["queries"].shape == (B, L, cfg["d_model"])
    assert out["attention"].shape == (B, L, cfg["num_memory"])
    assert out["memory"].shape == (cfg["num_memory"], cfg["d_model"])
    assert jnp.all(jnp.isfinite(out["output"]))
    print("KERNEL_OK")
</pallas_src>

<mosaic_0001>
module attributes {stable_mosaic.version = 11 : i64} {
  func.func @memto_fused_kernel(%arg0: i32, %arg1: memref<8x12xbf16, #tpu.memory_space<vmem>>, %arg2: memref<8x32xf32, #tpu.memory_space<vmem>>, %arg3: memref<12x32xbf16, #tpu.memory_space<vmem>>, %arg4: memref<2x4x32x8xbf16, #tpu.memory_space<vmem>>, %arg5: memref<2x4x1x8xf32, #tpu.memory_space<vmem>>, %arg6: memref<2x4x32x8xbf16, #tpu.memory_space<vmem>>, %arg7: memref<2x4x1x8xf32, #tpu.memory_space<vmem>>, %arg8: memref<2x4x32x8xbf16, #tpu.memory_space<vmem>>, %arg9: memref<2x4x1x8xf32, #tpu.memory_space<vmem>>, %arg10: memref<2x4x8x32xbf16, #tpu.memory_space<vmem>>, %arg11: memref<2x32xf32, #tpu.memory_space<vmem>>, %arg12: memref<2x32xf32, #tpu.memory_space<vmem>>, %arg13: memref<2x32xf32, #tpu.memory_space<vmem>>, %arg14: memref<2x32x64xbf16, #tpu.memory_space<vmem>>, %arg15: memref<2x64xf32, #tpu.memory_space<vmem>>, %arg16: memref<2x64x32xbf16, #tpu.memory_space<vmem>>, %arg17: memref<2x32xf32, #tpu.memory_space<vmem>>, %arg18: memref<2x32xf32, #tpu.memory_space<vmem>>, %arg19: memref<2x32xf32, #tpu.memory_space<vmem>>, %arg20: memref<1x32xf32, #tpu.memory_space<vmem>>, %arg21: memref<1x32xf32, #tpu.memory_space<vmem>>, %arg22: memref<10x32xbf16, #tpu.memory_space<vmem>>, %arg23: memref<32x10xbf16, #tpu.memory_space<vmem>>, %arg24: memref<32x4xbf16, #tpu.memory_space<vmem>>, %arg25: memref<32x4xbf16, #tpu.memory_space<vmem>>, %arg26: memref<1x4xf32, #tpu.memory_space<vmem>>, %arg27: memref<8x128xf32, #tpu.memory_space<vmem>>) attributes {dimension_semantics = [#tpu.dimension_semantics<parallel>], iteration_bounds = array<i64: 2>, scalar_prefetch = 0 : i64, scratch_operands = 0 : i64, tpu.core_type = #tpu.core_type<tc>, window_params = [{transform_indices = @transform_0, window_bounds = array<i64: 8, 12>}, {pipeline_mode = #tpu.pipeline_mode<synchronous>, transform_indices = @transform_1, window_bounds = array<i64: 8, 32>}, {pipeline_mode = #tpu.pipeline_mode<synchronous>, transform_indices = @transform_2, window_bounds = array<i64: 12, 32>}, {pipeline_mode = #tpu.pipeline_mode<synchronous>, transform_indices = @transform_3, window_bounds = array<i64: 2, 4, 32, 8>}, {pipeline_mode = #tpu.pipeline_mode<synchronous>, transform_indices = @transform_4, window_bounds = array<i64: 2, 4, 1, 8>}, {pipeline_mode = #tpu.pipeline_mode<synchronous>, transform_indices = @transform_5, window_bounds = array<i64: 2, 4, 32, 8>}, {pipeline_mode = #tpu.pipeline_mode<synchronous>, transform_indices = @transform_6, window_bounds = array<i64: 2, 4, 1, 8>}, {pipeline_mode = #tpu.pipeline_mode<synchronous>, transform_indices = @transform_7, window_bounds = array<i64: 2, 4, 32, 8>}, {pipeline_mode = #tpu.pipeline_mode<synchronous>, transform_indices = @transform_8, window_bounds = array<i64: 2, 4, 1, 8>}, {pipeline_mode = #tpu.pipeline_mode<synchronous>, transform_indices = @transform_9, window_bounds = array<i64: 2, 4, 8, 32>}, {pipeline_mode = #tpu.pipeline_mode<synchronous>, transform_indices = @transform_10, window_bounds = array<i64: 2, 32>}, {pipeline_mode = #tpu.pipeline_mode<synchronous>, transform_indices = @transform_11, window_bounds = array<i64: 2, 32>}, {pipeline_mode = #tpu.pipeline_mode<synchronous>, transform_indices = @transform_12, window_bounds = array<i64: 2, 32>}, {pipeline_mode = #tpu.pipeline_mode<synchronous>, transform_indices = @transform_13, window_bounds = array<i64: 2, 32, 64>}, {pipeline_mode = #tpu.pipeline_mode<synchronous>, transform_indices = @transform_14, window_bounds = array<i64: 2, 64>}, {pipeline_mode = #tpu.pipeline_mode<synchronous>, transform_indices = @transform_15, window_bounds = array<i64: 2, 64, 32>}, {pipeline_mode = #tpu.pipeline_mode<synchronous>, transform_indices = @transform_16, window_bounds = array<i64: 2, 32>}, {pipeline_mode = #tpu.pipeline_mode<synchronous>, transform_indices = @transform_17, window_bounds = array<i64: 2, 32>}, {pipeline_mode = #tpu.pipeline_mode<synchronous>, transform_indices = @transform_18, window_bounds = array<i64: 2, 32>}, {pipeline_mode = #tpu.pipeline_mode<synchronous>, transform_indices = @transform_19, window_bounds = array<i64: 1, 32>}, {pipeline_mode = #tpu.pipeline_mode<synchronous>, transform_indices = @transform_20, window_bounds = array<i64: 1, 32>}, {pipeline_mode = #tpu.pipeline_mode<synchronous>, transform_indices = @transform_21, window_bounds = array<i64: 10, 32>}, {pipeline_mode = #tpu.pipeline_mode<synchronous>, transform_indices = @transform_22, window_bounds = array<i64: 32, 10>}, {pipeline_mode = #tpu.pipeline_mode<synchronous>, transform_indices = @transform_23, window_bounds = array<i64: 32, 4>}, {pipeline_mode = #tpu.pipeline_mode<synchronous>, transform_indices = @transform_24, window_bounds = array<i64: 32, 4>}, {pipeline_mode = #tpu.pipeline_mode<synchronous>, transform_indices = @transform_25, window_bounds = array<i64: 1, 4>}, {transform_indices = @transform_26, window_bounds = array<i64: 8, 128>}]} {
    %cst = arith.constant 0.000000e+00 : f32
    %0 = vector.broadcast %cst : f32 to vector<8x128xf32>
    %c0 = arith.constant 0 : index
    %c0_0 = arith.constant 0 : index
    %1 = vector.load %arg27[%c0, %c0_0] : memref<8x128xf32, #tpu.memory_space<vmem>>, vector<8x128xf32>
    tpu.vector_store %arg27[%c0, %c0_0], %0 {strides = array<i32>} : memref<8x128xf32, #tpu.memory_space<vmem>>, vector<8x128xf32>,
    %c0_1 = arith.constant 0 : index
    %c0_2 = arith.constant 0 : index
    %2 = vector.load %arg1[%c0_1, %c0_2] : memref<8x12xbf16, #tpu.memory_space<vmem>>, vector<8x12xbf16>
    %c0_3 = arith.constant 0 : index
    %c0_4 = arith.constant 0 : index
    %3 = vector.load %arg3[%c0_3, %c0_4] : memref<12x32xbf16, #tpu.memory_space<vmem>>, vector<12x32xbf16>
    %cst_5 = arith.constant dense<0.000000e+00> : vector<8x32xf32>
    %4 = tpu.matmul %2, %3, %cst_5 {dimension_numbers = #tpu.dot_dimension_numbers<[1], [0], [0], [1], [0, 0, 1, 1], [], []>} : vector<8x12xbf16>, vector<12x32xbf16>, vector<8x32xf32> -> vector<8x32xf32>
    %c0_6 = arith.constant 0 : index
    %c0_7 = arith.constant 0 : index
    %5 = vector.load %arg2[%c0_6, %c0_7] : memref<8x32xf32, #tpu.memory_space<vmem>>, vector<8x32xf32>
    %6 = arith.addf %4, %5 : vector<8x32xf32>
    %7 = arith.truncf %6 : vector<8x32xf32> to vector<8x32xbf16>
    %8 = vector.shape_cast %7 : vector<8x32xbf16> to vector<1x8x32xbf16>
    %9 = vector.broadcast %8 : vector<1x8x32xbf16> to vector<4x8x32xbf16>
    %c0_8 = arith.constant 0 : index
    %c0_9 = arith.constant 0 : index
    %c0_10 = arith.constant 0 : index
    %c0_11 = arith.constant 0 : index
    %10 = vector.load %arg4[%c0_8, %c0_9, %c0_10, %c0_11] : memref<2x4x32x8xbf16, #tpu.memory_space<vmem>>, vector<1x4x32x8xbf16>
    %11 = vector.shape_cast %10 : vector<1x4x32x8xbf16> to vector<4x32x8xbf16>
    "tpu.trace_start"() <{level = 10 : i32, message = "hld,hde->hle"}> : () -> ()
    %cst_12 = arith.constant dense<0.000000e+00> : vector<4x8x8xf32>
    %12 = tpu.matmul %9, %11, %cst_12 {dimension_numbers = #tpu.dot_dimension_numbers<[2], [1], [1], [2], [0, 0, 0, 1, 1, 2], [0], [0]>} : vector<4x8x32xbf16>, vector<4x32x8xbf16>, vector<4x8x8xf32> -> vector<4x8x8xf32>
    "tpu.trace_stop"() : () -> ()
    %c0_13 = arith.constant 0 : index
    %c0_14 = arith.constant 0 : index
    %c0_15 = arith.constant 0 : index
    %c0_16 = arith.constant 0 : index
    %13 = vector.load %arg5[%c0_13, %c0_14, %c0_15, %c0_16] : memref<2x4x1x8xf32, #tpu.memory_space<vmem>>, vector<1x4x1x8xf32>
    %14 = vector.shape_cast %13 : vector<1x4x1x8xf32> to vector<4x1x8xf32>
    %15 = vector.broadcast %14 : vector<4x1x8xf32> to vector<4x8x8xf32>
    %16 = arith.addf %12, %15 : vector<4x8x8xf32>
    %c0_17 = arith.constant 0 : index
    %c0_18 = arith.constant 0 : index
    %c0_19 = arith.constant 0 : index
    %c0_20 = arith.constant 0 : index
    %17 = vector.load %arg6[%c0_17, %c0_18, %c0_19, %c0_20] : memref<2x4x32x8xbf16, #tpu.memory_space<vmem>>, vector<1x4x32x8xbf16>
    %18 = vector.shape_cast %17 : vector<1x4x32x8xbf16> to vector<4x32x8xbf16>
    "tpu.trace_start"() <{level = 10 : i32, message = "hld,hde->hle"}> : () -> ()
    %cst_21 = arith.constant dense<0.000000e+00> : vector<4x8x8xf32>
    %19 = tpu.matmul %9, %18, %cst_21 {dimension_numbers = #tpu.dot_dimension_numbers<[2], [1], [1], [2], [0, 0, 0, 1, 1, 2], [0], [0]>} : vector<4x8x32xbf16>, vector<4x32x8xbf16>, vector<4x8x8xf32> -> vector<4x8x8xf32>
    "tpu.trace_stop"() : () -> ()
    %c0_22 = arith.constant 0 : index
    %c0_23 = arith.constant 0 : index
    %c0_24 = arith.constant 0 : index
    %c0_25 = arith.constant 0 : index
    %20 = vector.load %arg7[%c0_22, %c0_23, %c0_24, %c0_25] : memref<2x4x1x8xf32, #tpu.memory_space<vmem>>, vector<1x4x1x8xf32>
    %21 = vector.shape_cast %20 : vector<1x4x1x8xf32> to vector<4x1x8xf32>
    %22 = vector.broadcast %21 : vector<4x1x8xf32> to vector<4x8x8xf32>
    %23 = arith.addf %19, %22 : vector<4x8x8xf32>
    %c0_26 = arith.constant 0 : index
    %c0_27 = arith.constant 0 : index
    %c0_28 = arith.constant 0 : index
    %c0_29 = arith.constant 0 : index
    %24 = vector.load %arg8[%c0_26, %c0_27, %c0_28, %c0_29] : memref<2x4x32x8xbf16, #tpu.memory_space<vmem>>, vector<1x4x32x8xbf16>
    %25 = vector.shape_cast %24 : vector<1x4x32x8xbf16> to vector<4x32x8xbf16>
    "tpu.trace_start"() <{level = 10 : i32, message = "hld,hde->hle"}> : () -> ()
    %cst_30 = arith.constant dense<0.000000e+00> : vector<4x8x8xf32>
    %26 = tpu.matmul %9, %25, %cst_30 {dimension_numbers = #tpu.dot_dimension_numbers<[2], [1], [1], [2], [0, 0, 0, 1, 1, 2], [0], [0]>} : vector<4x8x32xbf16>, vector<4x32x8xbf16>, vector<4x8x8xf32> -> vector<4x8x8xf32>
    "tpu.trace_stop"() : () -> ()
    %c0_31 = arith.constant 0 : index
    %c0_32 = arith.constant 0 : index
    %c0_33 = arith.constant 0 : index
    %c0_34 = arith.constant 0 : index
    %27 = vector.load %arg9[%c0_31, %c0_32, %c0_33, %c0_34] : memref<2x4x1x8xf32, #tpu.memory_space<vmem>>, vector<1x4x1x8xf32>
    %28 = vector.shape_cast %27 : vector<1x4x1x8xf32> to vector<4x1x8xf32>
    %29 = vector.broadcast %28 : vector<4x1x8xf32> to vector<4x8x8xf32>
    %30 = arith.addf %26, %29 : vector<4x8x8xf32>
    %31 = arith.truncf %16 : vector<4x8x8xf32> to vector<4x8x8xbf16>
    %32 = arith.truncf %23 : vector<4x8x8xf32> to vector<4x8x8xbf16>
    "tpu.trace_start"() <{level = 10 : i32, message = "hqd,hkd->hqk"}> : () -> ()
    %cst_35 = arith.constant dense<0.000000e+00> : vector<4x8x8xf32>
    %33 = tpu.matmul %31, %32, %cst_35 {dimension_numbers = #tpu.dot_dimension_numbers<[2], [2], [1], [1], [0, 0, 0, 1, 1, 1], [0], [0]>} : vector<4x8x8xbf16>, vector<4x8x8xbf16>, vector<4x8x8xf32> -> vector<4x8x8xf32>
    "tpu.trace_stop"() : () -> ()
    %cst_36 = arith.constant dense<0xFF800000> : vector<4x8xf32>
    %34 = vector.multi_reduction <maximumf>, %33, %cst_36 [2] : vector<4x8x8xf32> to vector<4x8xf32>
    %35 = vector.shape_cast %34 : vector<4x8xf32> to vector<4x8x1xf32>
    %36 = vector.broadcast %35 : vector<4x8x1xf32> to vector<4x8x8xf32>
    %37 = arith.subf %33, %36 : vector<4x8x8xf32>
    %38 = math.exp %37 : vector<4x8x8xf32>
    %cst_37 = arith.constant dense<0.000000e+00> : vector<4x8xf32>
    %39 = vector.multi_reduction <add>, %38, %cst_37 [2] : vector<4x8x8xf32> to vector<4x8xf32>
    %40 = vector.shape_cast %39 : vector<4x8xf32> to vector<4x8x1xf32>
    %41 = tpu.reciprocal %40 {approx = true} : vector<4x8x1xf32> -> vector<4x8x1xf32>
    %42 = vector.broadcast %41 : vector<4x8x1xf32> to vector<4x8x8xf32>
    %43 = arith.mulf %38, %42 : vector<4x8x8xf32>
    %44 = arith.truncf %43 : vector<4x8x8xf32> to vector<4x8x8xbf16>
    %45 = arith.truncf %30 : vector<4x8x8xf32> to vector<4x8x8xbf16>
    "tpu.trace_start"() <{level = 10 : i32, message = "hqk,hkd->hqd"}> : () -> ()
    %cst_38 = arith.constant dense<0.000000e+00> : vector<4x8x8xf32>
    %46 = tpu.matmul %44, %45, %cst_38 {dimension_numbers = #tpu.dot_dimension_numbers<[2], [1], [1], [2], [0, 0, 0, 1, 1, 2], [0], [0]>} : vector<4x8x8xbf16>, vector<4x8x8xbf16>, vector<4x8x8xf32> -> vector<4x8x8xf32>
    "tpu.trace_stop"() : () -> ()
    %47 = arith.truncf %46 : vector<4x8x8xf32> to vector<4x8x8xbf16>
    %c0_39 = arith.constant 0 : index
    %c0_40 = arith.constant 0 : index
    %c0_41 = arith.constant 0 : index
    %c0_42 = arith.constant 0 : index
    %48 = vector.load %arg10[%c0_39, %c0_40, %c0_41, %c0_42] : memref<2x4x8x32xbf16, #tpu.memory_space<vmem>>, vector<1x4x8x32xbf16>
    %49 = vector.shape_cast %48 : vector<1x4x8x32xbf16> to vector<4x8x32xbf16>
    "tpu.trace_start"() <{level = 10 : i32, message = "hqd,hde->hqe"}> : () -> ()
    %cst_43 = arith.constant dense<0.000000e+00> : vector<4x8x32xf32>
    %50 = tpu.matmul %47, %49, %cst_43 {dimension_numbers = #tpu.dot_dimension_numbers<[2], [1], [1], [2], [0, 0, 0, 1, 1, 2], [0], [0]>} : vector<4x8x8xbf16>, vector<4x8x32xbf16>, vector<4x8x32xf32> -> vector<4x8x32xf32>
    "tpu.trace_stop"() : () -> ()
    %cst_44 = arith.constant dense<0.000000e+00> : vector<8x32xf32>
    %51 = vector.multi_reduction <add>, %50, %cst_44 [0] : vector<4x8x32xf32> to vector<8x32xf32>
    %c0_45 = arith.constant 0 : index
    %c0_46 = arith.constant 0 : index
    %52 = vector.load %arg11[%c0_45, %c0_46] : memref<2x32xf32, #tpu.memory_space<vmem>>, vector<1x32xf32>
    %53 = vector.broadcast %52 : vector<1x32xf32> to vector<8x32xf32>
    %54 = arith.addf %51, %53 : vector<8x32xf32>
    %55 = arith.addf %6, %54 : vector<8x32xf32>
    %c0_47 = arith.constant 0 : index
    %c0_48 = arith.constant 0 : index
    %56 = vector.load %arg12[%c0_47, %c0_48] : memref<2x32xf32, #tpu.memory_space<vmem>>, vector<1x32xf32>
    %c0_49 = arith.constant 0 : index
    %c0_50 = arith.constant 0 : index
    %57 = vector.load %arg13[%c0_49, %c0_50] : memref<2x32xf32, #tpu.memory_space<vmem>>, vector<1x32xf32>
    %cst_51 = arith.constant dense<0.000000e+00> : vector<8xf32>
    %58 = vector.multi_reduction <add>, %55, %cst_51 [1] : vector<8x32xf32> to vector<8xf32>
    %59 = vector.shape_cast %58 : vector<8xf32> to vector<8x1xf32>
    %cst_52 = arith.constant 3.200000e+01 : f32
    %60 = vector.broadcast %cst_52 : f32 to vector<8x1xf32>
    %61 = arith.divf %59, %60 : vector<8x1xf32>
    %62 = vector.broadcast %61 : vector<8x1xf32> to vector<8x32xf32>
    %63 = arith.subf %55, %62 : vector<8x32xf32>
    %64 = arith.mulf %63, %63 : vector<8x32xf32>
    %cst_53 = arith.constant dense<0.000000e+00> : vector<8xf32>
    %65 = vector.multi_reduction <add>, %64, %cst_53 [1] : vector<8x32xf32> to vector<8xf32>
    %66 = vector.shape_cast %65 : vector<8xf32> to vector<8x1xf32>
    %cst_54 = arith.constant 3.200000e+01 : f32
    %67 = vector.broadcast %cst_54 : f32 to vector<8x1xf32>
    %68 = arith.divf %66, %67 : vector<8x1xf32>
    %69 = vector.broadcast %61 : vector<8x1xf32> to vector<8x32xf32>
    %70 = arith.subf %55, %69 : vector<8x32xf32>
    %cst_55 = arith.constant 9.99999974E-6 : f32
    %71 = vector.broadcast %cst_55 : f32 to vector<8x1xf32>
    %72 = arith.addf %68, %71 : vector<8x1xf32>
    %73 = math.rsqrt %72 : vector<8x1xf32>
    %74 = vector.broadcast %73 : vector<8x1xf32> to vector<8x32xf32>
    %75 = arith.mulf %70, %74 : vector<8x32xf32>
    %76 = vector.broadcast %56 : vector<1x32xf32> to vector<8x32xf32>
    %77 = arith.mulf %75, %76 : vector<8x32xf32>
    %78 = vector.broadcast %57 : vector<1x32xf32> to vector<8x32xf32>
    %79 = arith.addf %77, %78 : vector<8x32xf32>
    %80 = arith.truncf %79 : vector<8x32xf32> to vector<8x32xbf16>
    %c0_56 = arith.constant 0 : index
    %c0_57 = arith.constant 0 : index
    %c0_58 = arith.constant 0 : index
    %81 = vector.load %arg14[%c0_56, %c0_57, %c0_58] : memref<2x32x64xbf16, #tpu.memory_space<vmem>>, vector<1x32x64xbf16>
    %82 = vector.shape_cast %81 : vector<1x32x64xbf16> to vector<32x64xbf16>
    %cst_59 = arith.constant dense<0.000000e+00> : vector<8x64xf32>
    %83 = tpu.matmul %80, %82, %cst_59 {dimension_numbers = #tpu.dot_dimension_numbers<[1], [0], [0], [1], [0, 0, 1, 1], [], []>} : vector<8x32xbf16>, vector<32x64xbf16>, vector<8x64xf32> -> vector<8x64xf32>
    %c0_60 = arith.constant 0 : index
    %c0_61 = arith.constant 0 : index
    %84 = vector.load %arg15[%c0_60, %c0_61] : memref<2x64xf32, #tpu.memory_space<vmem>>, vector<1x64xf32>
    %85 = vector.broadcast %84 : vector<1x64xf32> to vector<8x64xf32>
    %86 = arith.addf %83, %85 : vector<8x64xf32>
    %cst_62 = arith.constant 5.000000e-01 : f32
    %87 = vector.broadcast %cst_62 : f32 to vector<8x64xf32>
    %88 = arith.mulf %87, %86 : vector<8x64xf32>
    %cst_63 = arith.constant 0.707106769 : f32
    %89 = vector.broadcast %cst_63 : f32 to vector<8x64xf32>
    %90 = arith.mulf %86, %89 : vector<8x64xf32>
    %91 = math.erf %90 : vector<8x64xf32>
    %cst_64 = arith.constant 1.000000e+00 : f32
    %92 = vector.broadcast %cst_64 : f32 to vector<8x64xf32>
    %93 = arith.addf %92, %91 : vector<8x64xf32>
    %94 = arith.mulf %88, %93 : vector<8x64xf32>
    %95 = arith.truncf %94 : vector<8x64xf32> to vector<8x64xbf16>
    %c0_65 = arith.constant 0 : index
    %c0_66 = arith.constant 0 : index
    %c0_67 = arith.constant 0 : index
    %96 = vector.load %arg16[%c0_65, %c0_66, %c0_67] : memref<2x64x32xbf16, #tpu.memory_space<vmem>>, vector<1x64x32xbf16>
    %97 = vector.shape_cast %96 : vector<1x64x32xbf16> to vector<64x32xbf16>
    %cst_68 = arith.constant dense<0.000000e+00> : vector<8x32xf32>
    %98 = tpu.matmul %95, %97, %cst_68 {dimension_numbers = #tpu.dot_dimension_numbers<[1], [0], [0], [1], [0, 0, 1, 1], [], []>} : vector<8x64xbf16>, vector<64x32xbf16>, vector<8x32xf32> -> vector<8x32xf32>
    %c0_69 = arith.constant 0 : index
    %c0_70 = arith.constant 0 : index
    %99 = vector.load %arg17[%c0_69, %c0_70] : memref<2x32xf32, #tpu.memory_space<vmem>>, vector<1x32xf32>
    %100 = vector.broadcast %99 : vector<1x32xf32> to vector<8x32xf32>
    %101 = arith.addf %98, %100 : vector<8x32xf32>
    %102 = arith.addf %79, %101 : vector<8x32xf32>
    %c0_71 = arith.constant 0 : index
    %c0_72 = arith.constant 0 : index
    %103 = vector.load %arg18[%c0_71, %c0_72] : memref<2x32xf32, #tpu.memory_space<vmem>>, vector<1x32xf32>
    %c0_73 = arith.constant 0 : index
    %c0_74 = arith.constant 0 : index
    %104 = vector.load %arg19[%c0_73, %c0_74] : memref<2x32xf32, #tpu.memory_space<vmem>>, vector<1x32xf32>
    %cst_75 = arith.constant dense<0.000000e+00> : vector<8xf32>
    %105 = vector.multi_reduction <add>, %102, %cst_75 [1] : vector<8x32xf32> to vector<8xf32>
    %106 = vector.shape_cast %105 : vector<8xf32> to vector<8x1xf32>
    %cst_76 = arith.constant 3.200000e+01 : f32
    %107 = vector.broadcast %cst_76 : f32 to vector<8x1xf32>
    %108 = arith.divf %106, %107 : vector<8x1xf32>
    %109 = vector.broadcast %108 : vector<8x1xf32> to vector<8x32xf32>
    %110 = arith.subf %102, %109 : vector<8x32xf32>
    %111 = arith.mulf %110, %110 : vector<8x32xf32>
    %cst_77 = arith.constant dense<0.000000e+00> : vector<8xf32>
    %112 = vector.multi_reduction <add>, %111, %cst_77 [1] : vector<8x32xf32> to vector<8xf32>
    %113 = vector.shape_cast %112 : vector<8xf32> to vector<8x1xf32>
    %cst_78 = arith.constant 3.200000e+01 : f32
    %114 = vector.broadcast %cst_78 : f32 to vector<8x1xf32>
    %115 = arith.divf %113, %114 : vector<8x1xf32>
    %116 = vector.broadcast %108 : vector<8x1xf32> to vector<8x32xf32>
    %117 = arith.subf %102, %116 : vector<8x32xf32>
    %cst_79 = arith.constant 9.99999974E-6 : f32
    %118 = vector.broadcast %cst_79 : f32 to vector<8x1xf32>
    %119 = arith.addf %115, %118 : vector<8x1xf32>
    %120 = math.rsqrt %119 : vector<8x1xf32>
    %121 = vector.broadcast %120 : vector<8x1xf32> to vector<8x32xf32>
    %122 = arith.mulf %117, %121 : vector<8x32xf32>
    %123 = vector.broadcast %103 : vector<1x32xf32> to vector<8x32xf32>
    %124 = arith.mulf %122, %123 : vector<8x32xf32>
    %125 = vector.broadcast %104 : vector<1x32xf32> to vector<8x32xf32>
    %126 = arith.addf %124, %125 : vector<8x32xf32>
    %127 = arith.truncf %126 : vector<8x32xf32> to vector<8x32xbf16>
    %128 = vector.shape_cast %127 : vector<8x32xbf16> to vector<1x8x32xbf16>
    %129 = vector.broadcast %128 : vector<1x8x32xbf16> to vector<4x8x32xbf16>
    %c1 = arith.constant 1 : index
    %c0_80 = arith.constant 0 : index
    %c0_81 = arith.constant 0 : index
    %c0_82 = arith.constant 0 : index
    %130 = vector.load %arg4[%c1, %c0_80, %c0_81, %c0_82] : memref<2x4x32x8xbf16, #tpu.memory_space<vmem>>, vector<1x4x32x8xbf16>
    %131 = vector.shape_cast %130 : vector<1x4x32x8xbf16> to vector<4x32x8xbf16>
    "tpu.trace_start"() <{level = 10 : i32, message = "hld,hde->hle"}> : () -> ()
    %cst_83 = arith.constant dense<0.000000e+00> : vector<4x8x8xf32>
    %132 = tpu.matmul %129, %131, %cst_83 {dimension_numbers = #tpu.dot_dimension_numbers<[2], [1], [1], [2], [0, 0, 0, 1, 1, 2], [0], [0]>} : vector<4x8x32xbf16>, vector<4x32x8xbf16>, vector<4x8x8xf32> -> vector<4x8x8xf32>
    "tpu.trace_stop"() : () -> ()
    %c1_84 = arith.constant 1 : index
    %c0_85 = arith.constant 0 : index
    %c0_86 = arith.constant 0 : index
    %c0_87 = arith.constant 0 : index
    %133 = vector.load %arg5[%c1_84, %c0_85, %c0_86, %c0_87] : memref<2x4x1x8xf32, #tpu.memory_space<vmem>>, vector<1x4x1x8xf32>
    %134 = vector.shape_cast %133 : vector<1x4x1x8xf32> to vector<4x1x8xf32>
    %135 = vector.broadcast %134 : vector<4x1x8xf32> to vector<4x8x8xf32>
    %136 = arith.addf %132, %135 : vector<4x8x8xf32>
    %c1_88 = arith.constant 1 : index
    %c0_89 = arith.constant 0 : index
    %c0_90 = arith.constant 0 : index
    %c0_91 = arith.constant 0 : index
    %137 = vector.load %arg6[%c1_88, %c0_89, %c0_90, %c0_91] : memref<2x4x32x8xbf16, #tpu.memory_space<vmem>>, vector<1x4x32x8xbf16>
    %138 = vector.shape_cast %137 : vector<1x4x32x8xbf16> to vector<4x32x8xbf16>
    "tpu.trace_start"() <{level = 10 : i32, message = "hld,hde->hle"}> : () -> ()
    %cst_92 = arith.constant dense<0.000000e+00> : vector<4x8x8xf32>
    %139 = tpu.matmul %129, %138, %cst_92 {dimension_numbers = #tpu.dot_dimension_numbers<[2], [1], [1], [2], [0, 0, 0, 1, 1, 2], [0], [0]>} : vector<4x8x32xbf16>, vector<4x32x8xbf16>, vector<4x8x8xf32> -> vector<4x8x8xf32>
    "tpu.trace_stop"() : () -> ()
    %c1_93 = arith.constant 1 : index
    %c0_94 = arith.constant 0 : index
    %c0_95 = arith.constant 0 : index
    %c0_96 = arith.constant 0 : index
    %140 = vector.load %arg7[%c1_93, %c0_94, %c0_95, %c0_96] : memref<2x4x1x8xf32, #tpu.memory_space<vmem>>, vector<1x4x1x8xf32>
    %141 = vector.shape_cast %140 : vector<1x4x1x8xf32> to vector<4x1x8xf32>
    %142 = vector.broadcast %141 : vector<4x1x8xf32> to vector<4x8x8xf32>
    %143 = arith.addf %139, %142 : vector<4x8x8xf32>
    %c1_97 = arith.constant 1 : index
    %c0_98 = arith.constant 0 : index
    %c0_99 = arith.constant 0 : index
    %c0_100 = arith.constant 0 : index
    %144 = vector.load %arg8[%c1_97, %c0_98, %c0_99, %c0_100] : memref<2x4x32x8xbf16, #tpu.memory_space<vmem>>, vector<1x4x32x8xbf16>
    %145 = vector.shape_cast %144 : vector<1x4x32x8xbf16> to vector<4x32x8xbf16>
    "tpu.trace_start"() <{level = 10 : i32, message = "hld,hde->hle"}> : () -> ()
    %cst_101 = arith.constant dense<0.000000e+00> : vector<4x8x8xf32>
    %146 = tpu.matmul %129, %145, %cst_101 {dimension_numbers = #tpu.dot_dimension_numbers<[2], [1], [1], [2], [0, 0, 0, 1, 1, 2], [0], [0]>} : vector<4x8x32xbf16>, vector<4x32x8xbf16>, vector<4x8x8xf32> -> vector<4x8x8xf32>
    "tpu.trace_stop"() : () -> ()
    %c1_102 = arith.constant 1 : index
    %c0_103 = arith.constant 0 : index
    %c0_104 = arith.constant 0 : index
    %c0_105 = arith.constant 0 : index
    %147 = vector.load %arg9[%c1_102, %c0_103, %c0_104, %c0_105] : memref<2x4x1x8xf32, #tpu.memory_space<vmem>>, vector<1x4x1x8xf32>
    %148 = vector.shape_cast %147 : vector<1x4x1x8xf32> to vector<4x1x8xf32>
    %149 = vector.broadcast %148 : vector<4x1x8xf32> to vector<4x8x8xf32>
    %150 = arith.addf %146, %149 : vector<4x8x8xf32>
    %151 = arith.truncf %136 : vector<4x8x8xf32> to vector<4x8x8xbf16>
    %152 = arith.truncf %143 : vector<4x8x8xf32> to vector<4x8x8xbf16>
    "tpu.trace_start"() <{level = 10 : i32, message = "hqd,hkd->hqk"}> : () -> ()
    %cst_106 = arith.constant dense<0.000000e+00> : vector<4x8x8xf32>
    %153 = tpu.matmul %151, %152, %cst_106 {dimension_numbers = #tpu.dot_dimension_numbers<[2], [2], [1], [1], [0, 0, 0, 1, 1, 1], [0], [0]>} : vector<4x8x8xbf16>, vector<4x8x8xbf16>, vector<4x8x8xf32> -> vector<4x8x8xf32>
    "tpu.trace_stop"() : () -> ()
    %cst_107 = arith.constant dense<0xFF800000> : vector<4x8xf32>
    %154 = vector.multi_reduction <maximumf>, %153, %cst_107 [2] : vector<4x8x8xf32> to vector<4x8xf32>
    %155 = vector.shape_cast %154 : vector<4x8xf32> to vector<4x8x1xf32>
    %156 = vector.broadcast %155 : vector<4x8x1xf32> to vector<4x8x8xf32>
    %157 = arith.subf %153, %156 : vector<4x8x8xf32>
    %158 = math.exp %157 : vector<4x8x8xf32>
    %cst_108 = arith.constant dense<0.000000e+00> : vector<4x8xf32>
    %159 = vector.multi_reduction <add>, %158, %cst_108 [2] : vector<4x8x8xf32> to vector<4x8xf32>
    %160 = vector.shape_cast %159 : vector<4x8xf32> to vector<4x8x1xf32>
    %161 = tpu.reciprocal %160 {approx = true} : vector<4x8x1xf32> -> vector<4x8x1xf32>
    %162 = vector.broadcast %161 : vector<4x8x1xf32> to vector<4x8x8xf32>
    %163 = arith.mulf %158, %162 : vector<4x8x8xf32>
    %164 = arith.truncf %163 : vector<4x8x8xf32> to vector<4x8x8xbf16>
    %165 = arith.truncf %150 : vector<4x8x8xf32> to vector<4x8x8xbf16>
    "tpu.trace_start"() <{level = 10 : i32, message = "hqk,hkd->hqd"}> : () -> ()
    %cst_109 = arith.constant dense<0.000000e+00> : vector<4x8x8xf32>
    %166 = tpu.matmul %164, %165, %cst_109 {dimension_numbers = #tpu.dot_dimension_numbers<[2], [1], [1], [2], [0, 0, 0, 1, 1, 2], [0], [0]>} : vector<4x8x8xbf16>, vector<4x8x8xbf16>, vector<4x8x8xf32> -> vector<4x8x8xf32>
    "tpu.trace_stop"() : () -> ()
    %167 = arith.truncf %166 : vector<4x8x8xf32> to vector<4x8x8xbf16>
    %c1_110 = arith.constant 1 : index
    %c0_111 = arith.constant 0 : index
    %c0_112 = arith.constant 0 : index
    %c0_113 = arith.constant 0 : index
    %168 = vector.load %arg10[%c1_110, %c0_111, %c0_112, %c0_113] : memref<2x4x8x32xbf16, #tpu.memory_space<vmem>>, vector<1x4x8x32xbf16>
    %169 = vector.shape_cast %168 : vector<1x4x8x32xbf16> to vector<4x8x32xbf16>
    "tpu.trace_start"() <{level = 10 : i32, message = "hqd,hde->hqe"}> : () -> ()
    %cst_114 = arith.constant dense<0.000000e+00> : vector<4x8x32xf32>
    %170 = tpu.matmul %167, %169, %cst_114 {dimension_numbers = #tpu.dot_dimension_numbers<[2], [1], [1], [2], [0, 0, 0, 1, 1, 2], [0], [0]>} : vector<4x8x8xbf16>, vector<4x8x32xbf16>, vector<4x8x32xf32> -> vector<4x8x32xf32>
    "tpu.trace_stop"() : () -> ()
    %cst_115 = arith.constant dense<0.000000e+00> : vector<8x32xf32>
    %171 = vector.multi_reduction <add>, %170, %cst_115 [0] : vector<4x8x32xf32> to vector<8x32xf32>
    %c1_116 = arith.constant 1 : index
    %c0_117 = arith.constant 0 : index
    %172 = vector.load %arg11[%c1_116, %c0_117] : memref<2x32xf32, #tpu.memory_space<vmem>>, vector<1x32xf32>
    %173 = vector.broadcast %172 : vector<1x32xf32> to vector<8x32xf32>
    %174 = arith.addf %171, %173 : vector<8x32xf32>
    %175 = arith.addf %126, %174 : vector<8x32xf32>
    %c1_118 = arith.constant 1 : index
    %c0_119 = arith.constant 0 : index
    %176 = vector.load %arg12[%c1_118, %c0_119] : memref<2x32xf32, #tpu.memory_space<vmem>>, vector<1x32xf32>
    %c1_120 = arith.constant 1 : index
    %c0_121 = arith.constant 0 : index
    %177 = vector.load %arg13[%c1_120, %c0_121] : memref<2x32xf32, #tpu.memory_space<vmem>>, vector<1x32xf32>
    %cst_122 = arith.constant dense<0.000000e+00> : vector<8xf32>
    %178 = vector.multi_reduction <add>, %175, %cst_122 [1] : vector<8x32xf32> to vector<8xf32>
    %179 = vector.shape_cast %178 : vector<8xf32> to vector<8x1xf32>
    %cst_123 = arith.constant 3.200000e+01 : f32
    %180 = vector.broadcast %cst_123 : f32 to vector<8x1xf32>
    %181 = arith.divf %179, %180 : vector<8x1xf32>
    %182 = vector.broadcast %181 : vector<8x1xf32> to vector<8x32xf32>
    %183 = arith.subf %175, %182 : vector<8x32xf32>
    %184 = arith.mulf %183, %183 : vector<8x32xf32>
    %cst_124 = arith.constant dense<0.000000e+00> : vector<8xf32>
    %185 = vector.multi_reduction <add>, %184, %cst_124 [1] : vector<8x32xf32> to vector<8xf32>
    %186 = vector.shape_cast %185 : vector<8xf32> to vector<8x1xf32>
    %cst_125 = arith.constant 3.200000e+01 : f32
    %187 = vector.broadcast %cst_125 : f32 to vector<8x1xf32>
    %188 = arith.divf %186, %187 : vector<8x1xf32>
    %189 = vector.broadcast %181 : vector<8x1xf32> to vector<8x32xf32>
    %190 = arith.subf %175, %189 : vector<8x32xf32>
    %cst_126 = arith.constant 9.99999974E-6 : f32
    %191 = vector.broadcast %cst_126 : f32 to vector<8x1xf32>
    %192 = arith.addf %188, %191 : vector<8x1xf32>
    %193 = math.rsqrt %192 : vector<8x1xf32>
    %194 = vector.broadcast %193 : vector<8x1xf32> to vector<8x32xf32>
    %195 = arith.mulf %190, %194 : vector<8x32xf32>
    %196 = vector.broadcast %176 : vector<1x32xf32> to vector<8x32xf32>
    %197 = arith.mulf %195, %196 : vector<8x32xf32>
    %198 = vector.broadcast %177 : vector<1x32xf32> to vector<8x32xf32>
    %199 = arith.addf %197, %198 : vector<8x32xf32>
    %200 = arith.truncf %199 : vector<8x32xf32> to vector<8x32xbf16>
    %c1_127 = arith.constant 1 : index
    %c0_128 = arith.constant 0 : index
    %c0_129 = arith.constant 0 : index
    %201 = vector.load %arg14[%c1_127, %c0_128, %c0_129] : memref<2x32x64xbf16, #tpu.memory_space<vmem>>, vector<1x32x64xbf16>
    %202 = vector.shape_cast %201 : vector<1x32x64xbf16> to vector<32x64xbf16>
    %cst_130 = arith.constant dense<0.000000e+00> : vector<8x64xf32>
    %203 = tpu.matmul %200, %202, %cst_130 {dimension_numbers = #tpu.dot_dimension_numbers<[1], [0], [0], [1], [0, 0, 1, 1], [], []>} : vector<8x32xbf16>, vector<32x64xbf16>, vector<8x64xf32> -> vector<8x64xf32>
    %c1_131 = arith.constant 1 : index
    %c0_132 = arith.constant 0 : index
    %204 = vector.load %arg15[%c1_131, %c0_132] : memref<2x64xf32, #tpu.memory_space<vmem>>, vector<1x64xf32>
    %205 = vector.broadcast %204 : vector<1x64xf32> to vector<8x64xf32>
    %206 = arith.addf %203, %205 : vector<8x64xf32>
    %cst_133 = arith.constant 5.000000e-01 : f32
    %207 = vector.broadcast %cst_133 : f32 to vector<8x64xf32>
    %208 = arith.mulf %207, %206 : vector<8x64xf32>
    %cst_134 = arith.constant 0.707106769 : f32
    %209 = vector.broadcast %cst_134 : f32 to vector<8x64xf32>
    %210 = arith.mulf %206, %209 : vector<8x64xf32>
    %211 = math.erf %210 : vector<8x64xf32>
    %cst_135 = arith.constant 1.000000e+00 : f32
    %212 = vector.broadcast %cst_135 : f32 to vector<8x64xf32>
    %213 = arith.addf %212, %211 : vector<8x64xf32>
    %214 = arith.mulf %208, %213 : vector<8x64xf32>
    %215 = arith.truncf %214 : vector<8x64xf32> to vector<8x64xbf16>
    %c1_136 = arith.constant 1 : index
    %c0_137 = arith.constant 0 : index
    %c0_138 = arith.constant 0 : index
    %216 = vector.load %arg16[%c1_136, %c0_137, %c0_138] : memref<2x64x32xbf16, #tpu.memory_space<vmem>>, vector<1x64x32xbf16>
    %217 = vector.shape_cast %216 : vector<1x64x32xbf16> to vector<64x32xbf16>
    %cst_139 = arith.constant dense<0.000000e+00> : vector<8x32xf32>
    %218 = tpu.matmul %215, %217, %cst_139 {dimension_numbers = #tpu.dot_dimension_numbers<[1], [0], [0], [1], [0, 0, 1, 1], [], []>} : vector<8x64xbf16>, vector<64x32xbf16>, vector<8x32xf32> -> vector<8x32xf32>
    %c1_140 = arith.constant 1 : index
    %c0_141 = arith.constant 0 : index
    %219 = vector.load %arg17[%c1_140, %c0_141] : memref<2x32xf32, #tpu.memory_space<vmem>>, vector<1x32xf32>
    %220 = vector.broadcast %219 : vector<1x32xf32> to vector<8x32xf32>
    %221 = arith.addf %218, %220 : vector<8x32xf32>
    %222 = arith.addf %199, %221 : vector<8x32xf32>
    %c1_142 = arith.constant 1 : index
    %c0_143 = arith.constant 0 : index
    %223 = vector.load %arg18[%c1_142, %c0_143] : memref<2x32xf32, #tpu.memory_space<vmem>>, vector<1x32xf32>
    %c1_144 = arith.constant 1 : index
    %c0_145 = arith.constant 0 : index
    %224 = vector.load %arg19[%c1_144, %c0_145] : memref<2x32xf32, #tpu.memory_space<vmem>>, vector<1x32xf32>
    %cst_146 = arith.constant dense<0.000000e+00> : vector<8xf32>
    %225 = vector.multi_reduction <add>, %222, %cst_146 [1] : vector<8x32xf32> to vector<8xf32>
    %226 = vector.shape_cast %225 : vector<8xf32> to vector<8x1xf32>
    %cst_147 = arith.constant 3.200000e+01 : f32
    %227 = vector.broadcast %cst_147 : f32 to vector<8x1xf32>
    %228 = arith.divf %226, %227 : vector<8x1xf32>
    %229 = vector.broadcast %228 : vector<8x1xf32> to vector<8x32xf32>
    %230 = arith.subf %222, %229 : vector<8x32xf32>
    %231 = arith.mulf %230, %230 : vector<8x32xf32>
    %cst_148 = arith.constant dense<0.000000e+00> : vector<8xf32>
    %232 = vector.multi_reduction <add>, %231, %cst_148 [1] : vector<8x32xf32> to vector<8xf32>
    %233 = vector.shape_cast %232 : vector<8xf32> to vector<8x1xf32>
    %cst_149 = arith.constant 3.200000e+01 : f32
    %234 = vector.broadcast %cst_149 : f32 to vector<8x1xf32>
    %235 = arith.divf %233, %234 : vector<8x1xf32>
    %236 = vector.broadcast %228 : vector<8x1xf32> to vector<8x32xf32>
    %237 = arith.subf %222, %236 : vector<8x32xf32>
    %cst_150 = arith.constant 9.99999974E-6 : f32
    %238 = vector.broadcast %cst_150 : f32 to vector<8x1xf32>
    %239 = arith.addf %235, %238 : vector<8x1xf32>
    %240 = math.rsqrt %239 : vector<8x1xf32>
    %241 = vector.broadcast %240 : vector<8x1xf32> to vector<8x32xf32>
    %242 = arith.mulf %237, %241 : vector<8x32xf32>
    %243 = vector.broadcast %223 : vector<1x32xf32> to vector<8x32xf32>
    %244 = arith.mulf %242, %243 : vector<8x32xf32>
    %245 = vector.broadcast %224 : vector<1x32xf32> to vector<8x32xf32>
    %246 = arith.addf %244, %245 : vector<8x32xf32>
    %c0_151 = arith.constant 0 : index
    %c0_152 = arith.constant 0 : index
    %247 = vector.load %arg20[%c0_151, %c0_152] : memref<1x32xf32, #tpu.memory_space<vmem>>, vector<1x32xf32>
    %c0_153 = arith.constant 0 : index
    %c0_154 = arith.constant 0 : index
    %248 = vector.load %arg21[%c0_153, %c0_154] : memref<1x32xf32, #tpu.memory_space<vmem>>, vector<1x32xf32>
    %cst_155 = arith.constant dense<0.000000e+00> : vector<8xf32>
    %249 = vector.multi_reduction <add>, %246, %cst_155 [1] : vector<8x32xf32> to vector<8xf32>
    %250 = vector.shape_cast %249 : vector<8xf32> to vector<8x1xf32>
    %cst_156 = arith.constant 3.200000e+01 : f32
    %251 = vector.broadcast %cst_156 : f32 to vector<8x1xf32>
    %252 = arith.divf %250, %251 : vector<8x1xf32>
    %253 = vector.broadcast %252 : vector<8x1xf32> to vector<8x32xf32>
    %254 = arith.subf %246, %253 : vector<8x32xf32>
    %255 = arith.mulf %254, %254 : vector<8x32xf32>
    %cst_157 = arith.constant dense<0.000000e+00> : vector<8xf32>
    %256 = vector.multi_reduction <add>, %255, %cst_157 [1] : vector<8x32xf32> to vector<8xf32>
    %257 = vector.shape_cast %256 : vector<8xf32> to vector<8x1xf32>
    %cst_158 = arith.constant 3.200000e+01 : f32
    %258 = vector.broadcast %cst_158 : f32 to vector<8x1xf32>
    %259 = arith.divf %257, %258 : vector<8x1xf32>
    %260 = vector.broadcast %252 : vector<8x1xf32> to vector<8x32xf32>
    %261 = arith.subf %246, %260 : vector<8x32xf32>
    %cst_159 = arith.constant 9.99999974E-6 : f32
    %262 = vector.broadcast %cst_159 : f32 to vector<8x1xf32>
    %263 = arith.addf %259, %262 : vector<8x1xf32>
    %264 = math.rsqrt %263 : vector<8x1xf32>
    %265 = vector.broadcast %264 : vector<8x1xf32> to vector<8x32xf32>
    %266 = arith.mulf %261, %265 : vector<8x32xf32>
    %267 = vector.broadcast %247 : vector<1x32xf32> to vector<8x32xf32>
    %268 = arith.mulf %266, %267 : vector<8x32xf32>
    %269 = vector.broadcast %248 : vector<1x32xf32> to vector<8x32xf32>
    %270 = arith.addf %268, %269 : vector<8x32xf32>
    %271 = arith.truncf %270 : vector<8x32xf32> to vector<8x32xbf16>
    %c0_160 = arith.constant 0 : index
    %c0_161 = arith.constant 0 : index
    %272 = vector.load %arg23[%c0_160, %c0_161] : memref<32x10xbf16, #tpu.memory_space<vmem>>, vector<32x10xbf16>
    %cst_162 = arith.constant dense<0.000000e+00> : vector<8x10xf32>
    %273 = tpu.matmul %271, %272, %cst_162 {dimension_numbers = #tpu.dot_dimension_numbers<[1], [0], [0], [1], [0, 0, 1, 1], [], []>} : vector<8x32xbf16>, vector<32x10xbf16>, vector<8x10xf32> -> vector<8x10xf32>
    %cst_163 = arith.constant dense<0xFF800000> : vector<8xf32>
    %274 = vector.multi_reduction <maximumf>, %273, %cst_163 [1] : vector<8x10xf32> to vector<8xf32>
    %275 = vector.shape_cast %274 : vector<8xf32> to vector<8x1xf32>
    %276 = vector.broadcast %275 : vector<8x1xf32> to vector<8x10xf32>
    %277 = arith.subf %273, %276 : vector<8x10xf32>
    %278 = math.exp %277 : vector<8x10xf32>
    %cst_164 = arith.constant dense<0.000000e+00> : vector<8xf32>
    %279 = vector.multi_reduction <add>, %278, %cst_164 [1] : vector<8x10xf32> to vector<8xf32>
    %280 = vector.shape_cast %279 : vector<8xf32> to vector<8x1xf32>
    %281 = vector.broadcast %280 : vector<8x1xf32> to vector<8x10xf32>
    %282 = arith.divf %278, %281 : vector<8x10xf32>
    %283 = arith.truncf %282 : vector<8x10xf32> to vector<8x10xbf16>
    %c0_165 = arith.constant 0 : index
    %c0_166 = arith.constant 0 : index
    %284 = vector.load %arg22[%c0_165, %c0_166] : memref<10x32xbf16, #tpu.memory_space<vmem>>, vector<10x32xbf16>
    %cst_167 = arith.constant dense<0.000000e+00> : vector<8x32xf32>
    %285 = tpu.matmul %283, %284, %cst_167 {dimension_numbers = #tpu.dot_dimension_numbers<[1], [0], [0], [1], [0, 0, 1, 1], [], []>} : vector<8x10xbf16>, vector<10x32xbf16>, vector<8x32xf32> -> vector<8x32xf32>
    %c0_168 = arith.constant 0 : index
    %c0_169 = arith.constant 0 : index
    %286 = vector.load %arg24[%c0_168, %c0_169] : memref<32x4xbf16, #tpu.memory_space<vmem>>, vector<32x4xbf16>
    %cst_170 = arith.constant dense<0.000000e+00> : vector<8x4xf32>
    %287 = tpu.matmul %271, %286, %cst_170 {dimension_numbers = #tpu.dot_dimension_numbers<[1], [0], [0], [1], [0, 0, 1, 1], [], []>} : vector<8x32xbf16>, vector<32x4xbf16>, vector<8x4xf32> -> vector<8x4xf32>
    %288 = arith.truncf %285 : vector<8x32xf32> to vector<8x32xbf16>
    %c0_171 = arith.constant 0 : index
    %c0_172 = arith.constant 0 : index
    %289 = vector.load %arg25[%c0_171, %c0_172] : memref<32x4xbf16, #tpu.memory_space<vmem>>, vector<32x4xbf16>
    %cst_173 = arith.constant dense<0.000000e+00> : vector<8x4xf32>
    %290 = tpu.matmul %288, %289, %cst_173 {dimension_numbers = #tpu.dot_dimension_numbers<[1], [0], [0], [1], [0, 0, 1, 1], [], []>} : vector<8x32xbf16>, vector<32x4xbf16>, vector<8x4xf32> -> vector<8x4xf32>
    %291 = arith.addf %287, %290 : vector<8x4xf32>
    %c0_174 = arith.constant 0 : index
    %c0_175 = arith.constant 0 : index
    %292 = vector.load %arg26[%c0_174, %c0_175] : memref<1x4xf32, #tpu.memory_space<vmem>>, vector<1x4xf32>
    %293 = vector.broadcast %292 : vector<1x4xf32> to vector<8x4xf32>
    %294 = arith.addf %291, %293 : vector<8x4xf32>
    %c0_176 = arith.constant 0 : index
    %c0_177 = arith.constant 0 : index
    %295 = vector.load %arg27[%c0_176, %c0_177] : memref<8x128xf32, #tpu.memory_space<vmem>>, vector<8x32xf32>
    tpu.vector_store %arg27[%c0_176, %c0_177], %270 {strides = array<i32>} : memref<8x128xf32, #tpu.memory_space<vmem>>, vector<8x32xf32>,
    %c0_178 = arith.constant 0 : index
    %c32 = arith.constant 32 : index
    %296 = vector.load %arg27[%c0_178, %c32] : memref<8x128xf32, #tpu.memory_space<vmem>>, vector<8x4xf32>
    tpu.vector_store %arg27[%c0_178, %c32], %294 {strides = array<i32>} : memref<8x128xf32, #tpu.memory_space<vmem>>, vector<8x4xf32>,
    %c0_179 = arith.constant 0 : index
    %c36 = arith.constant 36 : index
    %297 = vector.load %arg27[%c0_179, %c36] : memref<8x128xf32, #tpu.memory_space<vmem>>, vector<8x10xf32>
    tpu.vector_store %arg27[%c0_179, %c36], %282 {strides = array<i32>} : memref<8x128xf32, #tpu.memory_space<vmem>>, vector<8x10xf32>,
    return
  }
  func.func @transform_0(%arg0: i32) -> (i32, i32) {
    %c0_i32 = arith.constant 0 : i32
    %c0_i32_0 = arith.constant 0 : i32
    return %arg0, %c0_i32 : i32, i32
  }
  func.func @transform_1(%arg0: i32) -> (i32, i32) {
    %c0_i32 = arith.constant 0 : i32
    %c0_i32_0 = arith.constant 0 : i32
    %c0_i32_1 = arith.constant 0 : i32
    return %c0_i32, %c0_i32_0 : i32, i32
  }
  func.func @transform_2(%arg0: i32) -> (i32, i32) {
    %c0_i32 = arith.constant 0 : i32
    %c0_i32_0 = arith.constant 0 : i32
    %c0_i32_1 = arith.constant 0 : i32
    return %c0_i32, %c0_i32_0 : i32, i32
  }
  func.func @transform_3(%arg0: i32) -> (i32, i32, i32, i32) {
    %c0_i32 = arith.constant 0 : i32
    %c0_i32_0 = arith.constant 0 : i32
    %c0_i32_1 = arith.constant 0 : i32
    %c0_i32_2 = arith.constant 0 : i32
    %c0_i32_3 = arith.constant 0 : i32
    return %c0_i32, %c0_i32_0, %c0_i32_1, %c0_i32_2 : i32, i32, i32, i32
  }
  func.func @transform_4(%arg0: i32) -> (i32, i32, i32, i32) {
    %c0_i32 = arith.constant 0 : i32
    %c0_i32_0 = arith.constant 0 : i32
    %c0_i32_1 = arith.constant 0 : i32
    %c0_i32_2 = arith.constant 0 : i32
    %c0_i32_3 = arith.constant 0 : i32
    return %c0_i32, %c0_i32_0, %c0_i32_1, %c0_i32_2 : i32, i32, i32, i32
  }
  func.func @transform_5(%arg0: i32) -> (i32, i32, i32, i32) {
    %c0_i32 = arith.constant 0 : i32
    %c0_i32_0 = arith.constant 0 : i32
    %c0_i32_1 = arith.constant 0 : i32
    %c0_i32_2 = arith.constant 0 : i32
    %c0_i32_3 = arith.constant 0 : i32
    return %c0_i32, %c0_i32_0, %c0_i32_1, %c0_i32_2 : i32, i32, i32, i32
  }
  func.func @transform_6(%arg0: i32) -> (i32, i32, i32, i32) {
    %c0_i32 = arith.constant 0 : i32
    %c0_i32_0 = arith.constant 0 : i32
    %c0_i32_1 = arith.constant 0 : i32
    %c0_i32_2 = arith.constant 0 : i32
    %c0_i32_3 = arith.constant 0 : i32
    return %c0_i32, %c0_i32_0, %c0_i32_1, %c0_i32_2 : i32, i32, i32, i32
  }
  func.func @transform_7(%arg0: i32) -> (i32, i32, i32, i32) {
    %c0_i32 = arith.constant 0 : i32
    %c0_i32_0 = arith.constant 0 : i32
    %c0_i32_1 = arith.constant 0 : i32
    %c0_i32_2 = arith.constant 0 : i32
    %c0_i32_3 = arith.constant 0 : i32
    return %c0_i32, %c0_i32_0, %c0_i32_1, %c0_i32_2 : i32, i32, i32, i32
  }
  func.func @transform_8(%arg0: i32) -> (i32, i32, i32, i32) {
    %c0_i32 = arith.constant 0 : i32
    %c0_i32_0 = arith.constant 0 : i32
    %c0_i32_1 = arith.constant 0 : i32
    %c0_i32_2 = arith.constant 0 : i32
    %c0_i32_3 = arith.constant 0 : i32
    return %c0_i32, %c0_i32_0, %c0_i32_1, %c0_i32_2 : i32, i32, i32, i32
  }
  func.func @transform_9(%arg0: i32) -> (i32, i32, i32, i32) {
    %c0_i32 = arith.constant 0 : i32
    %c0_i32_0 = arith.constant 0 : i32
    %c0_i32_1 = arith.constant 0 : i32
    %c0_i32_2 = arith.constant 0 : i32
    %c0_i32_3 = arith.constant 0 : i32
    return %c0_i32, %c0_i32_0, %c0_i32_1, %c0_i32_2 : i32, i32, i32, i32
  }
  func.func @transform_10(%arg0: i32) -> (i32, i32) {
    %c0_i32 = arith.constant 0 : i32
    %c0_i32_0 = arith.constant 0 : i32
    %c0_i32_1 = arith.constant 0 : i32
    return %c0_i32, %c0_i32_0 : i32, i32
  }
  func.func @transform_11(%arg0: i32) -> (i32, i32) {
    %c0_i32 = arith.constant 0 : i32
    %c0_i32_0 = arith.constant 0 : i32
    %c0_i32_1 = arith.constant 0 : i32
    return %c0_i32, %c0_i32_0 : i32, i32
  }
  func.func @transform_12(%arg0: i32) -> (i32, i32) {
    %c0_i32 = arith.constant 0 : i32
    %c0_i32_0 = arith.constant 0 : i32
    %c0_i32_1 = arith.constant 0 : i32
    return %c0_i32, %c0_i32_0 : i32, i32
  }
  func.func @transform_13(%arg0: i32) -> (i32, i32, i32) {
    %c0_i32 = arith.constant 0 : i32
    %c0_i32_0 = arith.constant 0 : i32
    %c0_i32_1 = arith.constant 0 : i32
    %c0_i32_2 = arith.constant 0 : i32
    return %c0_i32, %c0_i32_0, %c0_i32_1 : i32, i32, i32
  }
  func.func @transform_14(%arg0: i32) -> (i32, i32) {
    %c0_i32 = arith.constant 0 : i32
    %c0_i32_0 = arith.constant 0 : i32
    %c0_i32_1 = arith.constant 0 : i32
    return %c0_i32, %c0_i32_0 : i32, i32
  }
  func.func @transform_15(%arg0: i32) -> (i32, i32, i32) {
    %c0_i32 = arith.constant 0 : i32
    %c0_i32_0 = arith.constant 0 : i32
    %c0_i32_1 = arith.constant 0 : i32
    %c0_i32_2 = arith.constant 0 : i32
    return %c0_i32, %c0_i32_0, %c0_i32_1 : i32, i32, i32
  }
  func.func @transform_16(%arg0: i32) -> (i32, i32) {
    %c0_i32 = arith.constant 0 : i32
    %c0_i32_0 = arith.constant 0 : i32
    %c0_i32_1 = arith.constant 0 : i32
    return %c0_i32, %c0_i32_0 : i32, i32
  }
  func.func @transform_17(%arg0: i32) -> (i32, i32) {
    %c0_i32 = arith.constant 0 : i32
    %c0_i32_0 = arith.constant 0 : i32
    %c0_i32_1 = arith.constant 0 : i32
    return %c0_i32, %c0_i32_0 : i32, i32
  }
  func.func @transform_18(%arg0: i32) -> (i32, i32) {
    %c0_i32 = arith.constant 0 : i32
    %c0_i32_0 = arith.constant 0 : i32
    %c0_i32_1 = arith.constant 0 : i32
    return %c0_i32, %c0_i32_0 : i32, i32
  }
  func.func @transform_19(%arg0: i32) -> (i32, i32) {
    %c0_i32 = arith.constant 0 : i32
    %c0_i32_0 = arith.constant 0 : i32
    %c0_i32_1 = arith.constant 0 : i32
    return %c0_i32, %c0_i32_0 : i32, i32
  }
  func.func @transform_20(%arg0: i32) -> (i32, i32) {
    %c0_i32 = arith.constant 0 : i32
    %c0_i32_0 = arith.constant 0 : i32
    %c0_i32_1 = arith.constant 0 : i32
    return %c0_i32, %c0_i32_0 : i32, i32
  }
  func.func @transform_21(%arg0: i32) -> (i32, i32) {
    %c0_i32 = arith.constant 0 : i32
    %c0_i32_0 = arith.constant 0 : i32
    %c0_i32_1 = arith.constant 0 : i32
    return %c0_i32, %c0_i32_0 : i32, i32
  }
  func.func @transform_22(%arg0: i32) -> (i32, i32) {
    %c0_i32 = arith.constant 0 : i32
    %c0_i32_0 = arith.constant 0 : i32
    %c0_i32_1 = arith.constant 0 : i32
    return %c0_i32, %c0_i32_0 : i32, i32
  }
  func.func @transform_23(%arg0: i32) -> (i32, i32) {
    %c0_i32 = arith.constant 0 : i32
    %c0_i32_0 = arith.constant 0 : i32
    %c0_i32_1 = arith.constant 0 : i32
    return %c0_i32, %c0_i32_0 : i32, i32
  }
  func.func @transform_24(%arg0: i32) -> (i32, i32) {
    %c0_i32 = arith.constant 0 : i32
    %c0_i32_0 = arith.constant 0 : i32
    %c0_i32_1 = arith.constant 0 : i32
    return %c0_i32, %c0_i32_0 : i32, i32
  }
  func.func @transform_25(%arg0: i32) -> (i32, i32) {
    %c0_i32 = arith.constant 0 : i32
    %c0_i32_0 = arith.constant 0 : i32
    %c0_i32_1 = arith.constant 0 : i32
    return %c0_i32, %c0_i32_0 : i32, i32
  }
  func.func @transform_26(%arg0: i32) -> (i32, i32) {
    %c0_i32 = arith.constant 0 : i32
    %c0_i32_0 = arith.constant 0 : i32
    return %arg0, %c0_i32 : i32, i32
  }
}

</mosaic_0001>

<llo_original>
// kernel: memto_forward.1
$region0: #{memto_forward.1}
  #allocation0 [shape = 'u32[]', space=smem, size = 0x4, offset = 0x4, fixed_abs, tag = 'smem constant byte address 0x4 - core index']
  #allocation1 [shape = 'u32[144,128]{1,0:T(1,128)}', space=vmem, size = 0x12000, scoped, tag = 'internal scratch']
  %s0 = inlined_call_operand.vmem [shape: bf16[16,12], index: 0, kind: input, shape index: {}]
  %s1 = inlined_call_operand.vmem [shape: f32[8,32], index: 1, kind: input, shape index: {}]
  %s2 = inlined_call_operand.vmem [shape: bf16[12,32], index: 2, kind: input, shape index: {}]
  %s3 = inlined_call_operand.vmem [shape: bf16[2,4,32,8], index: 3, kind: input, shape index: {}]
  %s4 = inlined_call_operand.vmem [shape: f32[2,4,1,8], index: 4, kind: input, shape index: {}]
  %s5 = inlined_call_operand.vmem [shape: bf16[2,4,32,8], index: 5, kind: input, shape index: {}]
  %s6 = inlined_call_operand.vmem [shape: f32[2,4,1,8], index: 6, kind: input, shape index: {}]
  %s7 = inlined_call_operand.vmem [shape: bf16[2,4,32,8], index: 7, kind: input, shape index: {}]
  %s8 = inlined_call_operand.vmem [shape: f32[2,4,1,8], index: 8, kind: input, shape index: {}]
  %s9 = inlined_call_operand.vmem [shape: bf16[2,4,8,32], index: 9, kind: input, shape index: {}]
  %s10 = inlined_call_operand.vmem [shape: f32[2,32], index: 10, kind: input, shape index: {}]
  %s11 = inlined_call_operand.vmem [shape: f32[2,32], index: 11, kind: input, shape index: {}]
  %s12 = inlined_call_operand.vmem [shape: f32[2,32], index: 12, kind: input, shape index: {}]
  %s13 = inlined_call_operand.vmem [shape: bf16[2,32,64], index: 13, kind: input, shape index: {}]
  %s14 = inlined_call_operand.vmem [shape: f32[2,64], index: 14, kind: input, shape index: {}]
  %s15 = inlined_call_operand.vmem [shape: bf16[2,64,32], index: 15, kind: input, shape index: {}]
  %s16 = inlined_call_operand.vmem [shape: f32[2,32], index: 16, kind: input, shape index: {}]
  %s17 = inlined_call_operand.vmem [shape: f32[2,32], index: 17, kind: input, shape index: {}]
  %s18 = inlined_call_operand.vmem [shape: f32[2,32], index: 18, kind: input, shape index: {}]
  %s19 = inlined_call_operand.vmem [shape: f32[1,32], index: 19, kind: input, shape index: {}]
  %s20 = inlined_call_operand.vmem [shape: f32[1,32], index: 20, kind: input, shape index: {}]
  %s21 = inlined_call_operand.vmem [shape: bf16[10,32], index: 21, kind: input, shape index: {}]
  %s22 = inlined_call_operand.vmem [shape: bf16[32,10], index: 22, kind: input, shape index: {}]
  %s23 = inlined_call_operand.vmem [shape: bf16[32,4], index: 23, kind: input, shape index: {}]
  %s24 = inlined_call_operand.vmem [shape: bf16[32,4], index: 24, kind: input, shape index: {}]
  %s25 = inlined_call_operand.vmem [shape: f32[1,4], index: 25, kind: input, shape index: {}]
  %s26 = inlined_call_operand.vmem [shape: f32[16,128], index: 26, kind: output, shape index: {}]
  %s27 = sld [smem:[#allocation0]]
  $region137: #{memto_forward.1} parent=0
    _
  %s29 = ssub.s32 1, %s27
  %s30 = scalar_select 0, %s29, %s27
  loop: start=0, step=1, limit=4
  $region2: #{memto_forward.1} parent=0 // loop_pre_header
    _
  $region3: #{memto_forward.1} parent=0 // loop_header
    %s32 = sphi 0, %s36
    %p33 = scmp.ge.s32.totalorder %s32, 4
    %s42 = sphi 0, %s44
    %s45 = sphi 0, %s42
    %s46 = sphi 0, %s45
    %s62 = sphi 0, %s46
    %s66 = sphi 0, %s66
    %s68 = sphi 0, %s66
    %s69 = sphi 0, %s68
    %s83 = sphi 0, %s69
    %s87 = sphi 0, %s87
    %s89 = sphi 0, %s87
    %s90 = sphi 0, %s89
    %s104 = sphi 0, %s90
    %s108 = sphi 0, %s108
    %s110 = sphi 0, %s108
    %s111 = sphi 0, %s110
    %s125 = sphi 0, %s111
    %s129 = sphi 0, %s129
    %s131 = sphi 0, %s129
    %s132 = sphi 0, %s131
    %s146 = sphi 0, %s132
    %s150 = sphi 0, %s150
    %s152 = sphi 0, %s150
    %s153 = sphi 0, %s152
    %s167 = sphi 0, %s153
    %s171 = sphi 0, %s171
    %s173 = sphi 0, %s171
    %s174 = sphi 0, %s173
    %s188 = sphi 0, %s174
    %s192 = sphi 0, %s192
    %s194 = sphi 0, %s192
    %s195 = sphi 0, %s194
    %s209 = sphi 0, %s195
    %s213 = sphi 0, %s213
    %s215 = sphi 0, %s213
    %s216 = sphi 0, %s215
    %s230 = sphi 0, %s216
    %s234 = sphi 0, %s234
    %s236 = sphi 0, %s234
    %s237 = sphi 0, %s236
    %s251 = sphi 0, %s237
    %s255 = sphi 0, %s255
    %s257 = sphi 0, %s255
    %s258 = sphi 0, %s257
    %s272 = sphi 0, %s258
    %s276 = sphi 0, %s276
    %s278 = sphi 0, %s276
    %s279 = sphi 0, %s278
    %s293 = sphi 0, %s279
    %s297 = sphi 0, %s297
    %s299 = sphi 0, %s297
    %s300 = sphi 0, %s299
    %s314 = sphi 0, %s300
    %s318 = sphi 0, %s318
    %s320 = sphi 0, %s318
    %s321 = sphi 0, %s320
    %s335 = sphi 0, %s321
    %s339 = sphi 0, %s339
    %s341 = sphi 0, %s339
    %s342 = sphi 0, %s341
    %s356 = sphi 0, %s342
    %s360 = sphi 0, %s360
    %s362 = sphi 0, %s360
    %s363 = sphi 0, %s362
    %s377 = sphi 0, %s363
    %s381 = sphi 0, %s381
    %s383 = sphi 0, %s381
    %s384 = sphi 0, %s383
    %s398 = sphi 0, %s384
    %s402 = sphi 0, %s402
    %s404 = sphi 0, %s402
    %s405 = sphi 0, %s404
    %s419 = sphi 0, %s405
    %s423 = sphi 0, %s423
    %s425 = sphi 0, %s423
    %s426 = sphi 0, %s425
    %s440 = sphi 0, %s426
    %s444 = sphi 0, %s444
    %s446 = sphi 0, %s444
    %s447 = sphi 0, %s446
    %s461 = sphi 0, %s447
    %s465 = sphi 0, %s465
    %s467 = sphi 0, %s465
    %s468 = sphi 0, %s467
    %s482 = sphi 0, %s468
    %s486 = sphi 0, %s486
    %s488 = sphi 0, %s486
    %s489 = sphi 0, %s488
    %s503 = sphi 0, %s489
    %s507 = sphi 0, %s507
    %s509 = sphi 0, %s507
    %s510 = sphi 0, %s509
    %s524 = sphi 0, %s510
    %s528 = sphi 0, %s528
    %s530 = sphi 0, %s528
    %s531 = sphi 0, %s530
    %s545 = sphi 0, %s531
    %s549 = sphi 0, %s549
    %s551 = sphi 0, %s549
    %s552 = sphi 0, %s551
    %s566 = sphi 0, %s552
    %s570 = sphi 0, %s570
    %s572 = sphi 0, %s570
    %s573 = sphi 0, %s572
    %s587 = sphi 0, %s573
    %s593 = sphi 0, %s595
    %s596 = sphi 0, %s593
    %s597 = sphi 0, %s596
    %s613 = sphi 0, %s597
  $region4: #{memto_forward.1} parent=0 // loop_header_branch
    %35 = sbr.rel (%p33) target = $region8
  $region5: #{memto_forward.1} parent=0 // loop_body
    %s37 = ssub.s32 %s32, 1
    %s38 = ssub.s32 %s32, 2
    %s39 = sadd.s32 %s32, 1
    %s40 = ssub.s32 %s32, %s39
    %p41 = scmp.eq.s32.totalorder %s40, 0
    %s43 = sadd.s32 %s42, 1
    %s44 = scalar_select %p41, %s42, %s43
    %p47 = pneg %p41
    %p48 = scmp.eq.s32.totalorder %s32, 1
    %p49 = por %p47, %p48
    %p50 = scmp.ne.s32.totalorder %s42, %s45
    %p51 = scmp.eq.s32.totalorder %s32, 0
    %p52 = por %p50, %p51
    %p53 = scmp.ne.s32.totalorder %s42, %s45
    %p54 = scmp.eq.s32.totalorder %s37, 1
    %p55 = por %p53, %p54
    %p56 = scmp.ne.s32.totalorder %s45, %s46
    %p57 = scmp.eq.s32.totalorder %s37, 0
    %p58 = por %p56, %p57
    %p59 = scmp.ne.s32.totalorder %s45, %s46
    %p60 = scmp.eq.s32.totalorder %s38, 1
    %p61 = por %p59, %p60
    %p63 = scmp.ne.s32.totalorder %s46, %s62
    %p64 = scmp.eq.s32.totalorder %s38, 0
    %p65 = por %p63, %p64
    %s67 = sadd.s32 %s66, 1
    %p70 = scmp.eq.s32.totalorder %s32, 1
    %p71 = scmp.ne.s32.totalorder %s66, %s68
    %p72 = scmp.eq.s32.totalorder %s32, 0
    %p73 = por %p71, %p72
    %p74 = scmp.ne.s32.totalorder %s66, %s68
    %p75 = scmp.eq.s32.totalorder %s37, 1
    %p76 = por %p74, %p75
    %p77 = scmp.ne.s32.totalorder %s68, %s69
    %p78 = scmp.eq.s32.totalorder %s37, 0
    %p79 = por %p77, %p78
    %p80 = scmp.ne.s32.totalorder %s68, %s69
    %p81 = scmp.eq.s32.totalorder %s38, 1
    %p82 = por %p80, %p81
    %p84 = scmp.ne.s32.totalorder %s69, %s83
    %p85 = scmp.eq.s32.totalorder %s38, 0
    %p86 = por %p84, %p85
    %s88 = sadd.s32 %s87, 1
    %p91 = scmp.eq.s32.totalorder %s32, 1
    %p92 = scmp.ne.s32.totalorder %s87, %s89
    %p93 = scmp.eq.s32.totalorder %s32, 0
    %p94 = por %p92, %p93
    %p95 = scmp.ne.s32.totalorder %s87, %s89
    %p96 = scmp.eq.s32.totalorder %s37, 1
    %p97 = por %p95, %p96
    %p98 = scmp.ne.s32.totalorder %s89, %s90
    %p99 = scmp.eq.s32.totalorder %s37, 0
    %p100 = por %p98, %p99
    %p101 = scmp.ne.s32.totalorder %s89, %s90
    %p102 = scmp.eq.s32.totalorder %s38, 1
    %p103 = por %p101, %p102
    %p105 = scmp.ne.s32.totalorder %s90, %s104
    %p106 = scmp.eq.s32.totalorder %s38, 0
    %p107 = por %p105, %p106
    %s109 = sadd.s32 %s108, 1
    %p112 = scmp.eq.s32.totalorder %s32, 1
    %p113 = scmp.ne.s32.totalorder %s108, %s110
    %p114 = scmp.eq.s32.totalorder %s32, 0
    %p115 = por %p113, %p114
    %p116 = scmp.ne.s32.totalorder %s108, %s110
    %p117 = scmp.eq.s32.totalorder %s37, 1
    %p118 = por %p116, %p117
    %p119 = scmp.ne.s32.totalorder %s110, %s111
    %p120 = scmp.eq.s32.totalorder %s37, 0
    %p121 = por %p119, %p120
    %p122 = scmp.ne.s32.totalorder %s110, %s111
    %p123 = scmp.eq.s32.totalorder %s38, 1
    %p124 = por %p122, %p123
    %p126 = scmp.ne.s32.totalorder %s111, %s125
    %p127 = scmp.eq.s32.totalorder %s38, 0
    %p128 = por %p126, %p127
    %s130 = sadd.s32 %s129, 1
    %p133 = scmp.eq.s32.totalorder %s32, 1
    %p134 = scmp.ne.s32.totalorder %s129, %s131
    %p135 = scmp.eq.s32.totalorder %s32, 0
    %p136 = por %p134, %p135
    %p137 = scmp.ne.s32.totalorder %s129, %s131
    %p138 = scmp.eq.s32.totalorder %s37, 1
    %p139 = por %p137, %p138
    %p140 = scmp.ne.s32.totalorder %s131, %s132
    %p141 = scmp.eq.s32.totalorder %s37, 0
    %p142 = por %p140, %p141
    %p143 = scmp.ne.s32.totalorder %s131, %s132
    %p144 = scmp.eq.s32.totalorder %s38, 1
    %p145 = por %p143, %p144
    %p147 = scmp.ne.s32.totalorder %s132, %s146
    %p148 = scmp.eq.s32.totalorder %s38, 0
    %p149 = por %p147, %p148
    %s151 = sadd.s32 %s150, 1
    %p154 = scmp.eq.s32.totalorder %s32, 1
    %p155 = scmp.ne.s32.totalorder %s150, %s152
    %p156 = scmp.eq.s32.totalorder %s32, 0
    %p157 = por %p155, %p156
    %p158 = scmp.ne.s32.totalorder %s150, %s152
    %p159 = scmp.eq.s32.totalorder %s37, 1
    %p160 = por %p158, %p159
    %p161 = scmp.ne.s32.totalorder %s152, %s153
    %p162 = scmp.eq.s32.totalorder %s37, 0
    %p163 = por %p161, %p162
    %p164 = scmp.ne.s32.totalorder %s152, %s153
    %p165 = scmp.eq.s32.totalorder %s38, 1
    %p166 = por %p164, %p165
    %p168 = scmp.ne.s32.totalorder %s153, %s167
    %p169 = scmp.eq.s32.totalorder %s38, 0
    %p170 = por %p168, %p169
    %s172 = sadd.s32 %s171, 1
    %p175 = scmp.eq.s32.totalorder %s32, 1
    %p176 = scmp.ne.s32.totalorder %s171, %s173
    %p177 = scmp.eq.s32.totalorder %s32, 0
    %p178 = por %p176, %p177
    %p179 = scmp.ne.s32.totalorder %s171, %s173
    %p180 = scmp.eq.s32.totalorder %s37, 1
    %p181 = por %p179, %p180
    %p182 = scmp.ne.s32.totalorder %s173, %s174
    %p183 = scmp.eq.s32.totalorder %s37, 0
    %p184 = por %p182, %p183
    %p185 = scmp.ne.s32.totalorder %s173, %s174
    %p186 = scmp.eq.s32.totalorder %s38, 1
    %p187 = por %p185, %p186
    %p189 = scmp.ne.s32.totalorder %s174, %s188
    %p190 = scmp.eq.s32.totalorder %s38, 0
    %p191 = por %p189, %p190
    %s193 = sadd.s32 %s192, 1
    %p196 = scmp.eq.s32.totalorder %s32, 1
    %p197 = scmp.ne.s32.totalorder %s192, %s194
    %p198 = scmp.eq.s32.totalorder %s32, 0
    %p199 = por %p197, %p198
    %p200 = scmp.ne.s32.totalorder %s192, %s194
    %p201 = scmp.eq.s32.totalorder %s37, 1
    %p202 = por %p200, %p201
    %p203 = scmp.ne.s32.totalorder %s194, %s195
    %p204 = scmp.eq.s32.totalorder %s37, 0
    %p205 = por %p203, %p204
    %p206 = scmp.ne.s32.totalorder %s194, %s195
    %p207 = scmp.eq.s32.totalorder %s38, 1
    %p208 = por %p206, %p207
    %p210 = scmp.ne.s32.totalorder %s195, %s209
    %p211 = scmp.eq.s32.totalorder %s38, 0
    %p212 = por %p210, %p211
    %s214 = sadd.s32 %s213, 1
    %p217 = scmp.eq.s32.totalorder %s32, 1
    %p218 = scmp.ne.s32.totalorder %s213, %s215
    %p219 = scmp.eq.s32.totalorder %s32, 0
    %p220 = por %p218, %p219
    %p221 = scmp.ne.s32.totalorder %s213, %s215
    %p222 = scmp.eq.s32.totalorder %s37, 1
    %p223 = por %p221, %p222
    %p224 = scmp.ne.s32.totalorder %s215, %s216
    %p225 = scmp.eq.s32.totalorder %s37, 0
    %p226 = por %p224, %p225
    %p227 = scmp.ne.s32.totalorder %s215, %s216
    %p228 = scmp.eq.s32.totalorder %s38, 1
    %p229 = por %p227, %p228
    %p231 = scmp.ne.s32.totalorder %s216, %s230
    %p232 = scmp.eq.s32.totalorder %s38, 0
    %p233 = por %p231, %p232
    %s235 = sadd.s32 %s234, 1
    %p238 = scmp.eq.s32.totalorder %s32, 1
    %p239 = scmp.ne.s32.totalorder %s234, %s236
    %p240 = scmp.eq.s32.totalorder %s32, 0
    %p241 = por %p239, %p240
    %p242 = scmp.ne.s32.totalorder %s234, %s236
    %p243 = scmp.eq.s32.totalorder %s37, 1
    %p244 = por %p242, %p243
    %p245 = scmp.ne.s32.totalorder %s236, %s237
    %p246 = scmp.eq.s32.totalorder %s37, 0
    %p247 = por %p245, %p246
    %p248 = scmp.ne.s32.totalorder %s236, %s237
    %p249 = scmp.eq.s32.totalorder %s38, 1
    %p250 = por %p248, %p249
    %p252 = scmp.ne.s32.totalorder %s237, %s251
    %p253 = scmp.eq.s32.totalorder %s38, 0
    %p254 = por %p252, %p253
    %s256 = sadd.s32 %s255, 1
    %p259 = scmp.eq.s32.totalorder %s32, 1
    %p260 = scmp.ne.s32.totalorder %s255, %s257
    %p261 = scmp.eq.s32.totalorder %s32, 0
    %p262 = por %p260, %p261
    %p263 = scmp.ne.s32.totalorder %s255, %s257
    %p264 = scmp.eq.s32.totalorder %s37, 1
    %p265 = por %p263, %p264
    %p266 = scmp.ne.s32.totalorder %s257, %s258
    %p267 = scmp.eq.s32.totalorder %s37, 0
    %p268 = por %p266, %p267
    %p269 = scmp.ne.s32.totalorder %s257, %s258
    %p270 = scmp.eq.s32.totalorder %s38, 1
    %p271 = por %p269, %p270
    %p273 = scmp.ne.s32.totalorder %s258, %s272
    %p274 = scmp.eq.s32.totalorder %s38, 0
    %p275 = por %p273, %p274
    %s277 = sadd.s32 %s276, 1
    %p280 = scmp.eq.s32.totalorder %s32, 1
    %p281 = scmp.ne.s32.totalorder %s276, %s278
    %p282 = scmp.eq.s32.totalorder %s32, 0
    %p283 = por %p281, %p282
    %p284 = scmp.ne.s32.totalorder %s276, %s278
    %p285 = scmp.eq.s32.totalorder %s37, 1
    %p286 = por %p284, %p285
    %p287 = scmp.ne.s32.totalorder %s278, %s279
    %p288 = scmp.eq.s32.totalorder %s37, 0
    %p289 = por %p287, %p288
    %p290 = scmp.ne.s32.totalorder %s278, %s279
    %p291 = scmp.eq.s32.totalorder %s38, 1
    %p292 = por %p290, %p291
    %p294 = scmp.ne.s32.totalorder %s279, %s293
    %p295 = scmp.eq.s32.totalorder %s38, 0
    %p296 = por %p294, %p295
    %s298 = sadd.s32 %s297, 1
    %p301 = scmp.eq.s32.totalorder %s32, 1
    %p302 = scmp.ne.s32.totalorder %s297, %s299
    %p303 = scmp.eq.s32.totalorder %s32, 0
    %p304 = por %p302, %p303
    %p305 = scmp.ne.s32.totalorder %s297, %s299
    %p306 = scmp.eq.s32.totalorder %s37, 1
    %p307 = por %p305, %p306
    %p308 = scmp.ne.s32.totalorder %s299, %s300
    %p309 = scmp.eq.s32.totalorder %s37, 0
    %p310 = por %p308, %p309
    %p311 = scmp.ne.s32.totalorder %s299, %s300
    %p312 = scmp.eq.s32.totalorder %s38, 1
    %p313 = por %p311, %p312
    %p315 = scmp.ne.s32.totalorder %s300, %s314
    %p316 = scmp.eq.s32.totalorder %s38, 0
    %p317 = por %p315, %p316
    %s319 = sadd.s32 %s318, 1
    %p322 = scmp.eq.s32.totalorder %s32, 1
    %p323 = scmp.ne.s32.totalorder %s318, %s320
    %p324 = scmp.eq.s32.totalorder %s32, 0
    %p325 = por %p323, %p324
    %p326 = scmp.ne.s32.totalorder %s318, %s320
    %p327 = scmp.eq.s32.totalorder %s37, 1
    %p328 = por %p326, %p327
    %p329 = scmp.ne.s32.totalorder %s320, %s321
    %p330 = scmp.eq.s32.totalorder %s37, 0
    %p331 = por %p329, %p330
    %p332 = scmp.ne.s32.totalorder %s320, %s321
    %p333 = scmp.eq.s32.totalorder %s38, 1
    %p334 = por %p332, %p333
    %p336 = scmp.ne.s32.totalorder %s321, %s335
    %p337 = scmp.eq.s32.totalorder %s38, 0
    %p338 = por %p336, %p337
    %s340 = sadd.s32 %s339, 1
    %p343 = scmp.eq.s32.totalorder %s32, 1
    %p344 = scmp.ne.s32.totalorder %s339, %s341
    %p345 = scmp.eq.s32.totalorder %s32, 0
    %p346 = por %p344, %p345
    %p347 = scmp.ne.s32.totalorder %s339, %s341
    %p348 = scmp.eq.s32.totalorder %s37, 1
    %p349 = por %p347, %p348
    %p350 = scmp.ne.s32.totalorder %s341, %s342
    %p351 = scmp.eq.s32.totalorder %s37, 0
    %p352 = por %p350, %p351
    %p353 = scmp.ne.s32.totalorder %s341, %s342
    %p354 = scmp.eq.s32.totalorder %s38, 1
    %p355 = por %p353, %p354
    %p357 = scmp.ne.s32.totalorder %s342, %s356
    %p358 = scmp.eq.s32.totalorder %s38, 0
    %p359 = por %p357, %p358
    %s361 = sadd.s32 %s360, 1
    %p364 = scmp.eq.s32.totalorder %s32, 1
    %p365 = scmp.ne.s32.totalorder %s360, %s362
    %p366 = scmp.eq.s32.totalorder %s32, 0
    %p367 = por %p365, %p366
    %p368 = scmp.ne.s32.totalorder %s360, %s362
    %p369 = scmp.eq.s32.totalorder %s37, 1
    %p370 = por %p368, %p369
    %p371 = scmp.ne.s32.totalorder %s362, %s363
    %p372 = scmp.eq.s32.totalorder %s37, 0
    %p373 = por %p371, %p372
    %p374 = scmp.ne.s32.totalorder %s362, %s363
    %p375 = scmp.eq.s32.totalorder %s38, 1
    %p376 = por %p374, %p375
    %p378 = scmp.ne.s32.totalorder %s363, %s377
    %p379 = scmp.eq.s32.totalorder %s38, 0
    %p380 = por %p378, %p379
    %s382 = sadd.s32 %s381, 1
    %p385 = scmp.eq.s32.totalorder %s32, 1
    %p386 = scmp.ne.s32.totalorder %s381, %s383
    %p387 = scmp.eq.s32.totalorder %s32, 0
    %p388 = por %p386, %p387
    %p389 = scmp.ne.s32.totalorder %s381, %s383
    %p390 = scmp.eq.s32.totalorder %s37, 1
    %p391 = por %p389, %p390
    %p392 = scmp.ne.s32.totalorder %s383, %s384
    %p393 = scmp.eq.s32.totalorder %s37, 0
    %p394 = por %p392, %p393
    %p395 = scmp.ne.s32.totalorder %s383, %s384
    %p396 = scmp.eq.s32.totalorder %s38, 1
    %p397 = por %p395, %p396
    %p399 = scmp.ne.s32.totalorder %s384, %s398
    %p400 = scmp.eq.s32.totalorder %s38, 0
    %p401 = por %p399, %p400
    %s403 = sadd.s32 %s402, 1
    %p406 = scmp.eq.s32.totalorder %s32, 1
    %p407 = scmp.ne.s32.totalorder %s402, %s404
    %p408 = scmp.eq.s32.totalorder %s32, 0
    %p409 = por %p407, %p408
    %p410 = scmp.ne.s32.totalorder %s402, %s404
    %p411 = scmp.eq.s32.totalorder %s37, 1
    %p412 = por %p410, %p411
    %p413 = scmp.ne.s32.totalorder %s404, %s405
    %p414 = scmp.eq.s32.totalorder %s37, 0
    %p415 = por %p413, %p414
    %p416 = scmp.ne.s32.totalorder %s404, %s405
    %p417 = scmp.eq.s32.totalorder %s38, 1
    %p418 = por %p416, %p417
    %p420 = scmp.ne.s32.totalorder %s405, %s419
    %p421 = scmp.eq.s32.totalorder %s38, 0
    %p422 = por %p420, %p421
    %s424 = sadd.s32 %s423, 1
    %p427 = scmp.eq.s32.totalorder %s32, 1
    %p428 = scmp.ne.s32.totalorder %s423, %s425
    %p429 = scmp.eq.s32.totalorder %s32, 0
    %p430 = por %p428, %p429
    %p431 = scmp.ne.s32.totalorder %s423, %s425
    %p432 = scmp.eq.s32.totalorder %s37, 1
    %p433 = por %p431, %p432
    %p434 = scmp.ne.s32.totalorder %s425, %s426
    %p435 = scmp.eq.s32.totalorder %s37, 0
    %p436 = por %p434, %p435
    %p437 = scmp.ne.s32.totalorder %s425, %s426
    %p438 = scmp.eq.s32.totalorder %s38, 1
    %p439 = por %p437, %p438
    %p441 = scmp.ne.s32.totalorder %s426, %s440
    %p442 = scmp.eq.s32.totalorder %s38, 0
    %p443 = por %p441, %p442
    %s445 = sadd.s32 %s444, 1
    %p448 = scmp.eq.s32.totalorder %s32, 1
    %p449 = scmp.ne.s32.totalorder %s444, %s446
    %p450 = scmp.eq.s32.totalorder %s32, 0
    %p451 = por %p449, %p450
    %p452 = scmp.ne.s32.totalorder %s444, %s446
    %p453 = scmp.eq.s32.totalorder %s37, 1
    %p454 = por %p452, %p453
    %p455 = scmp.ne.s32.totalorder %s446, %s447
    %p456 = scmp.eq.s32.totalorder %s37, 0
    %p457 = por %p455, %p456
    %p458 = scmp.ne.s32.totalorder %s446, %s447
    %p459 = scmp.eq.s32.totalorder %s38, 1
    %p460 = por %p458, %p459
    %p462 = scmp.ne.s32.totalorder %s447, %s461
    %p463 = scmp.eq.s32.totalorder %s38, 0
    %p464 = por %p462, %p463
    %s466 = sadd.s32 %s465, 1
    %p469 = scmp.eq.s32.totalorder %s32, 1
    %p470 = scmp.ne.s32.totalorder %s465, %s467
    %p471 = scmp.eq.s32.totalorder %s32, 0
    %p472 = por %p470, %p471
    %p473 = scmp.ne.s32.totalorder %s465, %s467
    %p474 = scmp.eq.s32.totalorder %s37, 1
    %p475 = por %p473, %p474
    %p476 = scmp.ne.s32.totalorder %s467, %s468
    %p477 = scmp.eq.s32.totalorder %s37, 0
    %p478 = por %p476, %p477
    %p479 = scmp.ne.s32.totalorder %s467, %s468
    %p480 = scmp.eq.s32.totalorder %s38, 1
    %p481 = por %p479, %p480
    %p483 = scmp.ne.s32.totalorder %s468, %s482
    %p484 = scmp.eq.s32.totalorder %s38, 0
    %p485 = por %p483, %p484
    %s487 = sadd.s32 %s486, 1
    %p490 = scmp.eq.s32.totalorder %s32, 1
    %p491 = scmp.ne.s32.totalorder %s486, %s488
    %p492 = scmp.eq.s32.totalorder %s32, 0
    %p493 = por %p491, %p492
    %p494 = scmp.ne.s32.totalorder %s486, %s488
    %p495 = scmp.eq.s32.totalorder %s37, 1
    %p496 = por %p494, %p495
    %p497 = scmp.ne.s32.totalorder %s488, %s489
    %p498 = scmp.eq.s32.totalorder %s37, 0
    %p499 = por %p497, %p498
    %p500 = scmp.ne.s32.totalorder %s488, %s489
    %p501 = scmp.eq.s32.totalorder %s38, 1
    %p502 = por %p500, %p501
    %p504 = scmp.ne.s32.totalorder %s489, %s503
    %p505 = scmp.eq.s32.totalorder %s38, 0
    %p506 = por %p504, %p505
    %s508 = sadd.s32 %s507, 1
    %p511 = scmp.eq.s32.totalorder %s32, 1
    %p512 = scmp.ne.s32.totalorder %s507, %s509
    %p513 = scmp.eq.s32.totalorder %s32, 0
    %p514 = por %p512, %p513
    %p515 = scmp.ne.s32.totalorder %s507, %s509
    %p516 = scmp.eq.s32.totalorder %s37, 1
    %p517 = por %p515, %p516
    %p518 = scmp.ne.s32.totalorder %s509, %s510
    %p519 = scmp.eq.s32.totalorder %s37, 0
    %p520 = por %p518, %p519
    %p521 = scmp.ne.s32.totalorder %s509, %s510
    %p522 = scmp.eq.s32.totalorder %s38, 1
    %p523 = por %p521, %p522
    %p525 = scmp.ne.s32.totalorder %s510, %s524
    %p526 = scmp.eq.s32.totalorder %s38, 0
    %p527 = por %p525, %p526
    %s529 = sadd.s32 %s528, 1
    %p532 = scmp.eq.s32.totalorder %s32, 1
    %p533 = scmp.ne.s32.totalorder %s528, %s530
    %p534 = scmp.eq.s32.totalorder %s32, 0
    %p535 = por %p533, %p534
    %p536 = scmp.ne.s32.totalorder %s528, %s530
    %p537 = scmp.eq.s32.totalorder %s37, 1
    %p538 = por %p536, %p537
    %p539 = scmp.ne.s32.totalorder %s530, %s531
    %p540 = scmp.eq.s32.totalorder %s37, 0
    %p541 = por %p539, %p540
    %p542 = scmp.ne.s32.totalorder %s530, %s531
    %p543 = scmp.eq.s32.totalorder %s38, 1
    %p544 = por %p542, %p543
    %p546 = scmp.ne.s32.totalorder %s531, %s545
    %p547 = scmp.eq.s32.totalorder %s38, 0
    %p548 = por %p546, %p547
    %s550 = sadd.s32 %s549, 1
    %p553 = scmp.eq.s32.totalorder %s32, 1
    %p554 = scmp.ne.s32.totalorder %s549, %s551
    %p555 = scmp.eq.s32.totalorder %s32, 0
    %p556 = por %p554, %p555
    %p557 = scmp.ne.s32.totalorder %s549, %s551
    %p558 = scmp.eq.s32.totalorder %s37, 1
    %p559 = por %p557, %p558
    %p560 = scmp.ne.s32.totalorder %s551, %s552
    %p561 = scmp.eq.s32.totalorder %s37, 0
    %p562 = por %p560, %p561
    %p563 = scmp.ne.s32.totalorder %s551, %s552
    %p564 = scmp.eq.s32.totalorder %s38, 1
    %p565 = por %p563, %p564
    %p567 = scmp.ne.s32.totalorder %s552, %s566
    %p568 = scmp.eq.s32.totalorder %s38, 0
    %p569 = por %p567, %p568
    %s571 = sadd.s32 %s570, 1
    %p574 = scmp.eq.s32.totalorder %s32, 1
    %p575 = scmp.ne.s32.totalorder %s570, %s572
    %p576 = scmp.eq.s32.totalorder %s32, 0
    %p577 = por %p575, %p576
    %p578 = scmp.ne.s32.totalorder %s570, %s572
    %p579 = scmp.eq.s32.totalorder %s37, 1
    %p580 = por %p578, %p579
    %p581 = scmp.ne.s32.totalorder %s572, %s573
    %p582 = scmp.eq.s32.totalorder %s37, 0
    %p583 = por %p581, %p582
    %p584 = scmp.ne.s32.totalorder %s572, %s573
    %p585 = scmp.eq.s32.totalorder %s38, 1
    %p586 = por %p584, %p585
    %p588 = scmp.ne.s32.totalorder %s573, %s587
    %p589 = scmp.eq.s32.totalorder %s38, 0
    %p590 = por %p588, %p589
    %s591 = ssub.s32 %s32, %s39
    %p592 = scmp.eq.s32.totalorder %s591, 0
    %s594 = sadd.s32 %s593, 1
    %s595 = scalar_select %p592, %s593, %s594
    %p598 = pneg %p592
    %p599 = scmp.eq.s32.totalorder %s32, 1
    %p600 = por %p598, %p599
    %p601 = scmp.ne.s32.totalorder %s593, %s596
    %p602 = scmp.eq.s32.totalorder %s32, 0
    %p603 = por %p601, %p602
    %p604 = scmp.ne.s32.totalorder %s593, %s596
    %p605 = scmp.eq.s32.totalorder %s37, 1
    %p606 = por %p604, %p605
    %p607 = scmp.ne.s32.totalorder %s596, %s597
    %p608 = scmp.eq.s32.totalorder %s37, 0
    %p609 = por %p607, %p608
    %p610 = scmp.ne.s32.totalorder %s596, %s597
    %p611 = scmp.eq.s32.totalorder %s38, 1
    %p612 = por %p610, %p611
    %p614 = scmp.ne.s32.totalorder %s597, %s613
    %p615 = scmp.eq.s32.totalorder %s38, 0
    %p616 = por %p614, %p615
    %p617 = scmp.le.s32.totalorder 1, %s32
    %p618 = scmp.lt.s32.totalorder %s32, 3
    %p619 = pnand %p617, %p618
    %p620 = pneg %p619
    // Predicated region
    $region9: #{memto_forward.1} parent=5 // pred_check
      _
    $region10: #{memto_forward.1} parent=5 // pred_check_branch
      %622 = sbr.rel (%p619) target = $region12
    $region11: #{memto_forward.1} parent=5 // pred_region
      %s623 = ssub.s32 %s32, 1
      // Predicated region
      $region13: #{memto_forward.1} parent=11 // pred_check
        %p624 = pneg %p79
      $region14: #{memto_forward.1} parent=11 // pred_check_branch
        %626 = sbr.rel (%p624) target = $region16
      $region15: #{memto_forward.1} parent=11 // pred_region
        _
      $region16: #{memto_forward.1} parent=11 // pred_fallthru
        _
      // Predicated region
      $region17: #{memto_forward.1} parent=11 // pred_check
        %p627 = pneg %p100
      $region18: #{memto_forward.1} parent=11 // pred_check_branch
        %629 = sbr.rel (%p627) target = $region20
      $region19: #{memto_forward.1} parent=11 // pred_region
        _
      $region20: #{memto_forward.1} parent=11 // pred_fallthru
        _
      // Predicated region
      $region21: #{memto_forward.1} parent=11 // pred_check
        %p630 = pneg %p121
      $region22: #{memto_forward.1} parent=11 // pred_check_branch
        %632 = sbr.rel (%p630) target = $region24
      $region23: #{memto_forward.1} parent=11 // pred_region
        _
      $region24: #{memto_forward.1} parent=11 // pred_fallthru
        _
      // Predicated region
      $region25: #{memto_forward.1} parent=11 // pred_check
        %p633 = pneg %p142
      $region26: #{memto_forward.1} parent=11 // pred_check_branch
        %635 = sbr.rel (%p633) target = $region28
      $region27: #{memto_forward.1} parent=11 // pred_region
        _
      $region28: #{memto_forward.1} parent=11 // pred_fallthru
        _
      // Predicated region
      $region29: #{memto_forward.1} parent=11 // pred_check
        %p636 = pneg %p163
      $region30: #{memto_forward.1} parent=11 // pred_check_branch
        %638 = sbr.rel (%p636) target = $region32
      $region31: #{memto_forward.1} parent=11 // pred_region
        _
      $region32: #{memto_forward.1} parent=11 // pred_fallthru
        _
      // Predicated region
      $region33: #{memto_forward.1} parent=11 // pred_check
        %p639 = pneg %p184
      $region34: #{memto_forward.1} parent=11 // pred_check_branch
        %641 = sbr.rel (%p639) target = $region36
      $region35: #{memto_forward.1} parent=11 // pred_region
        _
      $region36: #{memto_forward.1} parent=11 // pred_fallthru
        _
      // Predicated region
      $region37: #{memto_forward.1} parent=11 // pred_check
        %p642 = pneg %p205
      $region38: #{memto_forward.1} parent=11 // pred_check_branch
        %644 = sbr.rel (%p642) target = $region40
      $region39: #{memto_forward.1} parent=11 // pred_region
        _
      $region40: #{memto_forward.1} parent=11 // pred_fallthru
        _
      // Predicated region
      $region41: #{memto_forward.1} parent=11 // pred_check
        %p645 = pneg %p226
      $region42: #{memto_forward.1} parent=11 // pred_check_branch
        %647 = sbr.rel (%p645) target = $region44
      $region43: #{memto_forward.1} parent=11 // pred_region
        _
      $region44: #{memto_forward.1} parent=11 // pred_fallthru
        _
      // Predicated region
      $region45: #{memto_forward.1} parent=11 // pred_check
        %p648 = pneg %p247
      $region46: #{memto_forward.1} parent=11 // pred_check_branch
        %650 = sbr.rel (%p648) target = $region48
      $region47: #{memto_forward.1} parent=11 // pred_region
        _
      $region48: #{memto_forward.1} parent=11 // pred_fallthru
        _
      // Predicated region
      $region49: #{memto_forward.1} parent=11 // pred_check
        %p651 = pneg %p268
      $region50: #{memto_forward.1} parent=11 // pred_check_branch
        %653 = sbr.rel (%p651) target = $region52
      $region51: #{memto_forward.1} parent=11 // pred_region
        _
      $region52: #{memto_forward.1} parent=11 // pred_fallthru
        _
      // Predicated region
      $region53: #{memto_forward.1} parent=11 // pred_check
        %p654 = pneg %p289
      $region54: #{memto_forward.1} parent=11 // pred_check_branch
        %656 = sbr.rel (%p654) target = $region56
      $region55: #{memto_forward.1} parent=11 // pred_region
        _
      $region56: #{memto_forward.1} parent=11 // pred_fallthru
        _
      // Predicated region
      $region57: #{memto_forward.1} parent=11 // pred_check
        %p657 = pneg %p310
      $region58: #{memto_forward.1} parent=11 // pred_check_branch
        %659 = sbr.rel (%p657) target = $region60
      $region59: #{memto_forward.1} parent=11 // pred_region
        _
      $region60: #{memto_forward.1} parent=11 // pred_fallthru
        _
      // Predicated region
      $region61: #{memto_forward.1} parent=11 // pred_check
        %p660 = pneg %p331
      $region62: #{memto_forward.1} parent=11 // pred_check_branch
        %662 = sbr.rel (%p660) target = $region64
      $region63: #{memto_forward.1} parent=11 // pred_region
        _
      $region64: #{memto_forward.1} parent=11 // pred_fallthru
        _
      // Predicated region
      $region65: #{memto_forward.1} parent=11 // pred_check
        %p663 = pneg %p352
      $region66: #{memto_forward.1} parent=11 // pred_check_branch
        %665 = sbr.rel (%p663) target = $region68
      $region67: #{memto_forward.1} parent=11 // pred_region
        _
      $region68: #{memto_forward.1} parent=11 // pred_fallthru
        _
      // Predicated region
      $region69: #{memto_forward.1} parent=11 // pred_check
        %p666 = pneg %p373
      $region70: #{memto_forward.1} parent=11 // pred_check_branch
        %668 = sbr.rel (%p666) target = $region72
      $region71: #{memto_forward.1} parent=11 // pred_region
        _
      $region72: #{memto_forward.1} parent=11 // pred_fallthru
        _
      // Predicated region
      $region73: #{memto_forward.1} parent=11 // pred_check
        %p669 = pneg %p394
      $region74: #{memto_forward.1} parent=11 // pred_check_branch
        %671 = sbr.rel (%p669) target = $region76
      $region75: #{memto_forward.1} parent=11 // pred_region
        _
      $region76: #{memto_forward.1} parent=11 // pred_fallthru
        _
      // Predicated region
      $region77: #{memto_forward.1} parent=11 // pred_check
        %p672 = pneg %p415
      $region78: #{memto_forward.1} parent=11 // pred_check_branch
        %674 = sbr.rel (%p672) target = $region80
      $region79: #{memto_forward.1} parent=11 // pred_region
        _
      $region80: #{memto_forward.1} parent=11 // pred_fallthru
        _
      // Predicated region
      $region81: #{memto_forward.1} parent=11 // pred_check
        %p675 = pneg %p436
      $region82: #{memto_forward.1} parent=11 // pred_check_branch
        %677 = sbr.rel (%p675) target = $region84
      $region83: #{memto_forward.1} parent=11 // pred_region
        _
      $region84: #{memto_forward.1} parent=11 // pred_fallthru
        _
      // Predicated region
      $region85: #{memto_forward.1} parent=11 // pred_check
        %p678 = pneg %p457
      $region86: #{memto_forward.1} parent=11 // pred_check_branch
        %680 = sbr.rel (%p678) target = $region88
      $region87: #{memto_forward.1} parent=11 // pred_region
        _
      $region88: #{memto_forward.1} parent=11 // pred_fallthru
        _
      // Predicated region
      $region89: #{memto_forward.1} parent=11 // pred_check
        %p681 = pneg %p478
      $region90: #{memto_forward.1} parent=11 // pred_check_branch
        %683 = sbr.rel (%p681) target = $region92
      $region91: #{memto_forward.1} parent=11 // pred_region
        _
      $region92: #{memto_forward.1} parent=11 // pred_fallthru
        _
      // Predicated region
      $region93: #{memto_forward.1} parent=11 // pred_check
        %p684 = pneg %p499
      $region94: #{memto_forward.1} parent=11 // pred_check_branch
        %686 = sbr.rel (%p684) target = $region96
      $region95: #{memto_forward.1} parent=11 // pred_region
        _
      $region96: #{memto_forward.1} parent=11 // pred_fallthru
        _
      // Predicated region
      $region97: #{memto_forward.1} parent=11 // pred_check
        %p687 = pneg %p520
      $region98: #{memto_forward.1} parent=11 // pred_check_branch
        %689 = sbr.rel (%p687) target = $region100
      $region99: #{memto_forward.1} parent=11 // pred_region
        _
      $region100: #{memto_forward.1} parent=11 // pred_fallthru
        _
      // Predicated region
      $region101: #{memto_forward.1} parent=11 // pred_check
        %p690 = pneg %p541
      $region102: #{memto_forward.1} parent=11 // pred_check_branch
        %692 = sbr.rel (%p690) target = $region104
      $region103: #{memto_forward.1} parent=11 // pred_region
        _
      $region104: #{memto_forward.1} parent=11 // pred_fallthru
        _
      // Predicated region
      $region105: #{memto_forward.1} parent=11 // pred_check
        %p693 = pneg %p562
      $region106: #{memto_forward.1} parent=11 // pred_check_branch
        %695 = sbr.rel (%p693) target = $region108
      $region107: #{memto_forward.1} parent=11 // pred_region
        _
      $region108: #{memto_forward.1} parent=11 // pred_fallthru
        _
      // Predicated region
      $region109: #{memto_forward.1} parent=11 // pred_check
        %p696 = pneg %p583
      $region110: #{memto_forward.1} parent=11 // pred_check_branch
        %698 = sbr.rel (%p696) target = $region112
      $region111: #{memto_forward.1} parent=11 // pred_region
        _
      $region112: #{memto_forward.1} parent=11 // pred_fallthru
        _
    $region12: #{memto_forward.1} parent=5 // pred_fallthru
      _
    %p699 = scmp.lt.s32.totalorder %s32, 2
    // Predicated region
    $region113: #{memto_forward.1} parent=5 // pred_check
      %p700 = pneg %p699
    $region114: #{memto_forward.1} parent=5 // pred_check_branch
      %702 = sbr.rel (%p700) target = $region116
    $region115: #{memto_forward.1} parent=5 // pred_region
      // Predicated region
      $region117: #{memto_forward.1} parent=115 // pred_check
        %p703 = pneg %p52
      $region118: #{memto_forward.1} parent=115 // pred_check_branch
        %705 = sbr.rel (%p703) target = $region120
      $region119: #{memto_forward.1} parent=115 // pred_region
        %p706 = scmp.lt.s32.totalorder %s32, 1
        %s707 = scalar_select %p706, %s32, 1
        %s708 = smul.addr %s707, 4
        %s709 = scalar_lea.vmem %s0, %s708
      $region120: #{memto_forward.1} parent=115 // pred_fallthru
        _
    $region116: #{memto_forward.1} parent=5 // pred_fallthru
      _
    %p710 = scmp.le.s32.totalorder 1, %s32
    %p711 = scmp.lt.s32.totalorder %s32, 3
    %p712 = pnand %p710, %p711
    %p713 = pneg %p712
    // Predicated region
    $region121: #{memto_forward.1} parent=5 // pred_check
      _
    $region122: #{memto_forward.1} parent=5 // pred_check_branch
      %715 = sbr.rel (%p712) target = $region124
    $region123: #{memto_forward.1} parent=5 // pred_region
      %s716 = ssub.s32 %s32, 1
      %p717 = scmp.lt.s32.totalorder %s37, 1
      %s718 = scalar_select %p717, %s37, 1
      %s719 = smul.addr %s718, 4
      %s720 = scalar_lea.vmem %s0, %s719
      %p721 = pneg %p58
      %p722 = pneg %p55
      %p723 = pneg %p79
      %p724 = pneg %p76
      %p725 = pneg %p100
      %p726 = pneg %p97
      %p727 = pneg %p121
      %p728 = pneg %p118
      %p729 = pneg %p142
      %p730 = pneg %p139
      %p731 = pneg %p163
      %p732 = pneg %p160
      %p733 = pneg %p184
      %p734 = pneg %p181
      %p735 = pneg %p205
      %p736 = pneg %p202
      %p737 = pneg %p226
      %p738 = pneg %p223
      %p739 = pneg %p247
      %p740 = pneg %p244
      %p741 = pneg %p268
      %p742 = pneg %p265
      %p743 = pneg %p289
      %p744 = pneg %p286
      %p745 = pneg %p310
      %p746 = pneg %p307
      %p747 = pneg %p331
      %p748 = pneg %p328
      %p749 = pneg %p352
      %p750 = pneg %p349
      %p751 = pneg %p373
      %p752 = pneg %p370
      %p753 = pneg %p394
      %p754 = pneg %p391
      %p755 = pneg %p415
      %p756 = pneg %p412
      %p757 = pneg %p436
      %p758 = pneg %p433
      %p759 = pneg %p457
      %p760 = pneg %p454
      %p761 = pneg %p478
      %p762 = pneg %p475
      %p763 = pneg %p499
      %p764 = pneg %p496
      %p765 = pneg %p520
      %p766 = pneg %p517
      %p767 = pneg %p541
      %p768 = pneg %p538
      %p769 = pneg %p562
      %p770 = pneg %p559
      %p771 = pneg %p583
      %p772 = pneg %p580
      %p773 = pneg %p609
      %p774 = pneg %p606
      %p775 = scmp.lt.s32.totalorder %s37, 1
      %s776 = scalar_select %p775, %s37, 1
      %s777 = smul.addr %s776, 8
      %s778 = scalar_lea.vmem %s26, %s777
      %p779 = scmp.lt.s32.totalorder %s37, 1
      %s780 = scalar_select %p779, %s37, 1
      %s781 = smul.addr %s780, 4
      %s782 = scalar_lea.vmem %s0, %s781
      %p783 = scmp.lt.s32.totalorder %s37, 1
      %s784 = scalar_select %p783, %s37, 1
      %s785 = smul.addr %s784, 8
      %s786 = scalar_lea.vmem %s26, %s785
      %788 = vst [vmem:[%s786] sm:$0xff] 0.0
      %v789 = vld [vmem:[%s782] sm:$0xf]
      %v790 = vld [vmem:[%s2] sm:$0xf]
      %v791 = vld [vmem:[%s2 + $0x4] sm:$0x3]
      %v792 = vld [vmem:[%s1] sm:$0xff]
      %v795 = vunpack.c.l.b16 %v790
      %v796 = vunpack.c.l.b16 %v791
      %v797 = vpack.c.b16 %v796, %v795
      %vm798 = vcmask 97280
      %v800 = vsel %vm798, %v789, 0
      %vm802 = vcmask 1045504
      %v804 = vsel %vm802, %v797, 0
      %806 = vmatprep.subr.bf16.mxu0 0
      %807 = vmatpush1.bf16.msra.mxu0 %v804
      %808 = vmatprep.subr.bf16.mxu0 0
      %809 = vmatpush1.bf16.msra.mxu0 0
      %810 = vmatprep.subr.bf16.mxu0 0
      %811 = vmatpush1.bf16.msra.mxu0 0
      %812 = vmatprep.subr.bf16.mxu0 0
      %813 = vmatpush1.bf16.msra.mxu0 0
      %814 = vmatprep.subr.bf16.mxu0 0
      %815 = vmatpush1.bf16.msra.mxu0 0
      %816 = vmatprep.subr.bf16.mxu0 0
      %817 = vmatpush1.bf16.msra.mxu0 0
      %818 = vmatprep.subr.bf16.mxu0 0
      %819 = vmatpush1.bf16.msra.mxu0 0
      %820 = vmatprep.subr.bf16.mxu0 0
      %821 = vmatpush1.bf16.msra.mxu0 0
      %822 = vmatprep.subr.bf16.mxu0 0
      %823 = vmatpush1.bf16.msra.mxu0 0
      %824 = vmatprep.subr.bf16.mxu0 0
      %825 = vmatpush1.bf16.msra.mxu0 0
      %826 = vmatprep.subr.bf16.mxu0 0
      %827 = vmatpush1.bf16.msra.mxu0 0
      %828 = vmatprep.subr.bf16.mxu0 0
      %829 = vmatpush1.bf16.msra.mxu0 0
      %830 = vmatprep.subr.bf16.mxu0 0
      %831 = vmatpush1.bf16.msra.mxu0 0
      %832 = vmatprep.subr.bf16.mxu0 0
      %833 = vmatpush1.bf16.msra.mxu0 0
      %834 = vmatprep.subr.bf16.mxu0 0
      %835 = vmatpush1.bf16.msra.mxu0 0
      %836 = vmatprep.subr.bf16.mxu0 0
      %837 = vmatpush1.bf16.msra.mxu0 0
      %838 = vmatprep.mubr.bf16.mxu0 0
      %839 = vmatmul.mubr.bf16.gmra.mrb[0].mxu0 %v800
      %v840 = vpop.f32.mrb[0].mxu0
      %v841 = vadd.f32 %v792, %v840
      %v842 = vpop.f32.mrb[0].mxu0
      %v843 = vpop.f32.mrb[0].mxu0
      %v844 = vpop.f32.mrb[0].mxu0
      %845 = vdwg.mxu0
      %v846 = vpack.c.bf16 %v841, %v841
      %v847 = vld [vmem:[%s3] sm:$0xf]
      %v848 = vld [vmem:[%s3 + $0x4] sm:$0xf]
      %v849 = vld [vmem:[%s3 + $0x8] sm:$0xf]
      %v850 = vld [vmem:[%s3 + $0xc] sm:$0xf]
      %v851 = vld [vmem:[%s3 + $0x10] sm:$0xf]
      %v852 = vld [vmem:[%s3 + $0x14] sm:$0xf]
      %v853 = vld [vmem:[%s3 + $0x18] sm:$0xf]
      %v854 = vld [vmem:[%s3 + $0x1c] sm:$0xf]
      %v855 = vld [vmem:[%s3 + $0x20] sm:$0xf]
      %v856 = vld [vmem:[%s3 + $0x24] sm:$0xf]
      %v857 = vld [vmem:[%s3 + $0x28] sm:$0xf]
      %v858 = vld [vmem:[%s3 + $0x2c] sm:$0xf]
      %v859 = vld [vmem:[%s3 + $0x30] sm:$0xf]
      %v860 = vld [vmem:[%s3 + $0x34] sm:$0xf]
      %v861 = vld [vmem:[%s3 + $0x38] sm:$0xf]
      %v862 = vld [vmem:[%s3 + $0x3c] sm:$0xf]
      %v863 = vld [vmem:[%s4] sm:$0x1]
      %v864 = vld [vmem:[%s4 + $0x1] sm:$0x1]
      %v865 = vld [vmem:[%s4 + $0x2] sm:$0x1]
      %v866 = vld [vmem:[%s4 + $0x3] sm:$0x1]
      %v871 = vlaneseq
      %v872 = vshrl.u32 %v871, 7
      %v873 = vsub.s32 0, %v872
      %v874 = vrot.slane %v863, %v873
      %v875 = vlaneseq
      %v876 = vshrl.u32 %v875, 7
      %v877 = vsub.s32 0, %v876
      %v878 = vrot.slane %v864, %v877
      %v879 = vlaneseq
      %v880 = vshrl.u32 %v879, 7
      %v881 = vsub.s32 0, %v880
      %v882 = vrot.slane %v865, %v881
      %v883 = vlaneseq
      %v884 = vshrl.u32 %v883, 7
      %v885 = vsub.s32 0, %v884
      %v886 = vrot.slane %v866, %v885
      %v895 = vunpack.c.l.b16 %v847
      %v896 = vunpack.c.l.b16 %v848
      %v897 = vunpack.c.l.b16 %v849
      %v898 = vunpack.c.l.b16 %v850
      %v899 = vpack.c.b16 %v896, %v895
      %v900 = vpack.c.b16 %v898, %v897
      %vm903 = vcmask 261120
      %v905 = vsel %vm903, %v846, 0
      %907 = vmatprep.subr.bf16.mxu0 0
      %908 = vmatpush1.bf16.msra.mxu0 %v899
      %909 = vmatprep.subr.bf16.mxu0 0
      %910 = vmatpush1.bf16.msra.mxu0 %v900
      %911 = vmatprep.subr.bf16.mxu0 0
      %912 = vmatpush1.bf16.msra.mxu0 0
      %913 = vmatprep.subr.bf16.mxu0 0
      %914 = vmatpush1.bf16.msra.mxu0 0
      %915 = vmatprep.subr.bf16.mxu0 0
      %916 = vmatpush1.bf16.msra.mxu0 0
      %917 = vmatprep.subr.bf16.mxu0 0
      %918 = vmatpush1.bf16.msra.mxu0 0
      %919 = vmatprep.subr.bf16.mxu0 0
      %920 = vmatpush1.bf16.msra.mxu0 0
      %921 = vmatprep.subr.bf16.mxu0 0
      %922 = vmatpush1.bf16.msra.mxu0 0
      %923 = vmatprep.subr.bf16.mxu0 0
      %924 = vmatpush1.bf16.msra.mxu0 0
      %925 = vmatprep.subr.bf16.mxu0 0
      %926 = vmatpush1.bf16.msra.mxu0 0
      %927 = vmatprep.subr.bf16.mxu0 0
      %928 = vmatpush1.bf16.msra.mxu0 0
      %929 = vmatprep.subr.bf16.mxu0 0
      %930 = vmatpush1.bf16.msra.mxu0 0
      %931 = vmatprep.subr.bf16.mxu0 0
      %932 = vmatpush1.bf16.msra.mxu0 0
      %933 = vmatprep.subr.bf16.mxu0 0
      %934 = vmatpush1.bf16.msra.mxu0 0
      %935 = vmatprep.subr.bf16.mxu0 0
      %936 = vmatpush1.bf16.msra.mxu0 0
      %937 = vmatprep.subr.bf16.mxu0 0
      %938 = vmatpush1.bf16.msra.mxu0 0
      %939 = vmatprep.mubr.bf16.mxu0 0
      %940 = vmatmul.mubr.bf16.gmra.mrb[0].mxu0 %v905
      %v941 = vpop.f32.mrb[0].mxu0
      %v942 = vadd.f32 %v874, %v941
      %v943 = vpop.f32.mrb[0].mxu0
      %v944 = vpop.f32.mrb[0].mxu0
      %v945 = vpop.f32.mrb[0].mxu0
      %946 = vdwg.mxu0
      %v951 = vunpack.c.l.b16 %v851
      %v952 = vunpack.c.l.b16 %v852
      %v953 = vunpack.c.l.b16 %v853
      %v954 = vunpack.c.l.b16 %v854
      %v955 = vpack.c.b16 %v952, %v951
      %v956 = vpack.c.b16 %v954, %v953
      %959 = vmatprep.subr.bf16.mxu0 0
      %960 = vmatpush1.bf16.msra.mxu0 %v955
      %961 = vmatprep.subr.bf16.mxu0 0
      %962 = vmatpush1.bf16.msra.mxu0 %v956
      %963 = vmatprep.subr.bf16.mxu0 0
      %964 = vmatpush1.bf16.msra.mxu0 0
      %965 = vmatprep.subr.bf16.mxu0 0
      %966 = vmatpush1.bf16.msra.mxu0 0
      %967 = vmatprep.subr.bf16.mxu0 0
      %968 = vmatpush1.bf16.msra.mxu0 0
      %969 = vmatprep.subr.bf16.mxu0 0
      %970 = vmatpush1.bf16.msra.mxu0 0
      %971 = vmatprep.subr.bf16.mxu0 0
      %972 = vmatpush1.bf16.msra.mxu0 0
      %973 = vmatprep.subr.bf16.mxu0 0
      %974 = vmatpush1.bf16.msra.mxu0 0
      %975 = vmatprep.subr.bf16.mxu0 0
      %976 = vmatpush1.bf16.msra.mxu0 0
      %977 = vmatprep.subr.bf16.mxu0 0
      %978 = vmatpush1.bf16.msra.mxu0 0
      %979 = vmatprep.subr.bf16.mxu0 0
      %980 = vmatpush1.bf16.msra.mxu0 0
      %981 = vmatprep.subr.bf16.mxu0 0
      %982 = vmatpush1.bf16.msra.mxu0 0
      %983 = vmatprep.subr.bf16.mxu0 0
      %984 = vmatpush1.bf16.msra.mxu0 0
      %985 = vmatprep.subr.bf16.mxu0 0
      %986 = vmatpush1.bf16.msra.mxu0 0
      %987 = vmatprep.subr.bf16.mxu0 0
      %988 = vmatpush1.bf16.msra.mxu0 0
      %989 = vmatprep.subr.bf16.mxu0 0
      %990 = vmatpush1.bf16.msra.mxu0 0
      %991 = vmatprep.mubr.bf16.mxu0 0
      %992 = vmatmul.mubr.bf16.gmra.mrb[0].mxu0 %v905
      %v993 = vpop.f32.mrb[0].mxu0
      %v994 = vadd.f32 %v878, %v993
      %v995 = vpop.f32.mrb[0].mxu0
      %v996 = vpop.f32.mrb[0].mxu0
      %v997 = vpop.f32.mrb[0].mxu0
      %998 = vdwg.mxu0
      %v1003 = vunpack.c.l.b16 %v855
      %v1004 = vunpack.c.l.b16 %v856
      %v1005 = vunpack.c.l.b16 %v857
      %v1006 = vunpack.c.l.b16 %v858
      %v1007 = vpack.c.b16 %v1004, %v1003
      %v1008 = vpack.c.b16 %v1006, %v1005
      %1011 = vmatprep.subr.bf16.mxu0 0
      %1012 = vmatpush1.bf16.msra.mxu0 %v1007
      %1013 = vmatprep.subr.bf16.mxu0 0
      %1014 = vmatpush1.bf16.msra.mxu0 %v1008
      %1015 = vmatprep.subr.bf16.mxu0 0
      %1016 = vmatpush1.bf16.msra.mxu0 0
      %1017 = vmatprep.subr.bf16.mxu0 0
      %1018 = vmatpush1.bf16.msra.mxu0 0
      %1019 = vmatprep.subr.bf16.mxu0 0
      %1020 = vmatpush1.bf16.msra.mxu0 0
      %1021 = vmatprep.subr.bf16.mxu0 0
      %1022 = vmatpush1.bf16.msra.mxu0 0
      %1023 = vmatprep.subr.bf16.mxu0 0
      %1024 = vmatpush1.bf16.msra.mxu0 0
      %1025 = vmatprep.subr.bf16.mxu0 0
      %1026 = vmatpush1.bf16.msra.mxu0 0
      %1027 = vmatprep.subr.bf16.mxu0 0
      %1028 = vmatpush1.bf16.msra.mxu0 0
      %1029 = vmatprep.subr.bf16.mxu0 0
      %1030 = vmatpush1.bf16.msra.mxu0 0
      %1031 = vmatprep.subr.bf16.mxu0 0
      %1032 = vmatpush1.bf16.msra.mxu0 0
      %1033 = vmatprep.subr.bf16.mxu0 0
      %1034 = vmatpush1.bf16.msra.mxu0 0
      %1035 = vmatprep.subr.bf16.mxu0 0
      %1036 = vmatpush1.bf16.msra.mxu0 0
      %1037 = vmatprep.subr.bf16.mxu0 0
      %1038 = vmatpush1.bf16.msra.mxu0 0
      %1039 = vmatprep.subr.bf16.mxu0 0
      %1040 = vmatpush1.bf16.msra.mxu0 0
      %1041 = vmatprep.subr.bf16.mxu0 0
      %1042 = vmatpush1.bf16.msra.mxu0 0
      %1043 = vmatprep.mubr.bf16.mxu0 0
      %1044 = vmatmul.mubr.bf16.gmra.mrb[0].mxu0 %v905
      %v1045 = vpop.f32.mrb[0].mxu0
      %v1046 = vadd.f32 %v882, %v1045
      %v1047 = vpop.f32.mrb[0].mxu0
      %v1048 = vpop.f32.mrb[0].mxu0
      %v1049 = vpop.f32.mrb[0].mxu0
      %1050 = vdwg.mxu0
      %v1055 = vunpack.c.l.b16 %v859
      %v1056 = vunpack.c.l.b16 %v860
      %v1057 = vunpack.c.l.b16 %v861
      %v1058 = vunpack.c.l.b16 %v862
      %v1059 = vpack.c.b16 %v1056, %v1055
      %v1060 = vpack.c.b16 %v1058, %v1057
      %1063 = vmatprep.subr.bf16.mxu0 0
      %1064 = vmatpush1.bf16.msra.mxu0 %v1059
      %1065 = vmatprep.subr.bf16.mxu0 0
      %1066 = vmatpush1.bf16.msra.mxu0 %v1060
      %1067 = vmatprep.subr.bf16.mxu0 0
      %1068 = vmatpush1.bf16.msra.mxu0 0
      %1069 = vmatprep.subr.bf16.mxu0 0
      %1070 = vmatpush1.bf16.msra.mxu0 0
      %1071 = vmatprep.subr.bf16.mxu0 0
      %1072 = vmatpush1.bf16.msra.mxu0 0
      %1073 = vmatprep.subr.bf16.mxu0 0
      %1074 = vmatpush1.bf16.msra.mxu0 0
      %1075 = vmatprep.subr.bf16.mxu0 0
      %1076 = vmatpush1.bf16.msra.mxu0 0
      %1077 = vmatprep.subr.bf16.mxu0 0
      %1078 = vmatpush1.bf16.msra.mxu0 0
      %1079 = vmatprep.subr.bf16.mxu0 0
      %1080 = vmatpush1.bf16.msra.mxu0 0
      %1081 = vmatprep.subr.bf16.mxu0 0
      %1082 = vmatpush1.bf16.msra.mxu0 0
      %1083 = vmatprep.subr.bf16.mxu0 0
      %1084 = vmatpush1.bf16.msra.mxu0 0
      %1085 = vmatprep.subr.bf16.mxu0 0
      %1086 = vmatpush1.bf16.msra.mxu0 0
      %1087 = vmatprep.subr.bf16.mxu0 0
      %1088 = vmatpush1.bf16.msra.mxu0 0
      %1089 = vmatprep.subr.bf16.mxu0 0
      %1090 = vmatpush1.bf16.msra.mxu0 0
      %1091 = vmatprep.subr.bf16.mxu0 0
      %1092 = vmatpush1.bf16.msra.mxu0 0
      %1093 = vmatprep.subr.bf16.mxu0 0
      %1094 = vmatpush1.bf16.msra.mxu0 0
      %1095 = vmatprep.mubr.bf16.mxu0 0
      %1096 = vmatmul.mubr.bf16.gmra.mrb[0].mxu0 %v905
      %v1097 = vpop.f32.mrb[0].mxu0
      %v1098 = vadd.f32 %v886, %v1097
      %v1099 = vpop.f32.mrb[0].mxu0
      %v1100 = vpop.f32.mrb[0].mxu0
      %v1101 = vpop.f32.mrb[0].mxu0
      %1102 = vdwg.mxu0
      %v1103 = vld [vmem:[%s5] sm:$0xf]
      %v1104 = vld [vmem:[%s5 + $0x4] sm:$0xf]
      %v1105 = vld [vmem:[%s5 + $0x8] sm:$0xf]
      %v1106 = vld [vmem:[%s5 + $0xc] sm:$0xf]
      %v1107 = vld [vmem:[%s5 + $0x10] sm:$0xf]
      %v1108 = vld [vmem:[%s5 + $0x14] sm:$0xf]
      %v1109 = vld [vmem:[%s5 + $0x18] sm:$0xf]
      %v1110 = vld [vmem:[%s5 + $0x1c] sm:$0xf]
      %v1111 = vld [vmem:[%s5 + $0x20] sm:$0xf]
      %v1112 = vld [vmem:[%s5 + $0x24] sm:$0xf]
      %v1113 = vld [vmem:[%s5 + $0x28] sm:$0xf]
      %v1114 = vld [vmem:[%s5 + $0x2c] sm:$0xf]
      %v1115 = vld [vmem:[%s5 + $0x30] sm:$0xf]
      %v1116 = vld [vmem:[%s5 + $0x34] sm:$0xf]
      %v1117 = vld [vmem:[%s5 + $0x38] sm:$0xf]
      %v1118 = vld [vmem:[%s5 + $0x3c] sm:$0xf]
      %v1119 = vld [vmem:[%s6] sm:$0x1]
      %v1120 = vld [vmem:[%s6 + $0x1] sm:$0x1]
      %v1121 = vld [vmem:[%s6 + $0x2] sm:$0x1]
      %v1122 = vld [vmem:[%s6 + $0x3] sm:$0x1]
      %v1127 = vlaneseq
      %v1128 = vshrl.u32 %v1127, 7
      %v1129 = vsub.s32 0, %v1128
      %v1130 = vrot.slane %v1119, %v1129
      %v1131 = vlaneseq
      %v1132 = vshrl.u32 %v1131, 7
      %v1133 = vsub.s32 0, %v1132
      %v1134 = vrot.slane %v1120, %v1133
      %v1135 = vlaneseq
      %v1136 = vshrl.u32 %v1135, 7
      %v1137 = vsub.s32 0, %v1136
      %v1138 = vrot.slane %v1121, %v1137
      %v1139 = vlaneseq
      %v1140 = vshrl.u32 %v1139, 7
      %v1141 = vsub.s32 0, %v1140
      %v1142 = vrot.slane %v1122, %v1141
      %v1151 = vunpack.c.l.b16 %v1103
      %v1152 = vunpack.c.l.b16 %v1104
      %v1153 = vunpack.c.l.b16 %v1105
      %v1154 = vunpack.c.l.b16 %v1106
      %v1155 = vpack.c.b16 %v1152, %v1151
      %v1156 = vpack.c.b16 %v1154, %v1153
      %1159 = vmatprep.subr.bf16.mxu0 0
      %1160 = vmatpush1.bf16.msra.mxu0 %v1155
      %1161 = vmatprep.subr.bf16.mxu0 0
      %1162 = vmatpush1.bf16.msra.mxu0 %v1156
      %1163 = vmatprep.subr.bf16.mxu0 0
      %1164 = vmatpush1.bf16.msra.mxu0 0
      %1165 = vmatprep.subr.bf16.mxu0 0
      %1166 = vmatpush1.bf16.msra.mxu0 0
      %1167 = vmatprep.subr.bf16.mxu0 0
      %1168 = vmatpush1.bf16.msra.mxu0 0
      %1169 = vmatprep.subr.bf16.mxu0 0
      %1170 = vmatpush1.bf16.msra.mxu0 0
      %1171 = vmatprep.subr.bf16.mxu0 0
      %1172 = vmatpush1.bf16.msra.mxu0 0
      %1173 = vmatprep.subr.bf16.mxu0 0
      %1174 = vmatpush1.bf16.msra.mxu0 0
      %1175 = vmatprep.subr.bf16.mxu0 0
      %1176 = vmatpush1.bf16.msra.mxu0 0
      %1177 = vmatprep.subr.bf16.mxu0 0
      %1178 = vmatpush1.bf16.msra.mxu0 0
      %1179 = vmatprep.subr.bf16.mxu0 0
      %1180 = vmatpush1.bf16.msra.mxu0 0
      %1181 = vmatprep.subr.bf16.mxu0 0
      %1182 = vmatpush1.bf16.msra.mxu0 0
      %1183 = vmatprep.subr.bf16.mxu0 0
      %1184 = vmatpush1.bf16.msra.mxu0 0
      %1185 = vmatprep.subr.bf16.mxu0 0
      %1186 = vmatpush1.bf16.msra.mxu0 0
      %1187 = vmatprep.subr.bf16.mxu0 0
      %1188 = vmatpush1.bf16.msra.mxu0 0
      %1189 = vmatprep.subr.bf16.mxu0 0
      %1190 = vmatpush1.bf16.msra.mxu0 0
      %1191 = vmatprep.mubr.bf16.mxu0 0
      %1192 = vmatmul.mubr.bf16.gmra.mrb[0].mxu0 %v905
      %v1193 = vpop.f32.mrb[0].mxu0
      %v1194 = vadd.f32 %v1130, %v1193
      %v1195 = vpop.f32.mrb[0].mxu0
      %v1196 = vpop.f32.mrb[0].mxu0
      %v1197 = vpop.f32.mrb[0].mxu0
      %1198 = vdwg.mxu0
      %v1203 = vunpack.c.l.b16 %v1107
      %v1204 = vunpack.c.l.b16 %v1108
      %v1205 = vunpack.c.l.b16 %v1109
      %v1206 = vunpack.c.l.b16 %v1110
      %v1207 = vpack.c.b16 %v1204, %v1203
      %v1208 = vpack.c.b16 %v1206, %v1205
      %1211 = vmatprep.subr.bf16.mxu0 0
      %1212 = vmatpush1.bf16.msra.mxu0 %v1207
      %1213 = vmatprep.subr.bf16.mxu0 0
      %1214 = vmatpush1.bf16.msra.mxu0 %v1208
      %1215 = vmatprep.subr.bf16.mxu0 0
      %1216 = vmatpush1.bf16.msra.mxu0 0
      %1217 = vmatprep.subr.bf16.mxu0 0
      %1218 = vmatpush1.bf16.msra.mxu0 0
      %1219 = vmatprep.subr.bf16.mxu0 0
      %1220 = vmatpush1.bf16.msra.mxu0 0
      %1221 = vmatprep.subr.bf16.mxu0 0
      %1222 = vmatpush1.bf16.msra.mxu0 0
      %1223 = vmatprep.subr.bf16.mxu0 0
      %1224 = vmatpush1.bf16.msra.mxu0 0
      %1225 = vmatprep.subr.bf16.mxu0 0
      %1226 = vmatpush1.bf16.msra.mxu0 0
      %1227 = vmatprep.subr.bf16.mxu0 0
      %1228 = vmatpush1.bf16.msra.mxu0 0
      %1229 = vmatprep.subr.bf16.mxu0 0
      %1230 = vmatpush1.bf16.msra.mxu0 0
      %1231 = vmatprep.subr.bf16.mxu0 0
      %1232 = vmatpush1.bf16.msra.mxu0 0
      %1233 = vmatprep.subr.bf16.mxu0 0
      %1234 = vmatpush1.bf16.msra.mxu0 0
      %1235 = vmatprep.subr.bf16.mxu0 0
      %1236 = vmatpush1.bf16.msra.mxu0 0
      %1237 = vmatprep.subr.bf16.mxu0 0
      %1238 = vmatpush1.bf16.msra.mxu0 0
      %1239 = vmatprep.subr.bf16.mxu0 0
      %1240 = vmatpush1.bf16.msra.mxu0 0
      %1241 = vmatprep.subr.bf16.mxu0 0
      %1242 = vmatpush1.bf16.msra.mxu0 0
      %1243 = vmatprep.mubr.bf16.mxu0 0
      %1244 = vmatmul.mubr.bf16.gmra.mrb[0].mxu0 %v905
      %v1245 = vpop.f32.mrb[0].mxu0
      %v1246 = vadd.f32 %v1134, %v1245
      %v1247 = vpop.f32.mrb[0].mxu0
      %v1248 = vpop.f32.mrb[0].mxu0
      %v1249 = vpop.f32.mrb[0].mxu0
      %1250 = vdwg.mxu0
      %v1255 = vunpack.c.l.b16 %v1111
      %v1256 = vunpack.c.l.b16 %v1112
      %v1257 = vunpack.c.l.b16 %v1113
      %v1258 = vunpack.c.l.b16 %v1114
      %v1259 = vpack.c.b16 %v1256, %v1255
      %v1260 = vpack.c.b16 %v1258, %v1257
      %1263 = vmatprep.subr.bf16.mxu0 0
      %1264 = vmatpush1.bf16.msra.mxu0 %v1259
      %1265 = vmatprep.subr.bf16.mxu0 0
      %1266 = vmatpush1.bf16.msra.mxu0 %v1260
      %1267 = vmatprep.subr.bf16.mxu0 0
      %1268 = vmatpush1.bf16.msra.mxu0 0
      %1269 = vmatprep.subr.bf16.mxu0 0
      %1270 = vmatpush1.bf16.msra.mxu0 0
      %1271 = vmatprep.subr.bf16.mxu0 0
      %1272 = vmatpush1.bf16.msra.mxu0 0
      %1273 = vmatprep.subr.bf16.mxu0 0
      %1274 = vmatpush1.bf16.msra.mxu0 0
      %1275 = vmatprep.subr.bf16.mxu0 0
      %1276 = vmatpush1.bf16.msra.mxu0 0
      %1277 = vmatprep.subr.bf16.mxu0 0
      %1278 = vmatpush1.bf16.msra.mxu0 0
      %1279 = vmatprep.subr.bf16.mxu0 0
      %1280 = vmatpush1.bf16.msra.mxu0 0
      %1281 = vmatprep.subr.bf16.mxu0 0
      %1282 = vmatpush1.bf16.msra.mxu0 0
      %1283 = vmatprep.subr.bf16.mxu0 0
      %1284 = vmatpush1.bf16.msra.mxu0 0
      %1285 = vmatprep.subr.bf16.mxu0 0
      %1286 = vmatpush1.bf16.msra.mxu0 0
      %1287 = vmatprep.subr.bf16.mxu0 0
      %1288 = vmatpush1.bf16.msra.mxu0 0
      %1289 = vmatprep.subr.bf16.mxu0 0
      %1290 = vmatpush1.bf16.msra.mxu0 0
      %1291 = vmatprep.subr.bf16.mxu0 0
      %1292 = vmatpush1.bf16.msra.mxu0 0
      %1293 = vmatprep.subr.bf16.mxu0 0
      %1294 = vmatpush1.bf16.msra.mxu0 0
      %1295 = vmatprep.mubr.bf16.mxu0 0
      %1296 = vmatmul.mubr.bf16.gmra.mrb[0].mxu0 %v905
      %v1297 = vpop.f32.mrb[0].mxu0
      %v1298 = vadd.f32 %v1138, %v1297
      %v1299 = vpop.f32.mrb[0].mxu0
      %v1300 = vpop.f32.mrb[0].mxu0
      %v1301 = vpop.f32.mrb[0].mxu0
      %1302 = vdwg.mxu0
      %v1307 = vunpack.c.l.b16 %v1115
      %v1308 = vunpack.c.l.b16 %v1116
      %v1309 = vunpack.c.l.b16 %v1117
      %v1310 = vunpack.c.l.b16 %v1118
      %v1311 = vpack.c.b16 %v1308, %v1307
      %v1312 = vpack.c.b16 %v1310, %v1309
      %1315 = vmatprep.subr.bf16.mxu0 0
      %1316 = vmatpush1.bf16.msra.mxu0 %v1311
      %1317 = vmatprep.subr.bf16.mxu0 0
      %1318 = vmatpush1.bf16.msra.mxu0 %v1312
      %1319 = vmatprep.subr.bf16.mxu0 0
      %1320 = vmatpush1.bf16.msra.mxu0 0
      %1321 = vmatprep.subr.bf16.mxu0 0
      %1322 = vmatpush1.bf16.msra.mxu0 0
      %1323 = vmatprep.subr.bf16.mxu0 0
      %1324 = vmatpush1.bf16.msra.mxu0 0
      %1325 = vmatprep.subr.bf16.mxu0 0
      %1326 = vmatpush1.bf16.msra.mxu0 0
      %1327 = vmatprep.subr.bf16.mxu0 0
      %1328 = vmatpush1.bf16.msra.mxu0 0
      %1329 = vmatprep.subr.bf16.mxu0 0
      %1330 = vmatpush1.bf16.msra.mxu0 0
      %1331 = vmatprep.subr.bf16.mxu0 0
      %1332 = vmatpush1.bf16.msra.mxu0 0
      %1333 = vmatprep.subr.bf16.mxu0 0
      %1334 = vmatpush1.bf16.msra.mxu0 0
      %1335 = vmatprep.subr.bf16.mxu0 0
      %1336 = vmatpush1.bf16.msra.mxu0 0
      %1337 = vmatprep.subr.bf16.mxu0 0
      %1338 = vmatpush1.bf16.msra.mxu0 0
      %1339 = vmatprep.subr.bf16.mxu0 0
      %1340 = vmatpush1.bf16.msra.mxu0 0
      %1341 = vmatprep.subr.bf16.mxu0 0
      %1342 = vmatpush1.bf16.msra.mxu0 0
      %1343 = vmatprep.subr.bf16.mxu0 0
      %1344 = vmatpush1.bf16.msra.mxu0 0
      %1345 = vmatprep.subr.bf16.mxu0 0
      %1346 = vmatpush1.bf16.msra.mxu0 0
      %1347 = vmatprep.mubr.bf16.mxu0 0
      %1348 = vmatmul.mubr.bf16.gmra.mrb[0].mxu0 %v905
      %v1349 = vpop.f32.mrb[0].mxu0
      %v1350 = vadd.f32 %v1142, %v1349
      %v1351 = vpop.f32.mrb[0].mxu0
      %v1352 = vpop.f32.mrb[0].mxu0
      %v1353 = vpop.f32.mrb[0].mxu0
      %1354 = vdwg.mxu0
      %v1355 = vld [vmem:[%s7] sm:$0xf]
      %v1356 = vld [vmem:[%s7 + $0x4] sm:$0xf]
      %v1357 = vld [vmem:[%s7 + $0x8] sm:$0xf]
      %v1358 = vld [vmem:[%s7 + $0xc] sm:$0xf]
      %v1359 = vld [vmem:[%s7 + $0x10] sm:$0xf]
      %v1360 = vld [vmem:[%s7 + $0x14] sm:$0xf]
      %v1361 = vld [vmem:[%s7 + $0x18] sm:$0xf]
      %v1362 = vld [vmem:[%s7 + $0x1c] sm:$0xf]
      %v1363 = vld [vmem:[%s7 + $0x20] sm:$0xf]
      %v1364 = vld [vmem:[%s7 + $0x24] sm:$0xf]
      %v1365 = vld [vmem:[%s7 + $0x28] sm:$0xf]
      %v1366 = vld [vmem:[%s7 + $0x2c] sm:$0xf]
      %v1367 = vld [vmem:[%s7 + $0x30] sm:$0xf]
      %v1368 = vld [vmem:[%s7 + $0x34] sm:$0xf]
      %v1369 = vld [vmem:[%s7 + $0x38] sm:$0xf]
      %v1370 = vld [vmem:[%s7 + $0x3c] sm:$0xf]
      %v1371 = vld [vmem:[%s8] sm:$0x1]
      %v1372 = vld [vmem:[%s8 + $0x1] sm:$0x1]
      %v1373 = vld [vmem:[%s8 + $0x2] sm:$0x1]
      %v1374 = vld [vmem:[%s8 + $0x3] sm:$0x1]
      %v1379 = vlaneseq
      %v1380 = vshrl.u32 %v1379, 7
      %v1381 = vsub.s32 0, %v1380
      %v1382 = vrot.slane %v1371, %v1381
      %v1383 = vlaneseq
      %v1384 = vshrl.u32 %v1383, 7
      %v1385 = vsub.s32 0, %v1384
      %v1386 = vrot.slane %v1372, %v1385
      %v1387 = vlaneseq
      %v1388 = vshrl.u32 %v1387, 7
      %v1389 = vsub.s32 0, %v1388
      %v1390 = vrot.slane %v1373, %v1389
      %v1391 = vlaneseq
      %v1392 = vshrl.u32 %v1391, 7
      %v1393 = vsub.s32 0, %v1392
      %v1394 = vrot.slane %v1374, %v1393
      %v1403 = vunpack.c.l.b16 %v1355
      %v1404 = vunpack.c.l.b16 %v1356
      %v1405 = vunpack.c.l.b16 %v1357
      %v1406 = vunpack.c.l.b16 %v1358
      %v1407 = vpack.c.b16 %v1404, %v1403
      %v1408 = vpack.c.b16 %v1406, %v1405
      %1411 = vmatprep.subr.bf16.mxu0 0
      %1412 = vmatpush1.bf16.msra.mxu0 %v1407
      %1413 = vmatprep.subr.bf16.mxu0 0
      %1414 = vmatpush1.bf16.msra.mxu0 %v1408
      %1415 = vmatprep.subr.bf16.mxu0 0
      %1416 = vmatpush1.bf16.msra.mxu0 0
      %1417 = vmatprep.subr.bf16.mxu0 0
      %1418 = vmatpush1.bf16.msra.mxu0 0
      %1419 = vmatprep.subr.bf16.mxu0 0
      %1420 = vmatpush1.bf16.msra.mxu0 0
      %1421 = vmatprep.subr.bf16.mxu0 0
      %1422 = vmatpush1.bf16.msra.mxu0 0
      %1423 = vmatprep.subr.bf16.mxu0 0
      %1424 = vmatpush1.bf16.msra.mxu0 0
      %1425 = vmatprep.subr.bf16.mxu0 0
      %1426 = vmatpush1.bf16.msra.mxu0 0
      %1427 = vmatprep.subr.bf16.mxu0 0
      %1428 = vmatpush1.bf16.msra.mxu0 0
      %1429 = vmatprep.subr.bf16.mxu0 0
      %1430 = vmatpush1.bf16.msra.mxu0 0
      %1431 = vmatprep.subr.bf16.mxu0 0
      %1432 = vmatpush1.bf16.msra.mxu0 0
      %1433 = vmatprep.subr.bf16.mxu0 0
      %1434 = vmatpush1.bf16.msra.mxu0 0
      %1435 = vmatprep.subr.bf16.mxu0 0
      %1436 = vmatpush1.bf16.msra.mxu0 0
      %1437 = vmatprep.subr.bf16.mxu0 0
      %1438 = vmatpush1.bf16.msra.mxu0 0
      %1439 = vmatprep.subr.bf16.mxu0 0
      %1440 = vmatpush1.bf16.msra.mxu0 0
      %1441 = vmatprep.subr.bf16.mxu0 0
      %1442 = vmatpush1.bf16.msra.mxu0 0
      %1443 = vmatprep.mubr.bf16.mxu0 0
      %1444 = vmatmul.mubr.bf16.gmra.mrb[0].mxu0 %v905
      %v1445 = vpop.f32.mrb[0].mxu0
      %v1446 = vadd.f32 %v1382, %v1445
      %v1447 = vpop.f32.mrb[0].mxu0
      %v1448 = vpop.f32.mrb[0].mxu0
      %v1449 = vpop.f32.mrb[0].mxu0
      %1450 = vdwg.mxu0
      %v1455 = vunpack.c.l.b16 %v1359
      %v1456 = vunpack.c.l.b16 %v1360
      %v1457 = vunpack.c.l.b16 %v1361
      %v1458 = vunpack.c.l.b16 %v1362
      %v1459 = vpack.c.b16 %v1456, %v1455
      %v1460 = vpack.c.b16 %v1458, %v1457
      %1463 = vmatprep.subr.bf16.mxu0 0
      %1464 = vmatpush1.bf16.msra.mxu0 %v1459
      %1465 = vmatprep.subr.bf16.mxu0 0
      %1466 = vmatpush1.bf16.msra.mxu0 %v1460
      %1467 = vmatprep.subr.bf16.mxu0 0
      %1468 = vmatpush1.bf16.msra.mxu0 0
      %1469 = vmatprep.subr.bf16.mxu0 0
      %1470 = vmatpush1.bf16.msra.mxu0 0
      %1471 = vmatprep.subr.bf16.mxu0 0
      %1472 = vmatpush1.bf16.msra.mxu0 0
      %1473 = vmatprep.subr.bf16.mxu0 0
      %1474 = vmatpush1.bf16.msra.mxu0 0
      %1475 = vmatprep.subr.bf16.mxu0 0
      %1476 = vmatpush1.bf16.msra.mxu0 0
      %1477 = vmatprep.subr.bf16.mxu0 0
      %1478 = vmatpush1.bf16.msra.mxu0 0
      %1479 = vmatprep.subr.bf16.mxu0 0
      %1480 = vmatpush1.bf16.msra.mxu0 0
      %1481 = vmatprep.subr.bf16.mxu0 0
      %1482 = vmatpush1.bf16.msra.mxu0 0
      %1483 = vmatprep.subr.bf16.mxu0 0
      %1484 = vmatpush1.bf16.msra.mxu0 0
      %1485 = vmatprep.subr.bf16.mxu0 0
      %1486 = vmatpush1.bf16.msra.mxu0 0
      %1487 = vmatprep.subr.bf16.mxu0 0
      %1488 = vmatpush1.bf16.msra.mxu0 0
      %1489 = vmatprep.subr.bf16.mxu0 0
      %1490 = vmatpush1.bf16.msra.mxu0 0
      %1491 = vmatprep.subr.bf16.mxu0 0
      %1492 = vmatpush1.bf16.msra.mxu0 0
      %1493 = vmatprep.subr.bf16.mxu0 0
      %1494 = vmatpush1.bf16.msra.mxu0 0
      %1495 = vmatprep.mubr.bf16.mxu0 0
      %1496 = vmatmul.mubr.bf16.gmra.mrb[0].mxu0 %v905
      %v1497 = vpop.f32.mrb[0].mxu0
      %v1498 = vadd.f32 %v1386, %v1497
      %v1499 = vpop.f32.mrb[0].mxu0
      %v1500 = vpop.f32.mrb[0].mxu0
      %v1501 = vpop.f32.mrb[0].mxu0
      %1502 = vdwg.mxu0
      %v1507 = vunpack.c.l.b16 %v1363
      %v1508 = vunpack.c.l.b16 %v1364
      %v1509 = vunpack.c.l.b16 %v1365
      %v1510 = vunpack.c.l.b16 %v1366
      %v1511 = vpack.c.b16 %v1508, %v1507
      %v1512 = vpack.c.b16 %v1510, %v1509
      %1515 = vmatprep.subr.bf16.mxu0 0
      %1516 = vmatpush1.bf16.msra.mxu0 %v1511
      %1517 = vmatprep.subr.bf16.mxu0 0
      %1518 = vmatpush1.bf16.msra.mxu0 %v1512
      %1519 = vmatprep.subr.bf16.mxu0 0
      %1520 = vmatpush1.bf16.msra.mxu0 0
      %1521 = vmatprep.subr.bf16.mxu0 0
      %1522 = vmatpush1.bf16.msra.mxu0 0
      %1523 = vmatprep.subr.bf16.mxu0 0
      %1524 = vmatpush1.bf16.msra.mxu0 0
      %1525 = vmatprep.subr.bf16.mxu0 0
      %1526 = vmatpush1.bf16.msra.mxu0 0
      %1527 = vmatprep.subr.bf16.mxu0 0
      %1528 = vmatpush1.bf16.msra.mxu0 0
      %1529 = vmatprep.subr.bf16.mxu0 0
      %1530 = vmatpush1.bf16.msra.mxu0 0
      %1531 = vmatprep.subr.bf16.mxu0 0
      %1532 = vmatpush1.bf16.msra.mxu0 0
      %1533 = vmatprep.subr.bf16.mxu0 0
      %1534 = vmatpush1.bf16.msra.mxu0 0
      %1535 = vmatprep.subr.bf16.mxu0 0
      %1536 = vmatpush1.bf16.msra.mxu0 0
      %1537 = vmatprep.subr.bf16.mxu0 0
      %1538 = vmatpush1.bf16.msra.mxu0 0
      %1539 = vmatprep.subr.bf16.mxu0 0
      %1540 = vmatpush1.bf16.msra.mxu0 0
      %1541 = vmatprep.subr.bf16.mxu0 0
      %1542 = vmatpush1.bf16.msra.mxu0 0
      %1543 = vmatprep.subr.bf16.mxu0 0
      %1544 = vmatpush1.bf16.msra.mxu0 0
      %1545 = vmatprep.subr.bf16.mxu0 0
      %1546 = vmatpush1.bf16.msra.mxu0 0
      %1547 = vmatprep.mubr.bf16.mxu0 0
      %1548 = vmatmul.mubr.bf16.gmra.mrb[0].mxu0 %v905
      %v1549 = vpop.f32.mrb[0].mxu0
      %v1550 = vadd.f32 %v1390, %v1549
      %v1551 = vpop.f32.mrb[0].mxu0
      %v1552 = vpop.f32.mrb[0].mxu0
      %v1553 = vpop.f32.mrb[0].mxu0
      %1554 = vdwg.mxu0
      %v1559 = vunpack.c.l.b16 %v1367
      %v1560 = vunpack.c.l.b16 %v1368
      %v1561 = vunpack.c.l.b16 %v1369
      %v1562 = vunpack.c.l.b16 %v1370
      %v1563 = vpack.c.b16 %v1560, %v1559
      %v1564 = vpack.c.b16 %v1562, %v1561
      %1567 = vmatprep.subr.bf16.mxu0 0
      %1568 = vmatpush1.bf16.msra.mxu0 %v1563
      %1569 = vmatprep.subr.bf16.mxu0 0
      %1570 = vmatpush1.bf16.msra.mxu0 %v1564
      %1571 = vmatprep.subr.bf16.mxu0 0
      %1572 = vmatpush1.bf16.msra.mxu0 0
      %1573 = vmatprep.subr.bf16.mxu0 0
      %1574 = vmatpush1.bf16.msra.mxu0 0
      %1575 = vmatprep.subr.bf16.mxu0 0
      %1576 = vmatpush1.bf16.msra.mxu0 0
      %1577 = vmatprep.subr.bf16.mxu0 0
      %1578 = vmatpush1.bf16.msra.mxu0 0
      %1579 = vmatprep.subr.bf16.mxu0 0
      %1580 = vmatpush1.bf16.msra.mxu0 0
      %1581 = vmatprep.subr.bf16.mxu0 0
      %1582 = vmatpush1.bf16.msra.mxu0 0
      %1583 = vmatprep.subr.bf16.mxu0 0
      %1584 = vmatpush1.bf16.msra.mxu0 0
      %1585 = vmatprep.subr.bf16.mxu0 0
      %1586 = vmatpush1.bf16.msra.mxu0 0
      %1587 = vmatprep.subr.bf16.mxu0 0
      %1588 = vmatpush1.bf16.msra.mxu0 0
      %1589 = vmatprep.subr.bf16.mxu0 0
      %1590 = vmatpush1.bf16.msra.mxu0 0
      %1591 = vmatprep.subr.bf16.mxu0 0
      %1592 = vmatpush1.bf16.msra.mxu0 0
      %1593 = vmatprep.subr.bf16.mxu0 0
      %1594 = vmatpush1.bf16.msra.mxu0 0
      %1595 = vmatprep.subr.bf16.mxu0 0
      %1596 = vmatpush1.bf16.msra.mxu0 0
      %1597 = vmatprep.subr.bf16.mxu0 0
      %1598 = vmatpush1.bf16.msra.mxu0 0
      %1599 = vmatprep.mubr.bf16.mxu0 0
      %1600 = vmatmul.mubr.bf16.gmra.mrb[0].mxu0 %v905
      %v1601 = vpop.f32.mrb[0].mxu0
      %v1602 = vadd.f32 %v1394, %v1601
      %v1603 = vpop.f32.mrb[0].mxu0
      %v1604 = vpop.f32.mrb[0].mxu0
      %v1605 = vpop.f32.mrb[0].mxu0
      %1606 = vdwg.mxu0
      %v1607 = vpack.c.bf16 %v942, %v942
      %v1608 = vpack.c.bf16 %v994, %v994
      %v1609 = vpack.c.bf16 %v1046, %v1046
      %v1610 = vpack.c.bf16 %v1098, %v1098
      %v1611 = vpack.c.bf16 %v1194, %v1194
      %v1612 = vpack.c.bf16 %v1246, %v1246
      %v1613 = vpack.c.bf16 %v1298, %v1298
      %v1614 = vpack.c.bf16 %v1350, %v1350
      %vm1615 = vcmask 64512
      %v1617 = vsel %vm1615, %v1607, 0
      %v1620 = vsel %vm1615, %v1611, 0
      %1622 = vmatprep.subr.bf16.mxu0 0
      %1623 = vmatpush1.bf16.xpose.msra.mxu0 %v1620
      %1624 = vmatprep.subr.bf16.mxu0 0
      %1625 = vmatpush1.bf16.xpose.msra.mxu0 0
      %1626 = vmatprep.subr.bf16.mxu0 0
      %1627 = vmatpush1.bf16.xpose.msra.mxu0 0
      %1628 = vmatprep.subr.bf16.mxu0 0
      %1629 = vmatpush1.bf16.xpose.msra.mxu0 0
      %1630 = vmatprep.subr.bf16.mxu0 0
      %1631 = vmatpush1.bf16.xpose.msra.mxu0 0
      %1632 = vmatprep.subr.bf16.mxu0 0
      %1633 = vmatpush1.bf16.xpose.msra.mxu0 0
      %1634 = vmatprep.subr.bf16.mxu0 0
      %1635 = vmatpush1.bf16.xpose.msra.mxu0 0
      %1636 = vmatprep.subr.bf16.mxu0 0
      %1637 = vmatpush1.bf16.xpose.msra.mxu0 0
      %1638 = vmatprep.subr.bf16.mxu0 0
      %1639 = vmatpush1.bf16.xpose.msra.mxu0 0
      %1640 = vmatprep.subr.bf16.mxu0 0
      %1641 = vmatpush1.bf16.xpose.msra.mxu0 0
      %1642 = vmatprep.subr.bf16.mxu0 0
      %1643 = vmatpush1.bf16.xpose.msra.mxu0 0
      %1644 = vmatprep.subr.bf16.mxu0 0
      %1645 = vmatpush1.bf16.xpose.msra.mxu0 0
      %1646 = vmatprep.subr.bf16.mxu0 0
      %1647 = vmatpush1.bf16.xpose.msra.mxu0 0
      %1648 = vmatprep.subr.bf16.mxu0 0
      %1649 = vmatpush1.bf16.xpose.msra.mxu0 0
      %1650 = vmatprep.subr.bf16.mxu0 0
      %1651 = vmatpush1.bf16.xpose.msra.mxu0 0
      %1652 = vmatprep.subr.bf16.mxu0 0
      %1653 = vmatpush1.bf16.xpose.msra.mxu0 0
      %1654 = vmatprep.mubr.bf16.mxu0 0
      %1655 = vmatmul.mubr.bf16.gmra.mrb[0].mxu0 %v1617
      %v1656 = vpop.f32.mrb[0].mxu0
      %v1657 = vadd.f32 0.0, %v1656
      %v1658 = vpop.f32.mrb[0].mxu0
      %v1659 = vpop.f32.mrb[0].mxu0
      %v1660 = vpop.f32.mrb[0].mxu0
      %1661 = vdwg.mxu0
      %v1663 = vsel %vm1615, %v1608, 0
      %v1666 = vsel %vm1615, %v1612, 0
      %1668 = vmatprep.subr.bf16.mxu0 0
      %1669 = vmatpush1.bf16.xpose.msra.mxu0 %v1666
      %1670 = vmatprep.subr.bf16.mxu0 0
      %1671 = vmatpush1.bf16.xpose.msra.mxu0 0
      %1672 = vmatprep.subr.bf16.mxu0 0
      %1673 = vmatpush1.bf16.xpose.msra.mxu0 0
      %1674 = vmatprep.subr.bf16.mxu0 0
      %1675 = vmatpush1.bf16.xpose.msra.mxu0 0
      %1676 = vmatprep.subr.bf16.mxu0 0
      %1677 = vmatpush1.bf16.xpose.msra.mxu0 0
      %1678 = vmatprep.subr.bf16.mxu0 0
      %1679 = vmatpush1.bf16.xpose.msra.mxu0 0
      %1680 = vmatprep.subr.bf16.mxu0 0
      %1681 = vmatpush1.bf16.xpose.msra.mxu0 0
      %1682 = vmatprep.subr.bf16.mxu0 0
      %1683 = vmatpush1.bf16.xpose.msra.mxu0 0
      %1684 = vmatprep.subr.bf16.mxu0 0
      %1685 = vmatpush1.bf16.xpose.msra.mxu0 0
      %1686 = vmatprep.subr.bf16.mxu0 0
      %1687 = vmatpush1.bf16.xpose.msra.mxu0 0
      %1688 = vmatprep.subr.bf16.mxu0 0
      %1689 = vmatpush1.bf16.xpose.msra.mxu0 0
      %1690 = vmatprep.subr.bf16.mxu0 0
      %1691 = vmatpush1.bf16.xpose.msra.mxu0 0
      %1692 = vmatprep.subr.bf16.mxu0 0
      %1693 = vmatpush1.bf16.xpose.msra.mxu0 0
      %1694 = vmatprep.subr.bf16.mxu0 0
      %1695 = vmatpush1.bf16.xpose.msra.mxu0 0
      %1696 = vmatprep.subr.bf16.mxu0 0
      %1697 = vmatpush1.bf16.xpose.msra.mxu0 0
      %1698 = vmatprep.subr.bf16.mxu0 0
      %1699 = vmatpush1.bf16.xpose.msra.mxu0 0
      %1700 = vmatprep.mubr.bf16.mxu0 0
      %1701 = vmatmul.mubr.bf16.gmra.mrb[0].mxu0 %v1663
      %v1702 = vpop.f32.mrb[0].mxu0
      %v1703 = vadd.f32 0.0, %v1702
      %v1704 = vpop.f32.mrb[0].mxu0
      %v1705 = vpop.f32.mrb[0].mxu0
      %v1706 = vpop.f32.mrb[0].mxu0
      %1707 = vdwg.mxu0
      %v1709 = vsel %vm1615, %v1609, 0
      %v1712 = vsel %vm1615, %v1613, 0
      %1714 = vmatprep.subr.bf16.mxu0 0
      %1715 = vmatpush1.bf16.xpose.msra.mxu0 %v1712
      %1716 = vmatprep.subr.bf16.mxu0 0
      %1717 = vmatpush1.bf16.xpose.msra.mxu0 0
      %1718 = vmatprep.subr.bf16.mxu0 0
      %1719 = vmatpush1.bf16.xpose.msra.mxu0 0
      %1720 = vmatprep.subr.bf16.mxu0 0
      %1721 = vmatpush1.bf16.xpose.msra.mxu0 0
      %1722 = vmatprep.subr.bf16.mxu0 0
      %1723 = vmatpush1.bf16.xpose.msra.mxu0 0
      %1724 = vmatprep.subr.bf16.mxu0 0
      %1725 = vmatpush1.bf16.xpose.msra.mxu0 0
      %1726 = vmatprep.subr.bf16.mxu0 0
      %1727 = vmatpush1.bf16.xpose.msra.mxu0 0
      %1728 = vmatprep.subr.bf16.mxu0 0
      %1729 = vmatpush1.bf16.xpose.msra.mxu0 0
      %1730 = vmatprep.subr.bf16.mxu0 0
      %1731 = vmatpush1.bf16.xpose.msra.mxu0 0
      %1732 = vmatprep.subr.bf16.mxu0 0
      %1733 = vmatpush1.bf16.xpose.msra.mxu0 0
      %1734 = vmatprep.subr.bf16.mxu0 0
      %1735 = vmatpush1.bf16.xpose.msra.mxu0 0
      %1736 = vmatprep.subr.bf16.mxu0 0
      %1737 = vmatpush1.bf16.xpose.msra.mxu0 0
      %1738 = vmatprep.subr.bf16.mxu0 0
      %1739 = vmatpush1.bf16.xpose.msra.mxu0 0
      %1740 = vmatprep.subr.bf16.mxu0 0
      %1741 = vmatpush1.bf16.xpose.msra.mxu0 0
      %1742 = vmatprep.subr.bf16.mxu0 0
      %1743 = vmatpush1.bf16.xpose.msra.mxu0 0
      %1744 = vmatprep.subr.bf16.mxu0 0
      %1745 = vmatpush1.bf16.xpose.msra.mxu0 0
      %1746 = vmatprep.mubr.bf16.mxu0 0
      %1747 = vmatmul.mubr.bf16.gmra.mrb[0].mxu0 %v1709
      %v1748 = vpop.f32.mrb[0].mxu0
      %v1749 = vadd.f32 0.0, %v1748
      %v1750 = vpop.f32.mrb[0].mxu0
      %v1751 = vpop.f32.mrb[0].mxu0
      %v1752 = vpop.f32.mrb[0].mxu0
      %1753 = vdwg.mxu0
      %v1755 = vsel %vm1615, %v1610, 0
      %v1758 = vsel %vm1615, %v1614, 0
      %1760 = vmatprep.subr.bf16.mxu0 0
      %1761 = vmatpush1.bf16.xpose.msra.mxu0 %v1758
      %1762 = vmatprep.subr.bf16.mxu0 0
      %1763 = vmatpush1.bf16.xpose.msra.mxu0 0
      %1764 = vmatprep.subr.bf16.mxu0 0
      %1765 = vmatpush1.bf16.xpose.msra.mxu0 0
      %1766 = vmatprep.subr.bf16.mxu0 0
      %1767 = vmatpush1.bf16.xpose.msra.mxu0 0
      %1768 = vmatprep.subr.bf16.mxu0 0
      %1769 = vmatpush1.bf16.xpose.msra.mxu0 0
      %1770 = vmatprep.subr.bf16.mxu0 0
      %1771 = vmatpush1.bf16.xpose.msra.mxu0 0
      %1772 = vmatprep.subr.bf16.mxu0 0
      %1773 = vmatpush1.bf16.xpose.msra.mxu0 0
      %1774 = vmatprep.subr.bf16.mxu0 0
      %1775 = vmatpush1.bf16.xpose.msra.mxu0 0
      %1776 = vmatprep.subr.bf16.mxu0 0
      %1777 = vmatpush1.bf16.xpose.msra.mxu0 0
      %1778 = vmatprep.subr.bf16.mxu0 0
      %1779 = vmatpush1.bf16.xpose.msra.mxu0 0
      %1780 = vmatprep.subr.bf16.mxu0 0
      %1781 = vmatpush1.bf16.xpose.msra.mxu0 0
      %1782 = vmatprep.subr.bf16.mxu0 0
      %1783 = vmatpush1.bf16.xpose.msra.mxu0 0
      %1784 = vmatprep.subr.bf16.mxu0 0
      %1785 = vmatpush1.bf16.xpose.msra.mxu0 0
      %1786 = vmatprep.subr.bf16.mxu0 0
      %1787 = vmatpush1.bf16.xpose.msra.mxu0 0
      %1788 = vmatprep.subr.bf16.mxu0 0
      %1789 = vmatpush1.bf16.xpose.msra.mxu0 0
      %1790 = vmatprep.subr.bf16.mxu0 0
      %1791 = vmatpush1.bf16.xpose.msra.mxu0 0
      %1792 = vmatprep.mubr.bf16.mxu0 0
      %1793 = vmatmul.mubr.bf16.gmra.mrb[0].mxu0 %v1755
      %v1794 = vpop.f32.mrb[0].mxu0
      %v1795 = vadd.f32 0.0, %v1794
      %v1796 = vpop.f32.mrb[0].mxu0
      %v1797 = vpop.f32.mrb[0].mxu0
      %v1798 = vpop.f32.mrb[0].mxu0
      %1799 = vdwg.mxu0
      %v1800 = vsel %vm1615, %v1657, -inf
      %1801 = vmax.xlane.f32.xlu0 %v1800
      %v1802 = vpop.xlane.xlu0 %1801
      %v1803 = vsel %vm1615, %v1703, -inf
      %1804 = vmax.xlane.f32.xlu0 %v1803
      %v1805 = vpop.xlane.xlu0 %1804
      %v1806 = vsel %vm1615, %v1749, -inf
      %1807 = vmax.xlane.f32.xlu0 %v1806
      %v1808 = vpop.xlane.xlu0 %1807
      %v1809 = vsel %vm1615, %v1795, -inf
      %1810 = vmax.xlane.f32.xlu0 %v1809
      %v1811 = vpop.xlane.xlu0 %1810
      %v1812 = vsub.f32 %v1657, %v1802
      %v1813 = vsub.f32 %v1703, %v1805
      %v1814 = vsub.f32 %v1749, %v1808
      %v1815 = vsub.f32 %v1795, %v1811
      %v1816 = vmul.f32 %v1812, 1.442695
      %v1817 = vpow.pop %v1816
      %v1818 = vmul.f32 %v1813, 1.442695
      %v1819 = vpow.pop %v1818
      %v1820 = vmul.f32 %v1814, 1.442695
      %v1821 = vpow.pop %v1820
      %v1822 = vmul.f32 %v1815, 1.442695
      %v1823 = vpow.pop %v1822
      %v1824 = vsel %vm1615, %v1817, 0.0
      %1825 = vadd.xlane.f32.xlu0 %v1824
      %v1826 = vpop.xlane.xlu0 %1825
      %v1827 = vsel %vm1615, %v1819, 0.0
      %1828 = vadd.xlane.f32.xlu0 %v1827
      %v1829 = vpop.xlane.xlu0 %1828
      %v1830 = vsel %vm1615, %v1821, 0.0
      %1831 = vadd.xlane.f32.xlu0 %v1830
      %v1832 = vpop.xlane.xlu0 %1831
      %v1833 = vsel %vm1615, %v1823, 0.0
      %1834 = vadd.xlane.f32.xlu0 %v1833
      %v1835 = vpop.xlane.xlu0 %1834
      %v1836 = vrcp.pop %v1826
      %v1837 = vrcp.pop %v1829
      %v1838 = vrcp.pop %v1832
      %v1839 = vrcp.pop %v1835
      %v1840 = vmul.f32 %v1817, %v1836
      %v1841 = vmul.f32 %v1819, %v1837
      %v1842 = vmul.f32 %v1821, %v1838
      %v1843 = vmul.f32 %v1823, %v1839
      %v1844 = vpack.c.bf16 %v1840, %v1840
      %v1845 = vpack.c.bf16 %v1841, %v1841
      %v1846 = vpack.c.bf16 %v1842, %v1842
      %v1847 = vpack.c.bf16 %v1843, %v1843
      %v1848 = vpack.c.bf16 %v1446, %v1446
      %v1849 = vpack.c.bf16 %v1498, %v1498
      %v1850 = vpack.c.bf16 %v1550, %v1550
      %v1851 = vpack.c.bf16 %v1602, %v1602
      %v1853 = vsel %vm1615, %v1844, 0
      %vm1855 = vcmask 1043456
      %v1857 = vsel %vm1855, %v1848, 0
      %1859 = vmatprep.subr.bf16.mxu0 0
      %1860 = vmatpush1.bf16.msra.mxu0 %v1857
      %1861 = vmatprep.subr.bf16.mxu0 0
      %1862 = vmatpush1.bf16.msra.mxu0 0
      %1863 = vmatprep.subr.bf16.mxu0 0
      %1864 = vmatpush1.bf16.msra.mxu0 0
      %1865 = vmatprep.subr.bf16.mxu0 0
      %1866 = vmatpush1.bf16.msra.mxu0 0
      %1867 = vmatprep.subr.bf16.mxu0 0
      %1868 = vmatpush1.bf16.msra.mxu0 0
      %1869 = vmatprep.subr.bf16.mxu0 0
      %1870 = vmatpush1.bf16.msra.mxu0 0
      %1871 = vmatprep.subr.bf16.mxu0 0
      %1872 = vmatpush1.bf16.msra.mxu0 0
      %1873 = vmatprep.subr.bf16.mxu0 0
      %1874 = vmatpush1.bf16.msra.mxu0 0
      %1875 = vmatprep.subr.bf16.mxu0 0
      %1876 = vmatpush1.bf16.msra.mxu0 0
      %1877 = vmatprep.subr.bf16.mxu0 0
      %1878 = vmatpush1.bf16.msra.mxu0 0
      %1879 = vmatprep.subr.bf16.mxu0 0
      %1880 = vmatpush1.bf16.msra.mxu0 0
      %1881 = vmatprep.subr.bf16.mxu0 0
      %1882 = vmatpush1.bf16.msra.mxu0 0
      %1883 = vmatprep.subr.bf16.mxu0 0
      %1884 = vmatpush1.bf16.msra.mxu0 0
      %1885 = vmatprep.subr.bf16.mxu0 0
      %1886 = vmatpush1.bf16.msra.mxu0 0
      %1887 = vmatprep.subr.bf16.mxu0 0
      %1888 = vmatpush1.bf16.msra.mxu0 0
      %1889 = vmatprep.subr.bf16.mxu0 0
      %1890 = vmatpush1.bf16.msra.mxu0 0
      %1891 = vmatprep.mubr.bf16.mxu0 0
      %1892 = vmatmul.mubr.bf16.gmra.mrb[0].mxu0 %v1853
      %v1893 = vpop.f32.mrb[0].mxu0
      %v1894 = vadd.f32 0.0, %v1893
      %v1895 = vpop.f32.mrb[0].mxu0
      %v1896 = vpop.f32.mrb[0].mxu0
      %v1897 = vpop.f32.mrb[0].mxu0
      %1898 = vdwg.mxu0
      %v1900 = vsel %vm1615, %v1845, 0
      %v1903 = vsel %vm1855, %v1849, 0
      %1905 = vmatprep.subr.bf16.mxu0 0
      %1906 = vmatpush1.bf16.msra.mxu0 %v1903
      %1907 = vmatprep.subr.bf16.mxu0 0
      %1908 = vmatpush1.bf16.msra.mxu0 0
      %1909 = vmatprep.subr.bf16.mxu0 0
      %1910 = vmatpush1.bf16.msra.mxu0 0
      %1911 = vmatprep.subr.bf16.mxu0 0
      %1912 = vmatpush1.bf16.msra.mxu0 0
      %1913 = vmatprep.subr.bf16.mxu0 0
      %1914 = vmatpush1.bf16.msra.mxu0 0
      %1915 = vmatprep.subr.bf16.mxu0 0
      %1916 = vmatpush1.bf16.msra.mxu0 0
      %1917 = vmatprep.subr.bf16.mxu0 0
      %1918 = vmatpush1.bf16.msra.mxu0 0
      %1919 = vmatprep.subr.bf16.mxu0 0
      %1920 = vmatpush1.bf16.msra.mxu0 0
      %1921 = vmatprep.subr.bf16.mxu0 0
      %1922 = vmatpush1.bf16.msra.mxu0 0
      %1923 = vmatprep.subr.bf16.mxu0 0
      %1924 = vmatpush1.bf16.msra.mxu0 0
      %1925 = vmatprep.subr.bf16.mxu0 0
      %1926 = vmatpush1.bf16.msra.mxu0 0
      %1927 = vmatprep.subr.bf16.mxu0 0
      %1928 = vmatpush1.bf16.msra.mxu0 0
      %1929 = vmatprep.subr.bf16.mxu0 0
      %1930 = vmatpush1.bf16.msra.mxu0 0
      %1931 = vmatprep.subr.bf16.mxu0 0
      %1932 = vmatpush1.bf16.msra.mxu0 0
      %1933 = vmatprep.subr.bf16.mxu0 0
      %1934 = vmatpush1.bf16.msra.mxu0 0
      %1935 = vmatprep.subr.bf16.mxu0 0
      %1936 = vmatpush1.bf16.msra.mxu0 0
      %1937 = vmatprep.mubr.bf16.mxu0 0
      %1938 = vmatmul.mubr.bf16.gmra.mrb[0].mxu0 %v1900
      %v1939 = vpop.f32.mrb[0].mxu0
      %v1940 = vadd.f32 0.0, %v1939
      %v1941 = vpop.f32.mrb[0].mxu0
      %v1942 = vpop.f32.mrb[0].mxu0
      %v1943 = vpop.f32.mrb[0].mxu0
      %1944 = vdwg.mxu0
      %v1946 = vsel %vm1615, %v1846, 0
      %v1949 = vsel %vm1855, %v1850, 0
      %1951 = vmatprep.subr.bf16.mxu0 0
      %1952 = vmatpush1.bf16.msra.mxu0 %v1949
      %1953 = vmatprep.subr.bf16.mxu0 0
      %1954 = vmatpush1.bf16.msra.mxu0 0
      %1955 = vmatprep.subr.bf16.mxu0 0
      %1956 = vmatpush1.bf16.msra.mxu0 0
      %1957 = vmatprep.subr.bf16.mxu0 0
      %1958 = vmatpush1.bf16.msra.mxu0 0
      %1959 = vmatprep.subr.bf16.mxu0 0
      %1960 = vmatpush1.bf16.msra.mxu0 0
      %1961 = vmatprep.subr.bf16.mxu0 0
      %1962 = vmatpush1.bf16.msra.mxu0 0
      %1963 = vmatprep.subr.bf16.mxu0 0
      %1964 = vmatpush1.bf16.msra.mxu0 0
      %1965 = vmatprep.subr.bf16.mxu0 0
      %1966 = vmatpush1.bf16.msra.mxu0 0
      %1967 = vmatprep.subr.bf16.mxu0 0
      %1968 = vmatpush1.bf16.msra.mxu0 0
      %1969 = vmatprep.subr.bf16.mxu0 0
      %1970 = vmatpush1.bf16.msra.mxu0 0
      %1971 = vmatprep.subr.bf16.mxu0 0
      %1972 = vmatpush1.bf16.msra.mxu0 0
      %1973 = vmatprep.subr.bf16.mxu0 0
      %1974 = vmatpush1.bf16.msra.mxu0 0
      %1975 = vmatprep.subr.bf16.mxu0 0
      %1976 = vmatpush1.bf16.msra.mxu0 0
      %1977 = vmatprep.subr.bf16.mxu0 0
      %1978 = vmatpush1.bf16.msra.mxu0 0
      %1979 = vmatprep.subr.bf16.mxu0 0
      %1980 = vmatpush1.bf16.msra.mxu0 0
      %1981 = vmatprep.subr.bf16.mxu0 0
      %1982 = vmatpush1.bf16.msra.mxu0 0
      %1983 = vmatprep.mubr.bf16.mxu0 0
      %1984 = vmatmul.mubr.bf16.gmra.mrb[0].mxu0 %v1946
      %v1985 = vpop.f32.mrb[0].mxu0
      %v1986 = vadd.f32 0.0, %v1985
      %v1987 = vpop.f32.mrb[0].mxu0
      %v1988 = vpop.f32.mrb[0].mxu0
      %v1989 = vpop.f32.mrb[0].mxu0
      %1990 = vdwg.mxu0
      %v1992 = vsel %vm1615, %v1847, 0
      %v1995 = vsel %vm1855, %v1851, 0
      %1997 = vmatprep.subr.bf16.mxu0 0
      %1998 = vmatpush1.bf16.msra.mxu0 %v1995
      %1999 = vmatprep.subr.bf16.mxu0 0
      %2000 = vmatpush1.bf16.msra.mxu0 0
      %2001 = vmatprep.subr.bf16.mxu0 0
      %2002 = vmatpush1.bf16.msra.mxu0 0
      %2003 = vmatprep.subr.bf16.mxu0 0
      %2004 = vmatpush1.bf16.msra.mxu0 0
      %2005 = vmatprep.subr.bf16.mxu0 0
      %2006 = vmatpush1.bf16.msra.mxu0 0
      %2007 = vmatprep.subr.bf16.mxu0 0
      %2008 = vmatpush1.bf16.msra.mxu0 0
      %2009 = vmatprep.subr.bf16.mxu0 0
      %2010 = vmatpush1.bf16.msra.mxu0 0
      %2011 = vmatprep.subr.bf16.mxu0 0
      %2012 = vmatpush1.bf16.msra.mxu0 0
      %2013 = vmatprep.subr.bf16.mxu0 0
      %2014 = vmatpush1.bf16.msra.mxu0 0
      %2015 = vmatprep.subr.bf16.mxu0 0
      %2016 = vmatpush1.bf16.msra.mxu0 0
      %2017 = vmatprep.subr.bf16.mxu0 0
      %2018 = vmatpush1.bf16.msra.mxu0 0
      %2019 = vmatprep.subr.bf16.mxu0 0
      %2020 = vmatpush1.bf16.msra.mxu0 0
      %2021 = vmatprep.subr.bf16.mxu0 0
      %2022 = vmatpush1.bf16.msra.mxu0 0
      %2023 = vmatprep.subr.bf16.mxu0 0
      %2024 = vmatpush1.bf16.msra.mxu0 0
      %2025 = vmatprep.subr.bf16.mxu0 0
      %2026 = vmatpush1.bf16.msra.mxu0 0
      %2027 = vmatprep.subr.bf16.mxu0 0
      %2028 = vmatpush1.bf16.msra.mxu0 0
      %2029 = vmatprep.mubr.bf16.mxu0 0
      %2030 = vmatmul.mubr.bf16.gmra.mrb[0].mxu0 %v1992
      %v2031 = vpop.f32.mrb[0].mxu0
      %v2032 = vadd.f32 0.0, %v2031
      %v2033 = vpop.f32.mrb[0].mxu0
      %v2034 = vpop.f32.mrb[0].mxu0
      %v2035 = vpop.f32.mrb[0].mxu0
      %2036 = vdwg.mxu0
      %v2037 = vpack.c.bf16 %v1894, %v1894
      %v2038 = vpack.c.bf16 %v1940, %v1940
      %v2039 = vpack.c.bf16 %v1986, %v1986
      %v2040 = vpack.c.bf16 %v2032, %v2032
      %v2041 = vld [vmem:[%s9] sm:$0xf]
      %v2042 = vld [vmem:[%s9 + $0x4] sm:$0xf]
      %v2043 = vld [vmem:[%s9 + $0x8] sm:$0xf]
      %v2044 = vld [vmem:[%s9 + $0xc] sm:$0xf]
      %v2046 = vsel %vm1615, %v2037, 0
      %v2049 = vsel %vm1855, %v2041, 0
      %2051 = vmatprep.subr.bf16.mxu0 0
      %2052 = vmatpush1.bf16.msra.mxu0 %v2049
      %2053 = vmatprep.subr.bf16.mxu0 0
      %2054 = vmatpush1.bf16.msra.mxu0 0
      %2055 = vmatprep.subr.bf16.mxu0 0
      %2056 = vmatpush1.bf16.msra.mxu0 0
      %2057 = vmatprep.subr.bf16.mxu0 0
      %2058 = vmatpush1.bf16.msra.mxu0 0
      %2059 = vmatprep.subr.bf16.mxu0 0
      %2060 = vmatpush1.bf16.msra.mxu0 0
      %2061 = vmatprep.subr.bf16.mxu0 0
      %2062 = vmatpush1.bf16.msra.mxu0 0
      %2063 = vmatprep.subr.bf16.mxu0 0
      %2064 = vmatpush1.bf16.msra.mxu0 0
      %2065 = vmatprep.subr.bf16.mxu0 0
      %2066 = vmatpush1.bf16.msra.mxu0 0
      %2067 = vmatprep.subr.bf16.mxu0 0
      %2068 = vmatpush1.bf16.msra.mxu0 0
      %2069 = vmatprep.subr.bf16.mxu0 0
      %2070 = vmatpush1.bf16.msra.mxu0 0
      %2071 = vmatprep.subr.bf16.mxu0 0
      %2072 = vmatpush1.bf16.msra.mxu0 0
      %2073 = vmatprep.subr.bf16.mxu0 0
      %2074 = vmatpush1.bf16.msra.mxu0 0
      %2075 = vmatprep.subr.bf16.mxu0 0
      %2076 = vmatpush1.bf16.msra.mxu0 0
      %2077 = vmatprep.subr.bf16.mxu0 0
      %2078 = vmatpush1.bf16.msra.mxu0 0
      %2079 = vmatprep.subr.bf16.mxu0 0
      %2080 = vmatpush1.bf16.msra.mxu0 0
      %2081 = vmatprep.subr.bf16.mxu0 0
      %2082 = vmatpush1.bf16.msra.mxu0 0
      %2083 = vmatprep.mubr.bf16.mxu0 0
      %2084 = vmatmul.mubr.bf16.gmra.mrb[0].mxu0 %v2046
      %v2085 = vpop.f32.mrb[0].mxu0
      %v2086 = vadd.f32 0.0, %v2085
      %v2087 = vpop.f32.mrb[0].mxu0
      %v2088 = vpop.f32.mrb[0].mxu0
      %v2089 = vpop.f32.mrb[0].mxu0
      %2090 = vdwg.mxu0
      %v2092 = vsel %vm1615, %v2038, 0
      %v2095 = vsel %vm1855, %v2042, 0
      %2097 = vmatprep.subr.bf16.mxu0 0
      %2098 = vmatpush1.bf16.msra.mxu0 %v2095
      %2099 = vmatprep.subr.bf16.mxu0 0
      %2100 = vmatpush1.bf16.msra.mxu0 0
      %2101 = vmatprep.subr.bf16.mxu0 0
      %2102 = vmatpush1.bf16.msra.mxu0 0
      %2103 = vmatprep.subr.bf16.mxu0 0
      %2104 = vmatpush1.bf16.msra.mxu0 0
      %2105 = vmatprep.subr.bf16.mxu0 0
      %2106 = vmatpush1.bf16.msra.mxu0 0
      %2107 = vmatprep.subr.bf16.mxu0 0
      %2108 = vmatpush1.bf16.msra.mxu0 0
      %2109 = vmatprep.subr.bf16.mxu0 0
      %2110 = vmatpush1.bf16.msra.mxu0 0
      %2111 = vmatprep.subr.bf16.mxu0 0
      %2112 = vmatpush1.bf16.msra.mxu0 0
      %2113 = vmatprep.subr.bf16.mxu0 0
      %2114 = vmatpush1.bf16.msra.mxu0 0
      %2115 = vmatprep.subr.bf16.mxu0 0
      %2116 = vmatpush1.bf16.msra.mxu0 0
      %2117 = vmatprep.subr.bf16.mxu0 0
      %2118 = vmatpush1.bf16.msra.mxu0 0
      %2119 = vmatprep.subr.bf16.mxu0 0
      %2120 = vmatpush1.bf16.msra.mxu0 0
      %2121 = vmatprep.subr.bf16.mxu0 0
      %2122 = vmatpush1.bf16.msra.mxu0 0
      %2123 = vmatprep.subr.bf16.mxu0 0
      %2124 = vmatpush1.bf16.msra.mxu0 0
      %2125 = vmatprep.subr.bf16.mxu0 0
      %2126 = vmatpush1.bf16.msra.mxu0 0
      %2127 = vmatprep.subr.bf16.mxu0 0
      %2128 = vmatpush1.bf16.msra.mxu0 0
      %2129 = vmatprep.mubr.bf16.mxu0 0
      %2130 = vmatmul.mubr.bf16.gmra.mrb[0].mxu0 %v2092
      %v2131 = vpop.f32.mrb[0].mxu0
      %v2132 = vadd.f32 0.0, %v2131
      %v2133 = vpop.f32.mrb[0].mxu0
      %v2134 = vpop.f32.mrb[0].mxu0
      %v2135 = vpop.f32.mrb[0].mxu0
      %2136 = vdwg.mxu0
      %v2138 = vsel %vm1615, %v2039, 0
      %v2141 = vsel %vm1855, %v2043, 0
      %2143 = vmatprep.subr.bf16.mxu0 0
      %2144 = vmatpush1.bf16.msra.mxu0 %v2141
      %2145 = vmatprep.subr.bf16.mxu0 0
      %2146 = vmatpush1.bf16.msra.mxu0 0
      %2147 = vmatprep.subr.bf16.mxu0 0
      %2148 = vmatpush1.bf16.msra.mxu0 0
      %2149 = vmatprep.subr.bf16.mxu0 0
      %2150 = vmatpush1.bf16.msra.mxu0 0
      %2151 = vmatprep.subr.bf16.mxu0 0
      %2152 = vmatpush1.bf16.msra.mxu0 0
      %2153 = vmatprep.subr.bf16.mxu0 0
      %2154 = vmatpush1.bf16.msra.mxu0 0
      %2155 = vmatprep.subr.bf16.mxu0 0
      %2156 = vmatpush1.bf16.msra.mxu0 0
      %2157 = vmatprep.subr.bf16.mxu0 0
      %2158 = vmatpush1.bf16.msra.mxu0 0
      %2159 = vmatprep.subr.bf16.mxu0 0
      %2160 = vmatpush1.bf16.msra.mxu0 0
      %2161 = vmatprep.subr.bf16.mxu0 0
      %2162 = vmatpush1.bf16.msra.mxu0 0
      %2163 = vmatprep.subr.bf16.mxu0 0
      %2164 = vmatpush1.bf16.msra.mxu0 0
      %2165 = vmatprep.subr.bf16.mxu0 0
      %2166 = vmatpush1.bf16.msra.mxu0 0
      %2167 = vmatprep.subr.bf16.mxu0 0
      %2168 = vmatpush1.bf16.msra.mxu0 0
      %2169 = vmatprep.subr.bf16.mxu0 0
      %2170 = vmatpush1.bf16.msra.mxu0 0
      %2171 = vmatprep.subr.bf16.mxu0 0
      %2172 = vmatpush1.bf16.msra.mxu0 0
      %2173 = vmatprep.subr.bf16.mxu0 0
      %2174 = vmatpush1.bf16.msra.mxu0 0
      %2175 = vmatprep.mubr.bf16.mxu0 0
      %2176 = vmatmul.mubr.bf16.gmra.mrb[0].mxu0 %v2138
      %v2177 = vpop.f32.mrb[0].mxu0
      %v2178 = vadd.f32 0.0, %v2177
      %v2179 = vpop.f32.mrb[0].mxu0
      %v2180 = vpop.f32.mrb[0].mxu0
      %v2181 = vpop.f32.mrb[0].mxu0
      %2182 = vdwg.mxu0
      %v2184 = vsel %vm1615, %v2040, 0
      %v2187 = vsel %vm1855, %v2044, 0
      %2189 = vmatprep.subr.bf16.mxu0 0
      %2190 = vmatpush1.bf16.msra.mxu0 %v2187
      %2191 = vmatprep.subr.bf16.mxu0 0
      %2192 = vmatpush1.bf16.msra.mxu0 0
      %2193 = vmatprep.subr.bf16.mxu0 0
      %2194 = vmatpush1.bf16.msra.mxu0 0
      %2195 = vmatprep.subr.bf16.mxu0 0
      %2196 = vmatpush1.bf16.msra.mxu0 0
      %2197 = vmatprep.subr.bf16.mxu0 0
      %2198 = vmatpush1.bf16.msra.mxu0 0
      %2199 = vmatprep.subr.bf16.mxu0 0
      %2200 = vmatpush1.bf16.msra.mxu0 0
      %2201 = vmatprep.subr.bf16.mxu0 0
      %2202 = vmatpush1.bf16.msra.mxu0 0
      %2203 = vmatprep.subr.bf16.mxu0 0
      %2204 = vmatpush1.bf16.msra.mxu0 0
      %2205 = vmatprep.subr.bf16.mxu0 0
      %2206 = vmatpush1.bf16.msra.mxu0 0
      %2207 = vmatprep.subr.bf16.mxu0 0
      %2208 = vmatpush1.bf16.msra.mxu0 0
      %2209 = vmatprep.subr.bf16.mxu0 0
      %2210 = vmatpush1.bf16.msra.mxu0 0
      %2211 = vmatprep.subr.bf16.mxu0 0
      %2212 = vmatpush1.bf16.msra.mxu0 0
      %2213 = vmatprep.subr.bf16.mxu0 0
      %2214 = vmatpush1.bf16.msra.mxu0 0
      %2215 = vmatprep.subr.bf16.mxu0 0
      %2216 = vmatpush1.bf16.msra.mxu0 0
      %2217 = vmatprep.subr.bf16.mxu0 0
      %2218 = vmatpush1.bf16.msra.mxu0 0
      %2219 = vmatprep.subr.bf16.mxu0 0
      %2220 = vmatpush1.bf16.msra.mxu0 0
      %2221 = vmatprep.mubr.bf16.mxu0 0
      %2222 = vmatmul.mubr.bf16.gmra.mrb[0].mxu0 %v2184
      %v2223 = vpop.f32.mrb[0].mxu0
      %v2224 = vadd.f32 0.0, %v2223
      %v2225 = vpop.f32.mrb[0].mxu0
      %v2226 = vpop.f32.mrb[0].mxu0
      %v2227 = vpop.f32.mrb[0].mxu0
      %2228 = vdwg.mxu0
      %v2229 = vsel %vm903, %v2086, 0.0
      %v2230 = vsel %vm903, %v2132, 0.0
      %v2231 = vadd.f32 %v2229, %v2230
      %v2232 = vsel %vm903, %v2178, 0.0
      %v2233 = vadd.f32 %v2231, %v2232
      %v2234 = vsel %vm903, %v2224, 0.0
      %v2235 = vadd.f32 %v2233, %v2234
      %v2236 = vld [vmem:[%s10] sm:$0x1]
      %v2237 = vlaneseq
      %v2238 = vshrl.u32 %v2237, 7
      %v2239 = vsub.s32 0, %v2238
      %v2240 = vrot.slane %v2236, %v2239
      %v2241 = vadd.f32 %v2235, %v2240
      %v2242 = vadd.f32 %v841, %v2241
      %v2243 = vld [vmem:[%s11] sm:$0x1]
      %v2244 = vld [vmem:[%s12] sm:$0x1]
      %v2245 = vsel %vm903, %v2242, 0.0
      %2246 = vadd.xlane.f32.xlu0 %v2245
      %v2247 = vpop.xlane.xlu0 %2246
      %v2248 = vrcp.pop 32.0
      %v2249 = vmul.f32 %v2247, %v2248
      %v2250 = vsub.f32 %v2242, %v2249
      %v2251 = vmul.f32 %v2250, %v2250
      %v2252 = vsel %vm903, %v2251, 0.0
      %2253 = vadd.xlane.f32.xlu0 %v2252
      %v2254 = vpop.xlane.xlu0 %2253
      %v2255 = vmul.f32 %v2254, %v2248
      %v2256 = vadd.f32 %v2255, 1e-05
      %v2257 = vrsqrt.pop %v2256
      %v2258 = vmul.f32 %v2250, %v2257
      %v2259 = vlaneseq
      %v2260 = vshrl.u32 %v2259, 7
      %v2261 = vsub.s32 0, %v2260
      %v2262 = vrot.slane %v2243, %v2261
      %v2263 = vmul.f32 %v2258, %v2262
      %v2264 = vlaneseq
      %v2265 = vshrl.u32 %v2264, 7
      %v2266 = vsub.s32 0, %v2265
      %v2267 = vrot.slane %v2244, %v2266
      %v2268 = vadd.f32 %v2263, %v2267
      %v2269 = vpack.c.bf16 %v2268, %v2268
      %v2270 = vld [vmem:[%s13] sm:$0xf]
      %v2271 = vld [vmem:[%s13 + $0x4] sm:$0xf]
      %v2272 = vld [vmem:[%s13 + $0x8] sm:$0xf]
      %v2273 = vld [vmem:[%s13 + $0xc] sm:$0xf]
      %v2274 = vld [vmem:[%s14] sm:$0x1]
      %v2275 = vlaneseq
      %v2276 = vshrl.u32 %v2275, 7
      %v2277 = vsub.s32 0, %v2276
      %v2278 = vrot.slane %v2274, %v2277
      %v2283 = vunpack.c.l.b16 %v2270
      %v2284 = vunpack.c.l.b16 %v2271
      %v2285 = vunpack.c.l.b16 %v2272
      %v2286 = vunpack.c.l.b16 %v2273
      %v2287 = vpack.c.b16 %v2284, %v2283
      %v2288 = vpack.c.b16 %v2286, %v2285
      %v2292 = vsel %vm903, %v2269, 0
      %2294 = vmatprep.subr.bf16.mxu0 0
      %2295 = vmatpush1.bf16.msra.mxu0 %v2287
      %2296 = vmatprep.subr.bf16.mxu0 0
      %2297 = vmatpush1.bf16.msra.mxu0 %v2288
      %2298 = vmatprep.subr.bf16.mxu0 0
      %2299 = vmatpush1.bf16.msra.mxu0 0
      %2300 = vmatprep.subr.bf16.mxu0 0
      %2301 = vmatpush1.bf16.msra.mxu0 0
      %2302 = vmatprep.subr.bf16.mxu0 0
      %2303 = vmatpush1.bf16.msra.mxu0 0
      %2304 = vmatprep.subr.bf16.mxu0 0
      %2305 = vmatpush1.bf16.msra.mxu0 0
      %2306 = vmatprep.subr.bf16.mxu0 0
      %2307 = vmatpush1.bf16.msra.mxu0 0
      %2308 = vmatprep.subr.bf16.mxu0 0
      %2309 = vmatpush1.bf16.msra.mxu0 0
      %2310 = vmatprep.subr.bf16.mxu0 0
      %2311 = vmatpush1.bf16.msra.mxu0 0
      %2312 = vmatprep.subr.bf16.mxu0 0
      %2313 = vmatpush1.bf16.msra.mxu0 0
      %2314 = vmatprep.subr.bf16.mxu0 0
      %2315 = vmatpush1.bf16.msra.mxu0 0
      %2316 = vmatprep.subr.bf16.mxu0 0
      %2317 = vmatpush1.bf16.msra.mxu0 0
      %2318 = vmatprep.subr.bf16.mxu0 0
      %2319 = vmatpush1.bf16.msra.mxu0 0
      %2320 = vmatprep.subr.bf16.mxu0 0
      %2321 = vmatpush1.bf16.msra.mxu0 0
      %2322 = vmatprep.subr.bf16.mxu0 0
      %2323 = vmatpush1.bf16.msra.mxu0 0
      %2324 = vmatprep.subr.bf16.mxu0 0
      %2325 = vmatpush1.bf16.msra.mxu0 0
      %2326 = vmatprep.mubr.bf16.mxu0 0
      %2327 = vmatmul.mubr.bf16.gmra.mrb[0].mxu0 %v2292
      %v2328 = vpop.f32.mrb[0].mxu0
      %v2329 = vadd.f32 %v2278, %v2328
      %v2330 = vpop.f32.mrb[0].mxu0
      %v2331 = vpop.f32.mrb[0].mxu0
      %v2332 = vpop.f32.mrb[0].mxu0
      %2333 = vdwg.mxu0
      %v2334 = vmul.f32 %v2329, 0.5
      %v2335 = vmul.f32 %v2329, 0.70710677
      %v2336 = verf.f32.pop %v2335
      %v2337 = vadd.f32 %v2336, 1.0
      %v2338 = vmul.f32 %v2334, %v2337
      %v2339 = vpack.c.bf16 %v2338, %v2338
      %v2340 = vld [vmem:[%s15] sm:$0xf]
      %v2341 = vld [vmem:[%s15 + $0x4] sm:$0xf]
      %v2342 = vld [vmem:[%s15 + $0x8] sm:$0xf]
      %v2343 = vld [vmem:[%s15 + $0xc] sm:$0xf]
      %v2344 = vld [vmem:[%s15 + $0x10] sm:$0xf]
      %v2345 = vld [vmem:[%s15 + $0x14] sm:$0xf]
      %v2346 = vld [vmem:[%s15 + $0x18] sm:$0xf]
      %v2347 = vld [vmem:[%s15 + $0x1c] sm:$0xf]
      %v2348 = vld [vmem:[%s16] sm:$0x1]
      %v2349 = vlaneseq
      %v2350 = vshrl.u32 %v2349, 7
      %v2351 = vsub.s32 0, %v2350
      %v2352 = vrot.slane %v2348, %v2351
      %v2361 = vunpack.c.l.b16 %v2340
      %v2362 = vunpack.c.l.b16 %v2341
      %v2363 = vunpack.c.l.b16 %v2342
      %v2364 = vunpack.c.l.b16 %v2343
      %v2365 = vunpack.c.l.b16 %v2344
      %v2366 = vunpack.c.l.b16 %v2345
      %v2367 = vunpack.c.l.b16 %v2346
      %v2368 = vunpack.c.l.b16 %v2347
      %v2369 = vpack.c.b16 %v2362, %v2361
      %v2370 = vpack.c.b16 %v2364, %v2363
      %v2371 = vpack.c.b16 %v2366, %v2365
      %v2372 = vpack.c.b16 %v2368, %v2367
      %vm2377 = vcmask 523264
      %v2379 = vsel %vm2377, %v2339, 0
      %2381 = vmatprep.subr.bf16.mxu0 0
      %2382 = vmatpush1.bf16.msra.mxu0 %v2369
      %2383 = vmatprep.subr.bf16.mxu0 0
      %2384 = vmatpush1.bf16.msra.mxu0 %v2370
      %2385 = vmatprep.subr.bf16.mxu0 0
      %2386 = vmatpush1.bf16.msra.mxu0 %v2371
      %2387 = vmatprep.subr.bf16.mxu0 0
      %2388 = vmatpush1.bf16.msra.mxu0 %v2372
      %2389 = vmatprep.subr.bf16.mxu0 0
      %2390 = vmatpush1.bf16.msra.mxu0 0
      %2391 = vmatprep.subr.bf16.mxu0 0
      %2392 = vmatpush1.bf16.msra.mxu0 0
      %2393 = vmatprep.subr.bf16.mxu0 0
      %2394 = vmatpush1.bf16.msra.mxu0 0
      %2395 = vmatprep.subr.bf16.mxu0 0
      %2396 = vmatpush1.bf16.msra.mxu0 0
      %2397 = vmatprep.subr.bf16.mxu0 0
      %2398 = vmatpush1.bf16.msra.mxu0 0
      %2399 = vmatprep.subr.bf16.mxu0 0
      %2400 = vmatpush1.bf16.msra.mxu0 0
      %2401 = vmatprep.subr.bf16.mxu0 0
      %2402 = vmatpush1.bf16.msra.mxu0 0
      %2403 = vmatprep.subr.bf16.mxu0 0
      %2404 = vmatpush1.bf16.msra.mxu0 0
      %2405 = vmatprep.subr.bf16.mxu0 0
      %2406 = vmatpush1.bf16.msra.mxu0 0
      %2407 = vmatprep.subr.bf16.mxu0 0
      %2408 = vmatpush1.bf16.msra.mxu0 0
      %2409 = vmatprep.subr.bf16.mxu0 0
      %2410 = vmatpush1.bf16.msra.mxu0 0
      %2411 = vmatprep.subr.bf16.mxu0 0
      %2412 = vmatpush1.bf16.msra.mxu0 0
      %2413 = vmatprep.mubr.bf16.mxu0 0
      %2414 = vmatmul.mubr.bf16.gmra.mrb[0].mxu0 %v2379
      %v2415 = vpop.f32.mrb[0].mxu0
      %v2416 = vadd.f32 %v2352, %v2415
      %v2417 = vpop.f32.mrb[0].mxu0
      %v2418 = vpop.f32.mrb[0].mxu0
      %v2419 = vpop.f32.mrb[0].mxu0
      %2420 = vdwg.mxu0
      %v2421 = vadd.f32 %v2268, %v2416
      %v2422 = vld [vmem:[%s17] sm:$0x1]
      %v2423 = vld [vmem:[%s18] sm:$0x1]
      %v2424 = vsel %vm903, %v2421, 0.0
      %2425 = vadd.xlane.f32.xlu0 %v2424
      %v2426 = vpop.xlane.xlu0 %2425
      %v2427 = vmul.f32 %v2426, %v2248
      %v2428 = vsub.f32 %v2421, %v2427
      %v2429 = vmul.f32 %v2428, %v2428
      %v2430 = vsel %vm903, %v2429, 0.0
      %2431 = vadd.xlane.f32.xlu0 %v2430
      %v2432 = vpop.xlane.xlu0 %2431
      %v2433 = vmul.f32 %v2432, %v2248
      %v2434 = vadd.f32 %v2433, 1e-05
      %v2435 = vrsqrt.pop %v2434
      %v2436 = vmul.f32 %v2428, %v2435
      %v2437 = vlaneseq
      %v2438 = vshrl.u32 %v2437, 7
      %v2439 = vsub.s32 0, %v2438
      %v2440 = vrot.slane %v2422, %v2439
      %v2441 = vmul.f32 %v2436, %v2440
      %v2442 = vlaneseq
      %v2443 = vshrl.u32 %v2442, 7
      %v2444 = vsub.s32 0, %v2443
      %v2445 = vrot.slane %v2423, %v2444
      %v2446 = vadd.f32 %v2441, %v2445
      %v2447 = vpack.c.bf16 %v2446, %v2446
      %s2448 = scalar_lea.vmem %s3, 64
      %v2449 = vld [vmem:[%s2448] sm:$0xf]
      %v2450 = vld [vmem:[%s2448 + $0x4] sm:$0xf]
      %v2451 = vld [vmem:[%s2448 + $0x8] sm:$0xf]
      %v2452 = vld [vmem:[%s2448 + $0xc] sm:$0xf]
      %v2453 = vld [vmem:[%s2448 + $0x10] sm:$0xf]
      %v2454 = vld [vmem:[%s2448 + $0x14] sm:$0xf]
      %v2455 = vld [vmem:[%s2448 + $0x18] sm:$0xf]
      %v2456 = vld [vmem:[%s2448 + $0x1c] sm:$0xf]
      %v2457 = vld [vmem:[%s2448 + $0x20] sm:$0xf]
      %v2458 = vld [vmem:[%s2448 + $0x24] sm:$0xf]
      %v2459 = vld [vmem:[%s2448 + $0x28] sm:$0xf]
      %v2460 = vld [vmem:[%s2448 + $0x2c] sm:$0xf]
      %v2461 = vld [vmem:[%s2448 + $0x30] sm:$0xf]
      %v2462 = vld [vmem:[%s2448 + $0x34] sm:$0xf]
      %v2463 = vld [vmem:[%s2448 + $0x38] sm:$0xf]
      %v2464 = vld [vmem:[%s2448 + $0x3c] sm:$0xf]
      %s2465 = scalar_lea.vmem %s4, 4
      %v2466 = vld [vmem:[%s2465] sm:$0x1]
      %v2467 = vld [vmem:[%s2465 + $0x1] sm:$0x1]
      %v2468 = vld [vmem:[%s2465 + $0x2] sm:$0x1]
      %v2469 = vld [vmem:[%s2465 + $0x3] sm:$0x1]
      %v2474 = vlaneseq
      %v2475 = vshrl.u32 %v2474, 7
      %v2476 = vsub.s32 0, %v2475
      %v2477 = vrot.slane %v2466, %v2476
      %v2478 = vlaneseq
      %v2479 = vshrl.u32 %v2478, 7
      %v2480 = vsub.s32 0, %v2479
      %v2481 = vrot.slane %v2467, %v2480
      %v2482 = vlaneseq
      %v2483 = vshrl.u32 %v2482, 7
      %v2484 = vsub.s32 0, %v2483
      %v2485 = vrot.slane %v2468, %v2484
      %v2486 = vlaneseq
      %v2487 = vshrl.u32 %v2486, 7
      %v2488 = vsub.s32 0, %v2487
      %v2489 = vrot.slane %v2469, %v2488
      %v2498 = vunpack.c.l.b16 %v2449
      %v2499 = vunpack.c.l.b16 %v2450
      %v2500 = vunpack.c.l.b16 %v2451
      %v2501 = vunpack.c.l.b16 %v2452
      %v2502 = vpack.c.b16 %v2499, %v2498
      %v2503 = vpack.c.b16 %v2501, %v2500
      %v2507 = vsel %vm903, %v2447, 0
      %2509 = vmatprep.subr.bf16.mxu0 0
      %2510 = vmatpush1.bf16.msra.mxu0 %v2502
      %2511 = vmatprep.subr.bf16.mxu0 0
      %2512 = vmatpush1.bf16.msra.mxu0 %v2503
      %2513 = vmatprep.subr.bf16.mxu0 0
      %2514 = vmatpush1.bf16.msra.mxu0 0
      %2515 = vmatprep.subr.bf16.mxu0 0
      %2516 = vmatpush1.bf16.msra.mxu0 0
      %2517 = vmatprep.subr.bf16.mxu0 0
      %2518 = vmatpush1.bf16.msra.mxu0 0
      %2519 = vmatprep.subr.bf16.mxu0 0
      %2520 = vmatpush1.bf16.msra.mxu0 0
      %2521 = vmatprep.subr.bf16.mxu0 0
      %2522 = vmatpush1.bf16.msra.mxu0 0
      %2523 = vmatprep.subr.bf16.mxu0 0
      %2524 = vmatpush1.bf16.msra.mxu0 0
      %2525 = vmatprep.subr.bf16.mxu0 0
      %2526 = vmatpush1.bf16.msra.mxu0 0
      %2527 = vmatprep.subr.bf16.mxu0 0
      %2528 = vmatpush1.bf16.msra.mxu0 0
      %2529 = vmatprep.subr.bf16.mxu0 0
      %2530 = vmatpush1.bf16.msra.mxu0 0
      %2531 = vmatprep.subr.bf16.mxu0 0
      %2532 = vmatpush1.bf16.msra.mxu0 0
      %2533 = vmatprep.subr.bf16.mxu0 0
      %2534 = vmatpush1.bf16.msra.mxu0 0
      %2535 = vmatprep.subr.bf16.mxu0 0
      %2536 = vmatpush1.bf16.msra.mxu0 0
      %2537 = vmatprep.subr.bf16.mxu0 0
      %2538 = vmatpush1.bf16.msra.mxu0 0
      %2539 = vmatprep.subr.bf16.mxu0 0
      %2540 = vmatpush1.bf16.msra.mxu0 0
      %2541 = vmatprep.mubr.bf16.mxu0 0
      %2542 = vmatmul.mubr.bf16.gmra.mrb[0].mxu0 %v2507
      %v2543 = vpop.f32.mrb[0].mxu0
      %v2544 = vadd.f32 %v2477, %v2543
      %v2545 = vpop.f32.mrb[0].mxu0
      %v2546 = vpop.f32.mrb[0].mxu0
      %v2547 = vpop.f32.mrb[0].mxu0
      %2548 = vdwg.mxu0
      %v2553 = vunpack.c.l.b16 %v2453
      %v2554 = vunpack.c.l.b16 %v2454
      %v2555 = vunpack.c.l.b16 %v2455
      %v2556 = vunpack.c.l.b16 %v2456
      %v2557 = vpack.c.b16 %v2554, %v2553
      %v2558 = vpack.c.b16 %v2556, %v2555
      %2561 = vmatprep.subr.bf16.mxu0 0
      %2562 = vmatpush1.bf16.msra.mxu0 %v2557
      %2563 = vmatprep.subr.bf16.mxu0 0
      %2564 = vmatpush1.bf16.msra.mxu0 %v2558
      %2565 = vmatprep.subr.bf16.mxu0 0
      %2566 = vmatpush1.bf16.msra.mxu0 0
      %2567 = vmatprep.subr.bf16.mxu0 0
      %2568 = vmatpush1.bf16.msra.mxu0 0
      %2569 = vmatprep.subr.bf16.mxu0 0
      %2570 = vmatpush1.bf16.msra.mxu0 0
      %2571 = vmatprep.subr.bf16.mxu0 0
      %2572 = vmatpush1.bf16.msra.mxu0 0
      %2573 = vmatprep.subr.bf16.mxu0 0
      %2574 = vmatpush1.bf16.msra.mxu0 0
      %2575 = vmatprep.subr.bf16.mxu0 0
      %2576 = vmatpush1.bf16.msra.mxu0 0
      %2577 = vmatprep.subr.bf16.mxu0 0
      %2578 = vmatpush1.bf16.msra.mxu0 0
      %2579 = vmatprep.subr.bf16.mxu0 0
      %2580 = vmatpush1.bf16.msra.mxu0 0
      %2581 = vmatprep.subr.bf16.mxu0 0
      %2582 = vmatpush1.bf16.msra.mxu0 0
      %2583 = vmatprep.subr.bf16.mxu0 0
      %2584 = vmatpush1.bf16.msra.mxu0 0
      %2585 = vmatprep.subr.bf16.mxu0 0
      %2586 = vmatpush1.bf16.msra.mxu0 0
      %2587 = vmatprep.subr.bf16.mxu0 0
      %2588 = vmatpush1.bf16.msra.mxu0 0
      %2589 = vmatprep.subr.bf16.mxu0 0
      %2590 = vmatpush1.bf16.msra.mxu0 0
      %2591 = vmatprep.subr.bf16.mxu0 0
      %2592 = vmatpush1.bf16.msra.mxu0 0
      %2593 = vmatprep.mubr.bf16.mxu0 0
      %2594 = vmatmul.mubr.bf16.gmra.mrb[0].mxu0 %v2507
      %v2595 = vpop.f32.mrb[0].mxu0
      %v2596 = vadd.f32 %v2481, %v2595
      %v2597 = vpop.f32.mrb[0].mxu0
      %v2598 = vpop.f32.mrb[0].mxu0
      %v2599 = vpop.f32.mrb[0].mxu0
      %2600 = vdwg.mxu0
      %v2605 = vunpack.c.l.b16 %v2457
      %v2606 = vunpack.c.l.b16 %v2458
      %v2607 = vunpack.c.l.b16 %v2459
      %v2608 = vunpack.c.l.b16 %v2460
      %v2609 = vpack.c.b16 %v2606, %v2605
      %v2610 = vpack.c.b16 %v2608, %v2607
      %2613 = vmatprep.subr.bf16.mxu0 0
      %2614 = vmatpush1.bf16.msra.mxu0 %v2609
      %2615 = vmatprep.subr.bf16.mxu0 0
      %2616 = vmatpush1.bf16.msra.mxu0 %v2610
      %2617 = vmatprep.subr.bf16.mxu0 0
      %2618 = vmatpush1.bf16.msra.mxu0 0
      %2619 = vmatprep.subr.bf16.mxu0 0
      %2620 = vmatpush1.bf16.msra.mxu0 0
      %2621 = vmatprep.subr.bf16.mxu0 0
      %2622 = vmatpush1.bf16.msra.mxu0 0
      %2623 = vmatprep.subr.bf16.mxu0 0
      %2624 = vmatpush1.bf16.msra.mxu0 0
      %2625 = vmatprep.subr.bf16.mxu0 0
      %2626 = vmatpush1.bf16.msra.mxu0 0
      %2627 = vmatprep.subr.bf16.mxu0 0
      %2628 = vmatpush1.bf16.msra.mxu0 0
      %2629 = vmatprep.subr.bf16.mxu0 0
      %2630 = vmatpush1.bf16.msra.mxu0 0
      %2631 = vmatprep.subr.bf16.mxu0 0
      %2632 = vmatpush1.bf16.msra.mxu0 0
      %2633 = vmatprep.subr.bf16.mxu0 0
      %2634 = vmatpush1.bf16.msra.mxu0 0
      %2635 = vmatprep.subr.bf16.mxu0 0
      %2636 = vmatpush1.bf16.msra.mxu0 0
      %2637 = vmatprep.subr.bf16.mxu0 0
      %2638 = vmatpush1.bf16.msra.mxu0 0
      %2639 = vmatprep.subr.bf16.mxu0 0
      %2640 = vmatpush1.bf16.msra.mxu0 0
      %2641 = vmatprep.subr.bf16.mxu0 0
      %2642 = vmatpush1.bf16.msra.mxu0 0
      %2643 = vmatprep.subr.bf16.mxu0 0
      %2644 = vmatpush1.bf16.msra.mxu0 0
      %2645 = vmatprep.mubr.bf16.mxu0 0
      %2646 = vmatmul.mubr.bf16.gmra.mrb[0].mxu0 %v2507
      %v2647 = vpop.f32.mrb[0].mxu0
      %v2648 = vadd.f32 %v2485, %v2647
      %v2649 = vpop.f32.mrb[0].mxu0
      %v2650 = vpop.f32.mrb[0].mxu0
      %v2651 = vpop.f32.mrb[0].mxu0
      %2652 = vdwg.mxu0
      %v2657 = vunpack.c.l.b16 %v2461
      %v2658 = vunpack.c.l.b16 %v2462
      %v2659 = vunpack.c.l.b16 %v2463
      %v2660 = vunpack.c.l.b16 %v2464
      %v2661 = vpack.c.b16 %v2658, %v2657
      %v2662 = vpack.c.b16 %v2660, %v2659
      %2665 = vmatprep.subr.bf16.mxu0 0
      %2666 = vmatpush1.bf16.msra.mxu0 %v2661
      %2667 = vmatprep.subr.bf16.mxu0 0
      %2668 = vmatpush1.bf16.msra.mxu0 %v2662
      %2669 = vmatprep.subr.bf16.mxu0 0
      %2670 = vmatpush1.bf16.msra.mxu0 0
      %2671 = vmatprep.subr.bf16.mxu0 0
      %2672 = vmatpush1.bf16.msra.mxu0 0
      %2673 = vmatprep.subr.bf16.mxu0 0
      %2674 = vmatpush1.bf16.msra.mxu0 0
      %2675 = vmatprep.subr.bf16.mxu0 0
      %2676 = vmatpush1.bf16.msra.mxu0 0
      %2677 = vmatprep.subr.bf16.mxu0 0
      %2678 = vmatpush1.bf16.msra.mxu0 0
      %2679 = vmatprep.subr.bf16.mxu0 0
      %2680 = vmatpush1.bf16.msra.mxu0 0
      %2681 = vmatprep.subr.bf16.mxu0 0
      %2682 = vmatpush1.bf16.msra.mxu0 0
      %2683 = vmatprep.subr.bf16.mxu0 0
      %2684 = vmatpush1.bf16.msra.mxu0 0
      %2685 = vmatprep.subr.bf16.mxu0 0
      %2686 = vmatpush1.bf16.msra.mxu0 0
      %2687 = vmatprep.subr.bf16.mxu0 0
      %2688 = vmatpush1.bf16.msra.mxu0 0
      %2689 = vmatprep.subr.bf16.mxu0 0
      %2690 = vmatpush1.bf16.msra.mxu0 0
      %2691 = vmatprep.subr.bf16.mxu0 0
      %2692 = vmatpush1.bf16.msra.mxu0 0
      %2693 = vmatprep.subr.bf16.mxu0 0
      %2694 = vmatpush1.bf16.msra.mxu0 0
      %2695 = vmatprep.subr.bf16.mxu0 0
      %2696 = vmatpush1.bf16.msra.mxu0 0
      %2697 = vmatprep.mubr.bf16.mxu0 0
      %2698 = vmatmul.mubr.bf16.gmra.mrb[0].mxu0 %v2507
      %v2699 = vpop.f32.mrb[0].mxu0
      %v2700 = vadd.f32 %v2489, %v2699
      %v2701 = vpop.f32.mrb[0].mxu0
      %v2702 = vpop.f32.mrb[0].mxu0
      %v2703 = vpop.f32.mrb[0].mxu0
      %2704 = vdwg.mxu0
      %s2705 = scalar_lea.vmem %s5, 64
      %v2706 = vld [vmem:[%s2705] sm:$0xf]
      %v2707 = vld [vmem:[%s2705 + $0x4] sm:$0xf]
      %v2708 = vld [vmem:[%s2705 + $0x8] sm:$0xf]
      %v2709 = vld [vmem:[%s2705 + $0xc] sm:$0xf]
      %v2710 = vld [vmem:[%s2705 + $0x10] sm:$0xf]
      %v2711 = vld [vmem:[%s2705 + $0x14] sm:$0xf]
      %v2712 = vld [vmem:[%s2705 + $0x18] sm:$0xf]
      %v2713 = vld [vmem:[%s2705 + $0x1c] sm:$0xf]
      %v2714 = vld [vmem:[%s2705 + $0x20] sm:$0xf]
      %v2715 = vld [vmem:[%s2705 + $0x24] sm:$0xf]
      %v2716 = vld [vmem:[%s2705 + $0x28] sm:$0xf]
      %v2717 = vld [vmem:[%s2705 + $0x2c] sm:$0xf]
      %v2718 = vld [vmem:[%s2705 + $0x30] sm:$0xf]
      %v2719 = vld [vmem:[%s2705 + $0x34] sm:$0xf]
      %v2720 = vld [vmem:[%s2705 + $0x38] sm:$0xf]
      %v2721 = vld [vmem:[%s2705 + $0x3c] sm:$0xf]
      %s2722 = scalar_lea.vmem %s6, 4
      %v2723 = vld [vmem:[%s2722] sm:$0x1]
      %v2724 = vld [vmem:[%s2722 + $0x1] sm:$0x1]
      %v2725 = vld [vmem:[%s2722 + $0x2] sm:$0x1]
      %v2726 = vld [vmem:[%s2722 + $0x3] sm:$0x1]
      %v2731 = vlaneseq
      %v2732 = vshrl.u32 %v2731, 7
      %v2733 = vsub.s32 0, %v2732
      %v2734 = vrot.slane %v2723, %v2733
      %v2735 = vlaneseq
      %v2736 = vshrl.u32 %v2735, 7
      %v2737 = vsub.s32 0, %v2736
      %v2738 = vrot.slane %v2724, %v2737
      %v2739 = vlaneseq
      %v2740 = vshrl.u32 %v2739, 7
      %v2741 = vsub.s32 0, %v2740
      %v2742 = vrot.slane %v2725, %v2741
      %v2743 = vlaneseq
      %v2744 = vshrl.u32 %v2743, 7
      %v2745 = vsub.s32 0, %v2744
      %v2746 = vrot.slane %v2726, %v2745
      %v2755 = vunpack.c.l.b16 %v2706
      %v2756 = vunpack.c.l.b16 %v2707
      %v2757 = vunpack.c.l.b16 %v2708
      %v2758 = vunpack.c.l.b16 %v2709
      %v2759 = vpack.c.b16 %v2756, %v2755
      %v2760 = vpack.c.b16 %v2758, %v2757
      %2763 = vmatprep.subr.bf16.mxu0 0
      %2764 = vmatpush1.bf16.msra.mxu0 %v2759
      %2765 = vmatprep.subr.bf16.mxu0 0
      %2766 = vmatpush1.bf16.msra.mxu0 %v2760
      %2767 = vmatprep.subr.bf16.mxu0 0
      %2768 = vmatpush1.bf16.msra.mxu0 0
      %2769 = vmatprep.subr.bf16.mxu0 0
      %2770 = vmatpush1.bf16.msra.mxu0 0
      %2771 = vmatprep.subr.bf16.mxu0 0
      %2772 = vmatpush1.bf16.msra.mxu0 0
      %2773 = vmatprep.subr.bf16.mxu0 0
      %2774 = vmatpush1.bf16.msra.mxu0 0
      %2775 = vmatprep.subr.bf16.mxu0 0
      %2776 = vmatpush1.bf16.msra.mxu0 0
      %2777 = vmatprep.subr.bf16.mxu0 0
      %2778 = vmatpush1.bf16.msra.mxu0 0
      %2779 = vmatprep.subr.bf16.mxu0 0
      %2780 = vmatpush1.bf16.msra.mxu0 0
      %2781 = vmatprep.subr.bf16.mxu0 0
      %2782 = vmatpush1.bf16.msra.mxu0 0
      %2783 = vmatprep.subr.bf16.mxu0 0
      %2784 = vmatpush1.bf16.msra.mxu0 0
      %2785 = vmatprep.subr.bf16.mxu0 0
      %2786 = vmatpush1.bf16.msra.mxu0 0
      %2787 = vmatprep.subr.bf16.mxu0 0
      %2788 = vmatpush1.bf16.msra.mxu0 0
      %2789 = vmatprep.subr.bf16.mxu0 0
      %2790 = vmatpush1.bf16.msra.mxu0 0
      %2791 = vmatprep.subr.bf16.mxu0 0
      %2792 = vmatpush1.bf16.msra.mxu0 0
      %2793 = vmatprep.subr.bf16.mxu0 0
      %2794 = vmatpush1.bf16.msra.mxu0 0
      %2795 = vmatprep.mubr.bf16.mxu0 0
      %2796 = vmatmul.mubr.bf16.gmra.mrb[0].mxu0 %v2507
      %v2797 = vpop.f32.mrb[0].mxu0
      %v2798 = vadd.f32 %v2734, %v2797
      %v2799 = vpop.f32.mrb[0].mxu0
      %v2800 = vpop.f32.mrb[0].mxu0
      %v2801 = vpop.f32.mrb[0].mxu0
      %2802 = vdwg.mxu0
      %v2807 = vunpack.c.l.b16 %v2710
      %v2808 = vunpack.c.l.b16 %v2711
      %v2809 = vunpack.c.l.b16 %v2712
      %v2810 = vunpack.c.l.b16 %v2713
      %v2811 = vpack.c.b16 %v2808, %v2807
      %v2812 = vpack.c.b16 %v2810, %v2809
      %2815 = vmatprep.subr.bf16.mxu0 0
      %2816 = vmatpush1.bf16.msra.mxu0 %v2811
      %2817 = vmatprep.subr.bf16.mxu0 0
      %2818 = vmatpush1.bf16.msra.mxu0 %v2812
      %2819 = vmatprep.subr.bf16.mxu0 0
      %2820 = vmatpush1.bf16.msra.mxu0 0
      %2821 = vmatprep.subr.bf16.mxu0 0
      %2822 = vmatpush1.bf16.msra.mxu0 0
      %2823 = vmatprep.subr.bf16.mxu0 0
      %2824 = vmatpush1.bf16.msra.mxu0 0
      %2825 = vmatprep.subr.bf16.mxu0 0
      %2826 = vmatpush1.bf16.msra.mxu0 0
      %2827 = vmatprep.subr.bf16.mxu0 0
      %2828 = vmatpush1.bf16.msra.mxu0 0
      %2829 = vmatprep.subr.bf16.mxu0 0
      %2830 = vmatpush1.bf16.msra.mxu0 0
      %2831 = vmatprep.subr.bf16.mxu0 0
      %2832 = vmatpush1.bf16.msra.mxu0 0
      %2833 = vmatprep.subr.bf16.mxu0 0
      %2834 = vmatpush1.bf16.msra.mxu0 0
      %2835 = vmatprep.subr.bf16.mxu0 0
      %2836 = vmatpush1.bf16.msra.mxu0 0
      %2837 = vmatprep.subr.bf16.mxu0 0
      %2838 = vmatpush1.bf16.msra.mxu0 0
      %2839 = vmatprep.subr.bf16.mxu0 0
      %2840 = vmatpush1.bf16.msra.mxu0 0
      %2841 = vmatprep.subr.bf16.mxu0 0
      %2842 = vmatpush1.bf16.msra.mxu0 0
      %2843 = vmatprep.subr.bf16.mxu0 0
      %2844 = vmatpush1.bf16.msra.mxu0 0
      %2845 = vmatprep.subr.bf16.mxu0 0
      %2846 = vmatpush1.bf16.msra.mxu0 0
      %2847 = vmatprep.mubr.bf16.mxu0 0
      %2848 = vmatmul.mubr.bf16.gmra.mrb[0].mxu0 %v2507
      %v2849 = vpop.f32.mrb[0].mxu0
      %v2850 = vadd.f32 %v2738, %v2849
      %v2851 = vpop.f32.mrb[0].mxu0
      %v2852 = vpop.f32.mrb[0].mxu0
      %v2853 = vpop.f32.mrb[0].mxu0
      %2854 = vdwg.mxu0
      %v2859 = vunpack.c.l.b16 %v2714
      %v2860 = vunpack.c.l.b16 %v2715
      %v2861 = vunpack.c.l.b16 %v2716
      %v2862 = vunpack.c.l.b16 %v2717
      %v2863 = vpack.c.b16 %v2860, %v2859
      %v2864 = vpack.c.b16 %v2862, %v2861
      %2867 = vmatprep.subr.bf16.mxu0 0
      %2868 = vmatpush1.bf16.msra.mxu0 %v2863
      %2869 = vmatprep.subr.bf16.mxu0 0
      %2870 = vmatpush1.bf16.msra.mxu0 %v2864
      %2871 = vmatprep.subr.bf16.mxu0 0
      %2872 = vmatpush1.bf16.msra.mxu0 0
      %2873 = vmatprep.subr.bf16.mxu0 0
      %2874 = vmatpush1.bf16.msra.mxu0 0
      %2875 = vmatprep.subr.bf16.mxu0 0
      %2876 = vmatpush1.bf16.msra.mxu0 0
      %2877 = vmatprep.subr.bf16.mxu0 0
      %2878 = vmatpush1.bf16.msra.mxu0 0
      %2879 = vmatprep.subr.bf16.mxu0 0
      %2880 = vmatpush1.bf16.msra.mxu0 0
      %2881 = vmatprep.subr.bf16.mxu0 0
      %2882 = vmatpush1.bf16.msra.mxu0 0
      %2883 = vmatprep.subr.bf16.mxu0 0
      %2884 = vmatpush1.bf16.msra.mxu0 0
      %2885 = vmatprep.subr.bf16.mxu0 0
      %2886 = vmatpush1.bf16.msra.mxu0 0
      %2887 = vmatprep.subr.bf16.mxu0 0
      %2888 = vmatpush1.bf16.msra.mxu0 0
      %2889 = vmatprep.subr.bf16.mxu0 0
      %2890 = vmatpush1.bf16.msra.mxu0 0
      %2891 = vmatprep.subr.bf16.mxu0 0
      %2892 = vmatpush1.bf16.msra.mxu0 0
      %2893 = vmatprep.subr.bf16.mxu0 0
      %2894 = vmatpush1.bf16.msra.mxu0 0
      %2895 = vmatprep.subr.bf16.mxu0 0
      %2896 = vmatpush1.bf16.msra.mxu0 0
      %2897 = vmatprep.subr.bf16.mxu0 0
      %2898 = vmatpush1.bf16.msra.mxu0 0
      %2899 = vmatprep.mubr.bf16.mxu0 0
      %2900 = vmatmul.mubr.bf16.gmra.mrb[0].mxu0 %v2507
      %v2901 = vpop.f32.mrb[0].mxu0
      %v2902 = vadd.f32 %v2742, %v2901
      %v2903 = vpop.f32.mrb[0].mxu0
      %v2904 = vpop.f32.mrb[0].mxu0
      %v2905 = vpop.f32.mrb[0].mxu0
      %2906 = vdwg.mxu0
      %v2911 = vunpack.c.l.b16 %v2718
      %v2912 = vunpack.c.l.b16 %v2719
      %v2913 = vunpack.c.l.b16 %v2720
      %v2914 = vunpack.c.l.b16 %v2721
      %v2915 = vpack.c.b16 %v2912, %v2911
      %v2916 = vpack.c.b16 %v2914, %v2913
      %2919 = vmatprep.subr.bf16.mxu0 0
      %2920 = vmatpush1.bf16.msra.mxu0 %v2915
      %2921 = vmatprep.subr.bf16.mxu0 0
      %2922 = vmatpush1.bf16.msra.mxu0 %v2916
      %2923 = vmatprep.subr.bf16.mxu0 0
      %2924 = vmatpush1.bf16.msra.mxu0 0
      %2925 = vmatprep.subr.bf16.mxu0 0
      %2926 = vmatpush1.bf16.msra.mxu0 0
      %2927 = vmatprep.subr.bf16.mxu0 0
      %2928 = vmatpush1.bf16.msra.mxu0 0
      %2929 = vmatprep.subr.bf16.mxu0 0
      %2930 = vmatpush1.bf16.msra.mxu0 0
      %2931 = vmatprep.subr.bf16.mxu0 0
      %2932 = vmatpush1.bf16.msra.mxu0 0
      %2933 = vmatprep.subr.bf16.mxu0 0
      %2934 = vmatpush1.bf16.msra.mxu0 0
      %2935 = vmatprep.subr.bf16.mxu0 0
      %2936 = vmatpush1.bf16.msra.mxu0 0
      %2937 = vmatprep.subr.bf16.mxu0 0
      %2938 = vmatpush1.bf16.msra.mxu0 0
      %2939 = vmatprep.subr.bf16.mxu0 0
      %2940 = vmatpush1.bf16.msra.mxu0 0
      %2941 = vmatprep.subr.bf16.mxu0 0
      %2942 = vmatpush1.bf16.msra.mxu0 0
      %2943 = vmatprep.subr.bf16.mxu0 0
      %2944 = vmatpush1.bf16.msra.mxu0 0
      %2945 = vmatprep.subr.bf16.mxu0 0
      %2946 = vmatpush1.bf16.msra.mxu0 0
      %2947 = vmatprep.subr.bf16.mxu0 0
      %2948 = vmatpush1.bf16.msra.mxu0 0
      %2949 = vmatprep.subr.bf16.mxu0 0
      %2950 = vmatpush1.bf16.msra.mxu0 0
      %2951 = vmatprep.mubr.bf16.mxu0 0
      %2952 = vmatmul.mubr.bf16.gmra.mrb[0].mxu0 %v2507
      %v2953 = vpop.f32.mrb[0].mxu0
      %v2954 = vadd.f32 %v2746, %v2953
      %v2955 = vpop.f32.mrb[0].mxu0
      %v2956 = vpop.f32.mrb[0].mxu0
      %v2957 = vpop.f32.mrb[0].mxu0
      %2958 = vdwg.mxu0
      %s2959 = scalar_lea.vmem %s7, 64
      %v2960 = vld [vmem:[%s2959] sm:$0xf]
      %v2961 = vld [vmem:[%s2959 + $0x4] sm:$0xf]
      %v2962 = vld [vmem:[%s2959 + $0x8] sm:$0xf]
      %v2963 = vld [vmem:[%s2959 + $0xc] sm:$0xf]
      %v2964 = vld [vmem:[%s2959 + $0x10] sm:$0xf]
      %v2965 = vld [vmem:[%s2959 + $0x14] sm:$0xf]
      %v2966 = vld [vmem:[%s2959 + $0x18] sm:$0xf]
      %v2967 = vld [vmem:[%s2959 + $0x1c] sm:$0xf]
      %v2968 = vld [vmem:[%s2959 + $0x20] sm:$0xf]
      %v2969 = vld [vmem:[%s2959 + $0x24] sm:$0xf]
      %v2970 = vld [vmem:[%s2959 + $0x28] sm:$0xf]
      %v2971 = vld [vmem:[%s2959 + $0x2c] sm:$0xf]
      %v2972 = vld [vmem:[%s2959 + $0x30] sm:$0xf]
      %v2973 = vld [vmem:[%s2959 + $0x34] sm:$0xf]
      %v2974 = vld [vmem:[%s2959 + $0x38] sm:$0xf]
      %v2975 = vld [vmem:[%s2959 + $0x3c] sm:$0xf]
      %s2976 = scalar_lea.vmem %s8, 4
      %v2977 = vld [vmem:[%s2976] sm:$0x1]
      %v2978 = vld [vmem:[%s2976 + $0x1] sm:$0x1]
      %v2979 = vld [vmem:[%s2976 + $0x2] sm:$0x1]
      %v2980 = vld [vmem:[%s2976 + $0x3] sm:$0x1]
      %v2985 = vlaneseq
      %v2986 = vshrl.u32 %v2985, 7
      %v2987 = vsub.s32 0, %v2986
      %v2988 = vrot.slane %v2977, %v2987
      %v2989 = vlaneseq
      %v2990 = vshrl.u32 %v2989, 7
      %v2991 = vsub.s32 0, %v2990
      %v2992 = vrot.slane %v2978, %v2991
      %v2993 = vlaneseq
      %v2994 = vshrl.u32 %v2993, 7
      %v2995 = vsub.s32 0, %v2994
      %v2996 = vrot.slane %v2979, %v2995
      %v2997 = vlaneseq
      %v2998 = vshrl.u32 %v2997, 7
      %v2999 = vsub.s32 0, %v2998
      %v3000 = vrot.slane %v2980, %v2999
      %v3009 = vunpack.c.l.b16 %v2960
      %v3010 = vunpack.c.l.b16 %v2961
      %v3011 = vunpack.c.l.b16 %v2962
      %v3012 = vunpack.c.l.b16 %v2963
      %v3013 = vpack.c.b16 %v3010, %v3009
      %v3014 = vpack.c.b16 %v3012, %v3011
      %3017 = vmatprep.subr.bf16.mxu0 0
      %3018 = vmatpush1.bf16.msra.mxu0 %v3013
      %3019 = vmatprep.subr.bf16.mxu0 0
      %3020 = vmatpush1.bf16.msra.mxu0 %v3014
      %3021 = vmatprep.subr.bf16.mxu0 0
      %3022 = vmatpush1.bf16.msra.mxu0 0
      %3023 = vmatprep.subr.bf16.mxu0 0
      %3024 = vmatpush1.bf16.msra.mxu0 0
      %3025 = vmatprep.subr.bf16.mxu0 0
      %3026 = vmatpush1.bf16.msra.mxu0 0
      %3027 = vmatprep.subr.bf16.mxu0 0
      %3028 = vmatpush1.bf16.msra.mxu0 0
      %3029 = vmatprep.subr.bf16.mxu0 0
      %3030 = vmatpush1.bf16.msra.mxu0 0
      %3031 = vmatprep.subr.bf16.mxu0 0
      %3032 = vmatpush1.bf16.msra.mxu0 0
      %3033 = vmatprep.subr.bf16.mxu0 0
      %3034 = vmatpush1.bf16.msra.mxu0 0
      %3035 = vmatprep.subr.bf16.mxu0 0
      %3036 = vmatpush1.bf16.msra.mxu0 0
      %3037 = vmatprep.subr.bf16.mxu0 0
      %3038 = vmatpush1.bf16.msra.mxu0 0
      %3039 = vmatprep.subr.bf16.mxu0 0
      %3040 = vmatpush1.bf16.msra.mxu0 0
      %3041 = vmatprep.subr.bf16.mxu0 0
      %3042 = vmatpush1.bf16.msra.mxu0 0
      %3043 = vmatprep.subr.bf16.mxu0 0
      %3044 = vmatpush1.bf16.msra.mxu0 0
      %3045 = vmatprep.subr.bf16.mxu0 0
      %3046 = vmatpush1.bf16.msra.mxu0 0
      %3047 = vmatprep.subr.bf16.mxu0 0
      %3048 = vmatpush1.bf16.msra.mxu0 0
      %3049 = vmatprep.mubr.bf16.mxu0 0
      %3050 = vmatmul.mubr.bf16.gmra.mrb[0].mxu0 %v2507
      %v3051 = vpop.f32.mrb[0].mxu0
      %v3052 = vadd.f32 %v2988, %v3051
      %v3053 = vpop.f32.mrb[0].mxu0
      %v3054 = vpop.f32.mrb[0].mxu0
      %v3055 = vpop.f32.mrb[0].mxu0
      %3056 = vdwg.mxu0
      %v3061 = vunpack.c.l.b16 %v2964
      %v3062 = vunpack.c.l.b16 %v2965
      %v3063 = vunpack.c.l.b16 %v2966
      %v3064 = vunpack.c.l.b16 %v2967
      %v3065 = vpack.c.b16 %v3062, %v3061
      %v3066 = vpack.c.b16 %v3064, %v3063
      %3069 = vmatprep.subr.bf16.mxu0 0
      %3070 = vmatpush1.bf16.msra.mxu0 %v3065
      %3071 = vmatprep.subr.bf16.mxu0 0
      %3072 = vmatpush1.bf16.msra.mxu0 %v3066
      %3073 = vmatprep.subr.bf16.mxu0 0
      %3074 = vmatpush1.bf16.msra.mxu0 0
      %3075 = vmatprep.subr.bf16.mxu0 0
      %3076 = vmatpush1.bf16.msra.mxu0 0
      %3077 = vmatprep.subr.bf16.mxu0 0
      %3078 = vmatpush1.bf16.msra.mxu0 0
      %3079 = vmatprep.subr.bf16.mxu0 0
      %3080 = vmatpush1.bf16.msra.mxu0 0
      %3081 = vmatprep.subr.bf16.mxu0 0
      %3082 = vmatpush1.bf16.msra.mxu0 0
      %3083 = vmatprep.subr.bf16.mxu0 0
      %3084 = vmatpush1.bf16.msra.mxu0 0
      %3085 = vmatprep.subr.bf16.mxu0 0
      %3086 = vmatpush1.bf16.msra.mxu0 0
      %3087 = vmatprep.subr.bf16.mxu0 0
      %3088 = vmatpush1.bf16.msra.mxu0 0
      %3089 = vmatprep.subr.bf16.mxu0 0
      %3090 = vmatpush1.bf16.msra.mxu0 0
      %3091 = vmatprep.subr.bf16.mxu0 0
      %3092 = vmatpush1.bf16.msra.mxu0 0
      %3093 = vmatprep.subr.bf16.mxu0 0
      %3094 = vmatpush1.bf16.msra.mxu0 0
      %3095 = vmatprep.subr.bf16.mxu0 0
      %3096 = vmatpush1.bf16.msra.mxu0 0
      %3097 = vmatprep.subr.bf16.mxu0 0
      %3098 = vmatpush1.bf16.msra.mxu0 0
      %3099 = vmatprep.subr.bf16.mxu0 0
      %3100 = vmatpush1.bf16.msra.mxu0 0
      %3101 = vmatprep.mubr.bf16.mxu0 0
      %3102 = vmatmul.mubr.bf16.gmra.mrb[0].mxu0 %v2507
      %v3103 = vpop.f32.mrb[0].mxu0
      %v3104 = vadd.f32 %v2992, %v3103
      %v3105 = vpop.f32.mrb[0].mxu0
      %v3106 = vpop.f32.mrb[0].mxu0
      %v3107 = vpop.f32.mrb[0].mxu0
      %3108 = vdwg.mxu0
      %v3113 = vunpack.c.l.b16 %v2968
      %v3114 = vunpack.c.l.b16 %v2969
      %v3115 = vunpack.c.l.b16 %v2970
      %v3116 = vunpack.c.l.b16 %v2971
      %v3117 = vpack.c.b16 %v3114, %v3113
      %v3118 = vpack.c.b16 %v3116, %v3115
      %3121 = vmatprep.subr.bf16.mxu0 0
      %3122 = vmatpush1.bf16.msra.mxu0 %v3117
      %3123 = vmatprep.subr.bf16.mxu0 0
      %3124 = vmatpush1.bf16.msra.mxu0 %v3118
      %3125 = vmatprep.subr.bf16.mxu0 0
      %3126 = vmatpush1.bf16.msra.mxu0 0
      %3127 = vmatprep.subr.bf16.mxu0 0
      %3128 = vmatpush1.bf16.msra.mxu0 0
      %3129 = vmatprep.subr.bf16.mxu0 0
      %3130 = vmatpush1.bf16.msra.mxu0 0
      %3131 = vmatprep.subr.bf16.mxu0 0
      %3132 = vmatpush1.bf16.msra.mxu0 0
      %3133 = vmatprep.subr.bf16.mxu0 0
      %3134 = vmatpush1.bf16.msra.mxu0 0
      %3135 = vmatprep.subr.bf16.mxu0 0
      %3136 = vmatpush1.bf16.msra.mxu0 0
      %3137 = vmatprep.subr.bf16.mxu0 0
      %3138 = vmatpush1.bf16.msra.mxu0 0
      %3139 = vmatprep.subr.bf16.mxu0 0
      %3140 = vmatpush1.bf16.msra.mxu0 0
      %3141 = vmatprep.subr.bf16.mxu0 0
      %3142 = vmatpush1.bf16.msra.mxu0 0
      %3143 = vmatprep.subr.bf16.mxu0 0
      %3144 = vmatpush1.bf16.msra.mxu0 0
      %3145 = vmatprep.subr.bf16.mxu0 0
      %3146 = vmatpush1.bf16.msra.mxu0 0
      %3147 = vmatprep.subr.bf16.mxu0 0
      %3148 = vmatpush1.bf16.msra.mxu0 0
      %3149 = vmatprep.subr.bf16.mxu0 0
      %3150 = vmatpush1.bf16.msra.mxu0 0
      %3151 = vmatprep.subr.bf16.mxu0 0
      %3152 = vmatpush1.bf16.msra.mxu0 0
      %3153 = vmatprep.mubr.bf16.mxu0 0
      %3154 = vmatmul.mubr.bf16.gmra.mrb[0].mxu0 %v2507
      %v3155 = vpop.f32.mrb[0].mxu0
      %v3156 = vadd.f32 %v2996, %v3155
      %v3157 = vpop.f32.mrb[0].mxu0
      %v3158 = vpop.f32.mrb[0].mxu0
      %v3159 = vpop.f32.mrb[0].mxu0
      %3160 = vdwg.mxu0
      %v3165 = vunpack.c.l.b16 %v2972
      %v3166 = vunpack.c.l.b16 %v2973
      %v3167 = vunpack.c.l.b16 %v2974
      %v3168 = vunpack.c.l.b16 %v2975
      %v3169 = vpack.c.b16 %v3166, %v3165
      %v3170 = vpack.c.b16 %v3168, %v3167
      %3173 = vmatprep.subr.bf16.mxu0 0
      %3174 = vmatpush1.bf16.msra.mxu0 %v3169
      %3175 = vmatprep.subr.bf16.mxu0 0
      %3176 = vmatpush1.bf16.msra.mxu0 %v3170
      %3177 = vmatprep.subr.bf16.mxu0 0
      %3178 = vmatpush1.bf16.msra.mxu0 0
      %3179 = vmatprep.subr.bf16.mxu0 0
      %3180 = vmatpush1.bf16.msra.mxu0 0
      %3181 = vmatprep.subr.bf16.mxu0 0
      %3182 = vmatpush1.bf16.msra.mxu0 0
      %3183 = vmatprep.subr.bf16.mxu0 0
      %3184 = vmatpush1.bf16.msra.mxu0 0
      %3185 = vmatprep.subr.bf16.mxu0 0
      %3186 = vmatpush1.bf16.msra.mxu0 0
      %3187 = vmatprep.subr.bf16.mxu0 0
      %3188 = vmatpush1.bf16.msra.mxu0 0
      %3189 = vmatprep.subr.bf16.mxu0 0
      %3190 = vmatpush1.bf16.msra.mxu0 0
      %3191 = vmatprep.subr.bf16.mxu0 0
      %3192 = vmatpush1.bf16.msra.mxu0 0
      %3193 = vmatprep.subr.bf16.mxu0 0
      %3194 = vmatpush1.bf16.msra.mxu0 0
      %3195 = vmatprep.subr.bf16.mxu0 0
      %3196 = vmatpush1.bf16.msra.mxu0 0
      %3197 = vmatprep.subr.bf16.mxu0 0
      %3198 = vmatpush1.bf16.msra.mxu0 0
      %3199 = vmatprep.subr.bf16.mxu0 0
      %3200 = vmatpush1.bf16.msra.mxu0 0
      %3201 = vmatprep.subr.bf16.mxu0 0
      %3202 = vmatpush1.bf16.msra.mxu0 0
      %3203 = vmatprep.subr.bf16.mxu0 0
      %3204 = vmatpush1.bf16.msra.mxu0 0
      %3205 = vmatprep.mubr.bf16.mxu0 0
      %3206 = vmatmul.mubr.bf16.gmra.mrb[0].mxu0 %v2507
      %v3207 = vpop.f32.mrb[0].mxu0
      %v3208 = vadd.f32 %v3000, %v3207
      %v3209 = vpop.f32.mrb[0].mxu0
      %v3210 = vpop.f32.mrb[0].mxu0
      %v3211 = vpop.f32.mrb[0].mxu0
      %3212 = vdwg.mxu0
      %v3213 = vpack.c.bf16 %v2544, %v2544
      %v3214 = vpack.c.bf16 %v2596, %v2596
      %v3215 = vpack.c.bf16 %v2648, %v2648
      %v3216 = vpack.c.bf16 %v2700, %v2700
      %v3217 = vpack.c.bf16 %v2798, %v2798
      %v3218 = vpack.c.bf16 %v2850, %v2850
      %v3219 = vpack.c.bf16 %v2902, %v2902
      %v3220 = vpack.c.bf16 %v2954, %v2954
      %v3222 = vsel %vm1615, %v3213, 0
      %v3225 = vsel %vm1615, %v3217, 0
      %3227 = vmatprep.subr.bf16.mxu0 0
      %3228 = vmatpush1.bf16.xpose.msra.mxu0 %v3225
      %3229 = vmatprep.subr.bf16.mxu0 0
      %3230 = vmatpush1.bf16.xpose.msra.mxu0 0
      %3231 = vmatprep.subr.bf16.mxu0 0
      %3232 = vmatpush1.bf16.xpose.msra.mxu0 0
      %3233 = vmatprep.subr.bf16.mxu0 0
      %3234 = vmatpush1.bf16.xpose.msra.mxu0 0
      %3235 = vmatprep.subr.bf16.mxu0 0
      %3236 = vmatpush1.bf16.xpose.msra.mxu0 0
      %3237 = vmatprep.subr.bf16.mxu0 0
      %3238 = vmatpush1.bf16.xpose.msra.mxu0 0
      %3239 = vmatprep.subr.bf16.mxu0 0
      %3240 = vmatpush1.bf16.xpose.msra.mxu0 0
      %3241 = vmatprep.subr.bf16.mxu0 0
      %3242 = vmatpush1.bf16.xpose.msra.mxu0 0
      %3243 = vmatprep.subr.bf16.mxu0 0
      %3244 = vmatpush1.bf16.xpose.msra.mxu0 0
      %3245 = vmatprep.subr.bf16.mxu0 0
      %3246 = vmatpush1.bf16.xpose.msra.mxu0 0
      %3247 = vmatprep.subr.bf16.mxu0 0
      %3248 = vmatpush1.bf16.xpose.msra.mxu0 0
      %3249 = vmatprep.subr.bf16.mxu0 0
      %3250 = vmatpush1.bf16.xpose.msra.mxu0 0
      %3251 = vmatprep.subr.bf16.mxu0 0
      %3252 = vmatpush1.bf16.xpose.msra.mxu0 0
      %3253 = vmatprep.subr.bf16.mxu0 0
      %3254 = vmatpush1.bf16.xpose.msra.mxu0 0
      %3255 = vmatprep.subr.bf16.mxu0 0
      %3256 = vmatpush1.bf16.xpose.msra.mxu0 0
      %3257 = vmatprep.subr.bf16.mxu0 0
      %3258 = vmatpush1.bf16.xpose.msra.mxu0 0
      %3259 = vmatprep.mubr.bf16.mxu0 0
      %3260 = vmatmul.mubr.bf16.gmra.mrb[0].mxu0 %v3222
      %v3261 = vpop.f32.mrb[0].mxu0
      %v3262 = vadd.f32 0.0, %v3261
      %v3263 = vpop.f32.mrb[0].mxu0
      %v3264 = vpop.f32.mrb[0].mxu0
      %v3265 = vpop.f32.mrb[0].mxu0
      %3266 = vdwg.mxu0
      %v3268 = vsel %vm1615, %v3214, 0
      %v3271 = vsel %vm1615, %v3218, 0
      %3273 = vmatprep.subr.bf16.mxu0 0
      %3274 = vmatpush1.bf16.xpose.msra.mxu0 %v3271
      %3275 = vmatprep.subr.bf16.mxu0 0
      %3276 = vmatpush1.bf16.xpose.msra.mxu0 0
      %3277 = vmatprep.subr.bf16.mxu0 0
      %3278 = vmatpush1.bf16.xpose.msra.mxu0 0
      %3279 = vmatprep.subr.bf16.mxu0 0
      %3280 = vmatpush1.bf16.xpose.msra.mxu0 0
      %3281 = vmatprep.subr.bf16.mxu0 0
      %3282 = vmatpush1.bf16.xpose.msra.mxu0 0
      %3283 = vmatprep.subr.bf16.mxu0 0
      %3284 = vmatpush1.bf16.xpose.msra.mxu0 0
      %3285 = vmatprep.subr.bf16.mxu0 0
      %3286 = vmatpush1.bf16.xpose.msra.mxu0 0
      %3287 = vmatprep.subr.bf16.mxu0 0
      %3288 = vmatpush1.bf16.xpose.msra.mxu0 0
      %3289 = vmatprep.subr.bf16.mxu0 0
      %3290 = vmatpush1.bf16.xpose.msra.mxu0 0
      %3291 = vmatprep.subr.bf16.mxu0 0
      %3292 = vmatpush1.bf16.xpose.msra.mxu0 0
      %3293 = vmatprep.subr.bf16.mxu0 0
      %3294 = vmatpush1.bf16.xpose.msra.mxu0 0
      %3295 = vmatprep.subr.bf16.mxu0 0
      %3296 = vmatpush1.bf16.xpose.msra.mxu0 0
      %3297 = vmatprep.subr.bf16.mxu0 0
      %3298 = vmatpush1.bf16.xpose.msra.mxu0 0
      %3299 = vmatprep.subr.bf16.mxu0 0
      %3300 = vmatpush1.bf16.xpose.msra.mxu0 0
      %3301 = vmatprep.subr.bf16.mxu0 0
      %3302 = vmatpush1.bf16.xpose.msra.mxu0 0
      %3303 = vmatprep.subr.bf16.mxu0 0
      %3304 = vmatpush1.bf16.xpose.msra.mxu0 0
      %3305 = vmatprep.mubr.bf16.mxu0 0
      %3306 = vmatmul.mubr.bf16.gmra.mrb[0].mxu0 %v3268
      %v3307 = vpop.f32.mrb[0].mxu0
      %v3308 = vadd.f32 0.0, %v3307
      %v3309 = vpop.f32.mrb[0].mxu0
      %v3310 = vpop.f32.mrb[0].mxu0
      %v3311 = vpop.f32.mrb[0].mxu0
      %3312 = vdwg.mxu0
      %v3314 = vsel %vm1615, %v3215, 0
      %v3317 = vsel %vm1615, %v3219, 0
      %3319 = vmatprep.subr.bf16.mxu0 0
      %3320 = vmatpush1.bf16.xpose.msra.mxu0 %v3317
      %3321 = vmatprep.subr.bf16.mxu0 0
      %3322 = vmatpush1.bf16.xpose.msra.mxu0 0
      %3323 = vmatprep.subr.bf16.mxu0 0
      %3324 = vmatpush1.bf16.xpose.msra.mxu0 0
      %3325 = vmatprep.subr.bf16.mxu0 0
      %3326 = vmatpush1.bf16.xpose.msra.mxu0 0
      %3327 = vmatprep.subr.bf16.mxu0 0
      %3328 = vmatpush1.bf16.xpose.msra.mxu0 0
      %3329 = vmatprep.subr.bf16.mxu0 0
      %3330 = vmatpush1.bf16.xpose.msra.mxu0 0
      %3331 = vmatprep.subr.bf16.mxu0 0
      %3332 = vmatpush1.bf16.xpose.msra.mxu0 0
      %3333 = vmatprep.subr.bf16.mxu0 0
      %3334 = vmatpush1.bf16.xpose.msra.mxu0 0
      %3335 = vmatprep.subr.bf16.mxu0 0
      %3336 = vmatpush1.bf16.xpose.msra.mxu0 0
      %3337 = vmatprep.subr.bf16.mxu0 0
      %3338 = vmatpush1.bf16.xpose.msra.mxu0 0
      %3339 = vmatprep.subr.bf16.mxu0 0
      %3340 = vmatpush1.bf16.xpose.msra.mxu0 0
      %3341 = vmatprep.subr.bf16.mxu0 0
      %3342 = vmatpush1.bf16.xpose.msra.mxu0 0
      %3343 = vmatprep.subr.bf16.mxu0 0
      %3344 = vmatpush1.bf16.xpose.msra.mxu0 0
      %3345 = vmatprep.subr.bf16.mxu0 0
      %3346 = vmatpush1.bf16.xpose.msra.mxu0 0
      %3347 = vmatprep.subr.bf16.mxu0 0
      %3348 = vmatpush1.bf16.xpose.msra.mxu0 0
      %3349 = vmatprep.subr.bf16.mxu0 0
      %3350 = vmatpush1.bf16.xpose.msra.mxu0 0
      %3351 = vmatprep.mubr.bf16.mxu0 0
      %3352 = vmatmul.mubr.bf16.gmra.mrb[0].mxu0 %v3314
      %v3353 = vpop.f32.mrb[0].mxu0
      %v3354 = vadd.f32 0.0, %v3353
      %v3355 = vpop.f32.mrb[0].mxu0
      %v3356 = vpop.f32.mrb[0].mxu0
      %v3357 = vpop.f32.mrb[0].mxu0
      %3358 = vdwg.mxu0
      %v3360 = vsel %vm1615, %v3216, 0
      %v3363 = vsel %vm1615, %v3220, 0
      %3365 = vmatprep.subr.bf16.mxu0 0
      %3366 = vmatpush1.bf16.xpose.msra.mxu0 %v3363
      %3367 = vmatprep.subr.bf16.mxu0 0
      %3368 = vmatpush1.bf16.xpose.msra.mxu0 0
      %3369 = vmatprep.subr.bf16.mxu0 0
      %3370 = vmatpush1.bf16.xpose.msra.mxu0 0
      %3371 = vmatprep.subr.bf16.mxu0 0
      %3372 = vmatpush1.bf16.xpose.msra.mxu0 0
      %3373 = vmatprep.subr.bf16.mxu0 0
      %3374 = vmatpush1.bf16.xpose.msra.mxu0 0
      %3375 = vmatprep.subr.bf16.mxu0 0
      %3376 = vmatpush1.bf16.xpose.msra.mxu0 0
      %3377 = vmatprep.subr.bf16.mxu0 0
      %3378 = vmatpush1.bf16.xpose.msra.mxu0 0
      %3379 = vmatprep.subr.bf16.mxu0 0
      %3380 = vmatpush1.bf16.xpose.msra.mxu0 0
      %3381 = vmatprep.subr.bf16.mxu0 0
      %3382 = vmatpush1.bf16.xpose.msra.mxu0 0
      %3383 = vmatprep.subr.bf16.mxu0 0
      %3384 = vmatpush1.bf16.xpose.msra.mxu0 0
      %3385 = vmatprep.subr.bf16.mxu0 0
      %3386 = vmatpush1.bf16.xpose.msra.mxu0 0
      %3387 = vmatprep.subr.bf16.mxu0 0
      %3388 = vmatpush1.bf16.xpose.msra.mxu0 0
      %3389 = vmatprep.subr.bf16.mxu0 0
      %3390 = vmatpush1.bf16.xpose.msra.mxu0 0
      %3391 = vmatprep.subr.bf16.mxu0 0
      %3392 = vmatpush1.bf16.xpose.msra.mxu0 0
      %3393 = vmatprep.subr.bf16.mxu0 0
      %3394 = vmatpush1.bf16.xpose.msra.mxu0 0
      %3395 = vmatprep.subr.bf16.mxu0 0
      %3396 = vmatpush1.bf16.xpose.msra.mxu0 0
      %3397 = vmatprep.mubr.bf16.mxu0 0
      %3398 = vmatmul.mubr.bf16.gmra.mrb[0].mxu0 %v3360
      %v3399 = vpop.f32.mrb[0].mxu0
      %v3400 = vadd.f32 0.0, %v3399
      %v3401 = vpop.f32.mrb[0].mxu0
      %v3402 = vpop.f32.mrb[0].mxu0
      %v3403 = vpop.f32.mrb[0].mxu0
      %3404 = vdwg.mxu0
      %v3405 = vsel %vm1615, %v3262, -inf
      %3406 = vmax.xlane.f32.xlu0 %v3405
      %v3407 = vpop.xlane.xlu0 %3406
      %v3408 = vsel %vm1615, %v3308, -inf
      %3409 = vmax.xlane.f32.xlu0 %v3408
      %v3410 = vpop.xlane.xlu0 %3409
      %v3411 = vsel %vm1615, %v3354, -inf
      %3412 = vmax.xlane.f32.xlu0 %v3411
      %v3413 = vpop.xlane.xlu0 %3412
      %v3414 = vsel %vm1615, %v3400, -inf
      %3415 = vmax.xlane.f32.xlu0 %v3414
      %v3416 = vpop.xlane.xlu0 %3415
      %v3417 = vsub.f32 %v3262, %v3407
      %v3418 = vsub.f32 %v3308, %v3410
      %v3419 = vsub.f32 %v3354, %v3413
      %v3420 = vsub.f32 %v3400, %v3416
      %v3421 = vmul.f32 %v3417, 1.442695
      %v3422 = vpow.pop %v3421
      %v3423 = vmul.f32 %v3418, 1.442695
      %v3424 = vpow.pop %v3423
      %v3425 = vmul.f32 %v3419, 1.442695
      %v3426 = vpow.pop %v3425
      %v3427 = vmul.f32 %v3420, 1.442695
      %v3428 = vpow.pop %v3427
      %v3429 = vsel %vm1615, %v3422, 0.0
      %3430 = vadd.xlane.f32.xlu0 %v3429
      %v3431 = vpop.xlane.xlu0 %3430
      %v3432 = vsel %vm1615, %v3424, 0.0
      %3433 = vadd.xlane.f32.xlu0 %v3432
      %v3434 = vpop.xlane.xlu0 %3433
      %v3435 = vsel %vm1615, %v3426, 0.0
      %3436 = vadd.xlane.f32.xlu0 %v3435
      %v3437 = vpop.xlane.xlu0 %3436
      %v3438 = vsel %vm1615, %v3428, 0.0
      %3439 = vadd.xlane.f32.xlu0 %v3438
      %v3440 = vpop.xlane.xlu0 %3439
      %v3441 = vrcp.pop %v3431
      %v3442 = vrcp.pop %v3434
      %v3443 = vrcp.pop %v3437
      %v3444 = vrcp.pop %v3440
      %v3445 = vmul.f32 %v3422, %v3441
      %v3446 = vmul.f32 %v3424, %v3442
      %v3447 = vmul.f32 %v3426, %v3443
      %v3448 = vmul.f32 %v3428, %v3444
      %v3449 = vpack.c.bf16 %v3445, %v3445
      %v3450 = vpack.c.bf16 %v3446, %v3446
      %v3451 = vpack.c.bf16 %v3447, %v3447
      %v3452 = vpack.c.bf16 %v3448, %v3448
      %v3453 = vpack.c.bf16 %v3052, %v3052
      %v3454 = vpack.c.bf16 %v3104, %v3104
      %v3455 = vpack.c.bf16 %v3156, %v3156
      %v3456 = vpack.c.bf16 %v3208, %v3208
      %v3458 = vsel %vm1615, %v3449, 0
      %v3461 = vsel %vm1855, %v3453, 0
      %3463 = vmatprep.subr.bf16.mxu0 0
      %3464 = vmatpush1.bf16.msra.mxu0 %v3461
      %3465 = vmatprep.subr.bf16.mxu0 0
      %3466 = vmatpush1.bf16.msra.mxu0 0
      %3467 = vmatprep.subr.bf16.mxu0 0
      %3468 = vmatpush1.bf16.msra.mxu0 0
      %3469 = vmatprep.subr.bf16.mxu0 0
      %3470 = vmatpush1.bf16.msra.mxu0 0
      %3471 = vmatprep.subr.bf16.mxu0 0
      %3472 = vmatpush1.bf16.msra.mxu0 0
      %3473 = vmatprep.subr.bf16.mxu0 0
      %3474 = vmatpush1.bf16.msra.mxu0 0
      %3475 = vmatprep.subr.bf16.mxu0 0
      %3476 = vmatpush1.bf16.msra.mxu0 0
      %3477 = vmatprep.subr.bf16.mxu0 0
      %3478 = vmatpush1.bf16.msra.mxu0 0
      %3479 = vmatprep.subr.bf16.mxu0 0
      %3480 = vmatpush1.bf16.msra.mxu0 0
      %3481 = vmatprep.subr.bf16.mxu0 0
      %3482 = vmatpush1.bf16.msra.mxu0 0
      %3483 = vmatprep.subr.bf16.mxu0 0
      %3484 = vmatpush1.bf16.msra.mxu0 0
      %3485 = vmatprep.subr.bf16.mxu0 0
      %3486 = vmatpush1.bf16.msra.mxu0 0
      %3487 = vmatprep.subr.bf16.mxu0 0
      %3488 = vmatpush1.bf16.msra.mxu0 0
      %3489 = vmatprep.subr.bf16.mxu0 0
      %3490 = vmatpush1.bf16.msra.mxu0 0
      %3491 = vmatprep.subr.bf16.mxu0 0
      %3492 = vmatpush1.bf16.msra.mxu0 0
      %3493 = vmatprep.subr.bf16.mxu0 0
      %3494 = vmatpush1.bf16.msra.mxu0 0
      %3495 = vmatprep.mubr.bf16.mxu0 0
      %3496 = vmatmul.mubr.bf16.gmra.mrb[0].mxu0 %v3458
      %v3497 = vpop.f32.mrb[0].mxu0
      %v3498 = vadd.f32 0.0, %v3497
      %v3499 = vpop.f32.mrb[0].mxu0
      %v3500 = vpop.f32.mrb[0].mxu0
      %v3501 = vpop.f32.mrb[0].mxu0
      %3502 = vdwg.mxu0
      %v3504 = vsel %vm1615, %v3450, 0
      %v3507 = vsel %vm1855, %v3454, 0
      %3509 = vmatprep.subr.bf16.mxu0 0
      %3510 = vmatpush1.bf16.msra.mxu0 %v3507
      %3511 = vmatprep.subr.bf16.mxu0 0
      %3512 = vmatpush1.bf16.msra.mxu0 0
      %3513 = vmatprep.subr.bf16.mxu0 0
      %3514 = vmatpush1.bf16.msra.mxu0 0
      %3515 = vmatprep.subr.bf16.mxu0 0
      %3516 = vmatpush1.bf16.msra.mxu0 0
      %3517 = vmatprep.subr.bf16.mxu0 0
      %3518 = vmatpush1.bf16.msra.mxu0 0
      %3519 = vmatprep.subr.bf16.mxu0 0
      %3520 = vmatpush1.bf16.msra.mxu0 0
      %3521 = vmatprep.subr.bf16.mxu0 0
      %3522 = vmatpush1.bf16.msra.mxu0 0
      %3523 = vmatprep.subr.bf16.mxu0 0
      %3524 = vmatpush1.bf16.msra.mxu0 0
      %3525 = vmatprep.subr.bf16.mxu0 0
      %3526 = vmatpush1.bf16.msra.mxu0 0
      %3527 = vmatprep.subr.bf16.mxu0 0
      %3528 = vmatpush1.bf16.msra.mxu0 0
      %3529 = vmatprep.subr.bf16.mxu0 0
      %3530 = vmatpush1.bf16.msra.mxu0 0
      %3531 = vmatprep.subr.bf16.mxu0 0
      %3532 = vmatpush1.bf16.msra.mxu0 0
      %3533 = vmatprep.subr.bf16.mxu0 0
      %3534 = vmatpush1.bf16.msra.mxu0 0
      %3535 = vmatprep.subr.bf16.mxu0 0
      %3536 = vmatpush1.bf16.msra.mxu0 0
      %3537 = vmatprep.subr.bf16.mxu0 0
      %3538 = vmatpush1.bf16.msra.mxu0 0
      %3539 = vmatprep.subr.bf16.mxu0 0
      %3540 = vmatpush1.bf16.msra.mxu0 0
      %3541 = vmatprep.mubr.bf16.mxu0 0
      %3542 = vmatmul.mubr.bf16.gmra.mrb[0].mxu0 %v3504
      %v3543 = vpop.f32.mrb[0].mxu0
      %v3544 = vadd.f32 0.0, %v3543
      %v3545 = vpop.f32.mrb[0].mxu0
      %v3546 = vpop.f32.mrb[0].mxu0
      %v3547 = vpop.f32.mrb[0].mxu0
      %3548 = vdwg.mxu0
      %v3550 = vsel %vm1615, %v3451, 0
      %v3553 = vsel %vm1855, %v3455, 0
      %3555 = vmatprep.subr.bf16.mxu0 0
      %3556 = vmatpush1.bf16.msra.mxu0 %v3553
      %3557 = vmatprep.subr.bf16.mxu0 0
      %3558 = vmatpush1.bf16.msra.mxu0 0
      %3559 = vmatprep.subr.bf16.mxu0 0
      %3560 = vmatpush1.bf16.msra.mxu0 0
      %3561 = vmatprep.subr.bf16.mxu0 0
      %3562 = vmatpush1.bf16.msra.mxu0 0
      %3563 = vmatprep.subr.bf16.mxu0 0
      %3564 = vmatpush1.bf16.msra.mxu0 0
      %3565 = vmatprep.subr.bf16.mxu0 0
      %3566 = vmatpush1.bf16.msra.mxu0 0
      %3567 = vmatprep.subr.bf16.mxu0 0
      %3568 = vmatpush1.bf16.msra.mxu0 0
      %3569 = vmatprep.subr.bf16.mxu0 0
      %3570 = vmatpush1.bf16.msra.mxu0 0
      %3571 = vmatprep.subr.bf16.mxu0 0
      %3572 = vmatpush1.bf16.msra.mxu0 0
      %3573 = vmatprep.subr.bf16.mxu0 0
      %3574 = vmatpush1.bf16.msra.mxu0 0
      %3575 = vmatprep.subr.bf16.mxu0 0
      %3576 = vmatpush1.bf16.msra.mxu0 0
      %3577 = vmatprep.subr.bf16.mxu0 0
      %3578 = vmatpush1.bf16.msra.mxu0 0
      %3579 = vmatprep.subr.bf16.mxu0 0
      %3580 = vmatpush1.bf16.msra.mxu0 0
      %3581 = vmatprep.subr.bf16.mxu0 0
      %3582 = vmatpush1.bf16.msra.mxu0 0
      %3583 = vmatprep.subr.bf16.mxu0 0
      %3584 = vmatpush1.bf16.msra.mxu0 0
      %3585 = vmatprep.subr.bf16.mxu0 0
      %3586 = vmatpush1.bf16.msra.mxu0 0
      %3587 = vmatprep.mubr.bf16.mxu0 0
      %3588 = vmatmul.mubr.bf16.gmra.mrb[0].mxu0 %v3550
      %v3589 = vpop.f32.mrb[0].mxu0
      %v3590 = vadd.f32 0.0, %v3589
      %v3591 = vpop.f32.mrb[0].mxu0
      %v3592 = vpop.f32.mrb[0].mxu0
      %v3593 = vpop.f32.mrb[0].mxu0
      %3594 = vdwg.mxu0
      %v3596 = vsel %vm1615, %v3452, 0
      %v3599 = vsel %vm1855, %v3456, 0
      %3601 = vmatprep.subr.bf16.mxu0 0
      %3602 = vmatpush1.bf16.msra.mxu0 %v3599
      %3603 = vmatprep.subr.bf16.mxu0 0
      %3604 = vmatpush1.bf16.msra.mxu0 0
      %3605 = vmatprep.subr.bf16.mxu0 0
      %3606 = vmatpush1.bf16.msra.mxu0 0
      %3607 = vmatprep.subr.bf16.mxu0 0
      %3608 = vmatpush1.bf16.msra.mxu0 0
      %3609 = vmatprep.subr.bf16.mxu0 0
      %3610 = vmatpush1.bf16.msra.mxu0 0
      %3611 = vmatprep.subr.bf16.mxu0 0
      %3612 = vmatpush1.bf16.msra.mxu0 0
      %3613 = vmatprep.subr.bf16.mxu0 0
      %3614 = vmatpush1.bf16.msra.mxu0 0
      %3615 = vmatprep.subr.bf16.mxu0 0
      %3616 = vmatpush1.bf16.msra.mxu0 0
      %3617 = vmatprep.subr.bf16.mxu0 0
      %3618 = vmatpush1.bf16.msra.mxu0 0
      %3619 = vmatprep.subr.bf16.mxu0 0
      %3620 = vmatpush1.bf16.msra.mxu0 0
      %3621 = vmatprep.subr.bf16.mxu0 0
      %3622 = vmatpush1.bf16.msra.mxu0 0
      %3623 = vmatprep.subr.bf16.mxu0 0
      %3624 = vmatpush1.bf16.msra.mxu0 0
      %3625 = vmatprep.subr.bf16.mxu0 0
      %3626 = vmatpush1.bf16.msra.mxu0 0
      %3627 = vmatprep.subr.bf16.mxu0 0
      %3628 = vmatpush1.bf16.msra.mxu0 0
      %3629 = vmatprep.subr.bf16.mxu0 0
      %3630 = vmatpush1.bf16.msra.mxu0 0
      %3631 = vmatprep.subr.bf16.mxu0 0
      %3632 = vmatpush1.bf16.msra.mxu0 0
      %3633 = vmatprep.mubr.bf16.mxu0 0
      %3634 = vmatmul.mubr.bf16.gmra.mrb[0].mxu0 %v3596
      %v3635 = vpop.f32.mrb[0].mxu0
      %v3636 = vadd.f32 0.0, %v3635
      %v3637 = vpop.f32.mrb[0].mxu0
      %v3638 = vpop.f32.mrb[0].mxu0
      %v3639 = vpop.f32.mrb[0].mxu0
      %3640 = vdwg.mxu0
      %v3641 = vpack.c.bf16 %v3498, %v3498
      %v3642 = vpack.c.bf16 %v3544, %v3544
      %v3643 = vpack.c.bf16 %v3590, %v3590
      %v3644 = vpack.c.bf16 %v3636, %v3636
      %s3645 = scalar_lea.vmem %s9, 16
      %v3646 = vld [vmem:[%s3645] sm:$0xf]
      %v3647 = vld [vmem:[%s3645 + $0x4] sm:$0xf]
      %v3648 = vld [vmem:[%s3645 + $0x8] sm:$0xf]
      %v3649 = vld [vmem:[%s3645 + $0xc] sm:$0xf]
      %v3651 = vsel %vm1615, %v3641, 0
      %v3654 = vsel %vm1855, %v3646, 0
      %3656 = vmatprep.subr.bf16.mxu0 0
      %3657 = vmatpush1.bf16.msra.mxu0 %v3654
      %3658 = vmatprep.subr.bf16.mxu0 0
      %3659 = vmatpush1.bf16.msra.mxu0 0
      %3660 = vmatprep.subr.bf16.mxu0 0
      %3661 = vmatpush1.bf16.msra.mxu0 0
      %3662 = vmatprep.subr.bf16.mxu0 0
      %3663 = vmatpush1.bf16.msra.mxu0 0
      %3664 = vmatprep.subr.bf16.mxu0 0
      %3665 = vmatpush1.bf16.msra.mxu0 0
      %3666 = vmatprep.subr.bf16.mxu0 0
      %3667 = vmatpush1.bf16.msra.mxu0 0
      %3668 = vmatprep.subr.bf16.mxu0 0
      %3669 = vmatpush1.bf16.msra.mxu0 0
      %3670 = vmatprep.subr.bf16.mxu0 0
      %3671 = vmatpush1.bf16.msra.mxu0 0
      %3672 = vmatprep.subr.bf16.mxu0 0
      %3673 = vmatpush1.bf16.msra.mxu0 0
      %3674 = vmatprep.subr.bf16.mxu0 0
      %3675 = vmatpush1.bf16.msra.mxu0 0
      %3676 = vmatprep.subr.bf16.mxu0 0
      %3677 = vmatpush1.bf16.msra.mxu0 0
      %3678 = vmatprep.subr.bf16.mxu0 0
      %3679 = vmatpush1.bf16.msra.mxu0 0
      %3680 = vmatprep.subr.bf16.mxu0 0
      %3681 = vmatpush1.bf16.msra.mxu0 0
      %3682 = vmatprep.subr.bf16.mxu0 0
      %3683 = vmatpush1.bf16.msra.mxu0 0
      %3684 = vmatprep.subr.bf16.mxu0 0
      %3685 = vmatpush1.bf16.msra.mxu0 0
      %3686 = vmatprep.subr.bf16.mxu0 0
      %3687 = vmatpush1.bf16.msra.mxu0 0
      %3688 = vmatprep.mubr.bf16.mxu0 0
      %3689 = vmatmul.mubr.bf16.gmra.mrb[0].mxu0 %v3651
      %v3690 = vpop.f32.mrb[0].mxu0
      %v3691 = vadd.f32 0.0, %v3690
      %v3692 = vpop.f32.mrb[0].mxu0
      %v3693 = vpop.f32.mrb[0].mxu0
      %v3694 = vpop.f32.mrb[0].mxu0
      %3695 = vdwg.mxu0
      %v3697 = vsel %vm1615, %v3642, 0
      %v3700 = vsel %vm1855, %v3647, 0
      %3702 = vmatprep.subr.bf16.mxu0 0
      %3703 = vmatpush1.bf16.msra.mxu0 %v3700
      %3704 = vmatprep.subr.bf16.mxu0 0
      %3705 = vmatpush1.bf16.msra.mxu0 0
      %3706 = vmatprep.subr.bf16.mxu0 0
      %3707 = vmatpush1.bf16.msra.mxu0 0
      %3708 = vmatprep.subr.bf16.mxu0 0
      %3709 = vmatpush1.bf16.msra.mxu0 0
      %3710 = vmatprep.subr.bf16.mxu0 0
      %3711 = vmatpush1.bf16.msra.mxu0 0
      %3712 = vmatprep.subr.bf16.mxu0 0
      %3713 = vmatpush1.bf16.msra.mxu0 0
      %3714 = vmatprep.subr.bf16.mxu0 0
      %3715 = vmatpush1.bf16.msra.mxu0 0
      %3716 = vmatprep.subr.bf16.mxu0 0
      %3717 = vmatpush1.bf16.msra.mxu0 0
      %3718 = vmatprep.subr.bf16.mxu0 0
      %3719 = vmatpush1.bf16.msra.mxu0 0
      %3720 = vmatprep.subr.bf16.mxu0 0
      %3721 = vmatpush1.bf16.msra.mxu0 0
      %3722 = vmatprep.subr.bf16.mxu0 0
      %3723 = vmatpush1.bf16.msra.mxu0 0
      %3724 = vmatprep.subr.bf16.mxu0 0
      %3725 = vmatpush1.bf16.msra.mxu0 0
      %3726 = vmatprep.subr.bf16.mxu0 0
      %3727 = vmatpush1.bf16.msra.mxu0 0
      %3728 = vmatprep.subr.bf16.mxu0 0
      %3729 = vmatpush1.bf16.msra.mxu0 0
      %3730 = vmatprep.subr.bf16.mxu0 0
      %3731 = vmatpush1.bf16.msra.mxu0 0
      %3732 = vmatprep.subr.bf16.mxu0 0
      %3733 = vmatpush1.bf16.msra.mxu0 0
      %3734 = vmatprep.mubr.bf16.mxu0 0
      %3735 = vmatmul.mubr.bf16.gmra.mrb[0].mxu0 %v3697
      %v3736 = vpop.f32.mrb[0].mxu0
      %v3737 = vadd.f32 0.0, %v3736
      %v3738 = vpop.f32.mrb[0].mxu0
      %v3739 = vpop.f32.mrb[0].mxu0
      %v3740 = vpop.f32.mrb[0].mxu0
      %3741 = vdwg.mxu0
      %v3743 = vsel %vm1615, %v3643, 0
      %v3746 = vsel %vm1855, %v3648, 0
      %3748 = vmatprep.subr.bf16.mxu0 0
      %3749 = vmatpush1.bf16.msra.mxu0 %v3746
      %3750 = vmatprep.subr.bf16.mxu0 0
      %3751 = vmatpush1.bf16.msra.mxu0 0
      %3752 = vmatprep.subr.bf16.mxu0 0
      %3753 = vmatpush1.bf16.msra.mxu0 0
      %3754 = vmatprep.subr.bf16.mxu0 0
      %3755 = vmatpush1.bf16.msra.mxu0 0
      %3756 = vmatprep.subr.bf16.mxu0 0
      %3757 = vmatpush1.bf16.msra.mxu0 0
      %3758 = vmatprep.subr.bf16.mxu0 0
      %3759 = vmatpush1.bf16.msra.mxu0 0
      %3760 = vmatprep.subr.bf16.mxu0 0
      %3761 = vmatpush1.bf16.msra.mxu0 0
      %3762 = vmatprep.subr.bf16.mxu0 0
      %3763 = vmatpush1.bf16.msra.mxu0 0
      %3764 = vmatprep.subr.bf16.mxu0 0
      %3765 = vmatpush1.bf16.msra.mxu0 0
      %3766 = vmatprep.subr.bf16.mxu0 0
      %3767 = vmatpush1.bf16.msra.mxu0 0
      %3768 = vmatprep.subr.bf16.mxu0 0
      %3769 = vmatpush1.bf16.msra.mxu0 0
      %3770 = vmatprep.subr.bf16.mxu0 0
      %3771 = vmatpush1.bf16.msra.mxu0 0
      %3772 = vmatprep.subr.bf16.mxu0 0
      %3773 = vmatpush1.bf16.msra.mxu0 0
      %3774 = vmatprep.subr.bf16.mxu0 0
      %3775 = vmatpush1.bf16.msra.mxu0 0
      %3776 = vmatprep.subr.bf16.mxu0 0
      %3777 = vmatpush1.bf16.msra.mxu0 0
      %3778 = vmatprep.subr.bf16.mxu0 0
      %3779 = vmatpush1.bf16.msra.mxu0 0
      %3780 = vmatprep.mubr.bf16.mxu0 0
      %3781 = vmatmul.mubr.bf16.gmra.mrb[0].mxu0 %v3743
      %v3782 = vpop.f32.mrb[0].mxu0
      %v3783 = vadd.f32 0.0, %v3782
      %v3784 = vpop.f32.mrb[0].mxu0
      %v3785 = vpop.f32.mrb[0].mxu0
      %v3786 = vpop.f32.mrb[0].mxu0
      %3787 = vdwg.mxu0
      %v3789 = vsel %vm1615, %v3644, 0
      %v3792 = vsel %vm1855, %v3649, 0
      %3794 = vmatprep.subr.bf16.mxu0 0
      %3795 = vmatpush1.bf16.msra.mxu0 %v3792
      %3796 = vmatprep.subr.bf16.mxu0 0
      %3797 = vmatpush1.bf16.msra.mxu0 0
      %3798 = vmatprep.subr.bf16.mxu0 0
      %3799 = vmatpush1.bf16.msra.mxu0 0
      %3800 = vmatprep.subr.bf16.mxu0 0
      %3801 = vmatpush1.bf16.msra.mxu0 0
      %3802 = vmatprep.subr.bf16.mxu0 0
      %3803 = vmatpush1.bf16.msra.mxu0 0
      %3804 = vmatprep.subr.bf16.mxu0 0
      %3805 = vmatpush1.bf16.msra.mxu0 0
      %3806 = vmatprep.subr.bf16.mxu0 0
      %3807 = vmatpush1.bf16.msra.mxu0 0
      %3808 = vmatprep.subr.bf16.mxu0 0
      %3809 = vmatpush1.bf16.msra.mxu0 0
      %3810 = vmatprep.subr.bf16.mxu0 0
      %3811 = vmatpush1.bf16.msra.mxu0 0
      %3812 = vmatprep.subr.bf16.mxu0 0
      %3813 = vmatpush1.bf16.msra.mxu0 0
      %3814 = vmatprep.subr.bf16.mxu0 0
      %3815 = vmatpush1.bf16.msra.mxu0 0
      %3816 = vmatprep.subr.bf16.mxu0 0
      %3817 = vmatpush1.bf16.msra.mxu0 0
      %3818 = vmatprep.subr.bf16.mxu0 0
      %3819 = vmatpush1.bf16.msra.mxu0 0
      %3820 = vmatprep.subr.bf16.mxu0 0
      %3821 = vmatpush1.bf16.msra.mxu0 0
      %3822 = vmatprep.subr.bf16.mxu0 0
      %3823 = vmatpush1.bf16.msra.mxu0 0
      %3824 = vmatprep.subr.bf16.mxu0 0
      %3825 = vmatpush1.bf16.msra.mxu0 0
      %3826 = vmatprep.mubr.bf16.mxu0 0
      %3827 = vmatmul.mubr.bf16.gmra.mrb[0].mxu0 %v3789
      %v3828 = vpop.f32.mrb[0].mxu0
      %v3829 = vadd.f32 0.0, %v3828
      %v3830 = vpop.f32.mrb[0].mxu0
      %v3831 = vpop.f32.mrb[0].mxu0
      %v3832 = vpop.f32.mrb[0].mxu0
      %3833 = vdwg.mxu0
      %v3834 = vsel %vm903, %v3691, 0.0
      %v3835 = vsel %vm903, %v3737, 0.0
      %v3836 = vadd.f32 %v3834, %v3835
      %v3837 = vsel %vm903, %v3783, 0.0
      %v3838 = vadd.f32 %v3836, %v3837
      %v3839 = vsel %vm903, %v3829, 0.0
      %v3840 = vadd.f32 %v3838, %v3839
      %v3841 = vld [vmem:[%s10 + $0x1] sm:$0x1]
      %v3842 = vlaneseq
      %v3843 = vshrl.u32 %v3842, 7
      %v3844 = vsub.s32 0, %v3843
      %v3845 = vrot.slane %v3841, %v3844
      %v3846 = vadd.f32 %v3840, %v3845
      %v3847 = vadd.f32 %v2446, %v3846
      %v3848 = vld [vmem:[%s11 + $0x1] sm:$0x1]
      %v3849 = vld [vmem:[%s12 + $0x1] sm:$0x1]
      %v3850 = vsel %vm903, %v3847, 0.0
      %3851 = vadd.xlane.f32.xlu0 %v3850
      %v3852 = vpop.xlane.xlu0 %3851
      %v3853 = vmul.f32 %v3852, %v2248
      %v3854 = vsub.f32 %v3847, %v3853
      %v3855 = vmul.f32 %v3854, %v3854
      %v3856 = vsel %vm903, %v3855, 0.0
      %3857 = vadd.xlane.f32.xlu0 %v3856
      %v3858 = vpop.xlane.xlu0 %3857
      %v3859 = vmul.f32 %v3858, %v2248
      %v3860 = vadd.f32 %v3859, 1e-05
      %v3861 = vrsqrt.pop %v3860
      %v3862 = vmul.f32 %v3854, %v3861
      %v3863 = vlaneseq
      %v3864 = vshrl.u32 %v3863, 7
      %v3865 = vsub.s32 0, %v3864
      %v3866 = vrot.slane %v3848, %v3865
      %v3867 = vmul.f32 %v3862, %v3866
      %v3868 = vlaneseq
      %v3869 = vshrl.u32 %v3868, 7
      %v3870 = vsub.s32 0, %v3869
      %v3871 = vrot.slane %v3849, %v3870
      %v3872 = vadd.f32 %v3867, %v3871
      %v3873 = vpack.c.bf16 %v3872, %v3872
      %s3874 = scalar_lea.vmem %s13, 16
      %v3875 = vld [vmem:[%s3874] sm:$0xf]
      %v3876 = vld [vmem:[%s3874 + $0x4] sm:$0xf]
      %v3877 = vld [vmem:[%s3874 + $0x8] sm:$0xf]
      %v3878 = vld [vmem:[%s3874 + $0xc] sm:$0xf]
      %v3879 = vld [vmem:[%s14 + $0x1] sm:$0x1]
      %v3880 = vlaneseq
      %v3881 = vshrl.u32 %v3880, 7
      %v3882 = vsub.s32 0, %v3881
      %v3883 = vrot.slane %v3879, %v3882
      %v3888 = vunpack.c.l.b16 %v3875
      %v3889 = vunpack.c.l.b16 %v3876
      %v3890 = vunpack.c.l.b16 %v3877
      %v3891 = vunpack.c.l.b16 %v3878
      %v3892 = vpack.c.b16 %v3889, %v3888
      %v3893 = vpack.c.b16 %v3891, %v3890
      %v3897 = vsel %vm903, %v3873, 0
      %3899 = vmatprep.subr.bf16.mxu0 0
      %3900 = vmatpush1.bf16.msra.mxu0 %v3892
      %3901 = vmatprep.subr.bf16.mxu0 0
      %3902 = vmatpush1.bf16.msra.mxu0 %v3893
      %3903 = vmatprep.subr.bf16.mxu0 0
      %3904 = vmatpush1.bf16.msra.mxu0 0
      %3905 = vmatprep.subr.bf16.mxu0 0
      %3906 = vmatpush1.bf16.msra.mxu0 0
      %3907 = vmatprep.subr.bf16.mxu0 0
      %3908 = vmatpush1.bf16.msra.mxu0 0
      %3909 = vmatprep.subr.bf16.mxu0 0
      %3910 = vmatpush1.bf16.msra.mxu0 0
      %3911 = vmatprep.subr.bf16.mxu0 0
      %3912 = vmatpush1.bf16.msra.mxu0 0
      %3913 = vmatprep.subr.bf16.mxu0 0
      %3914 = vmatpush1.bf16.msra.mxu0 0
      %3915 = vmatprep.subr.bf16.mxu0 0
      %3916 = vmatpush1.bf16.msra.mxu0 0
      %3917 = vmatprep.subr.bf16.mxu0 0
      %3918 = vmatpush1.bf16.msra.mxu0 0
      %3919 = vmatprep.subr.bf16.mxu0 0
      %3920 = vmatpush1.bf16.msra.mxu0 0
      %3921 = vmatprep.subr.bf16.mxu0 0
      %3922 = vmatpush1.bf16.msra.mxu0 0
      %3923 = vmatprep.subr.bf16.mxu0 0
      %3924 = vmatpush1.bf16.msra.mxu0 0
      %3925 = vmatprep.subr.bf16.mxu0 0
      %3926 = vmatpush1.bf16.msra.mxu0 0
      %3927 = vmatprep.subr.bf16.mxu0 0
      %3928 = vmatpush1.bf16.msra.mxu0 0
      %3929 = vmatprep.subr.bf16.mxu0 0
      %3930 = vmatpush1.bf16.msra.mxu0 0
      %3931 = vmatprep.mubr.bf16.mxu0 0
      %3932 = vmatmul.mubr.bf16.gmra.mrb[0].mxu0 %v3897
      %v3933 = vpop.f32.mrb[0].mxu0
      %v3934 = vadd.f32 %v3883, %v3933
      %v3935 = vpop.f32.mrb[0].mxu0
      %v3936 = vpop.f32.mrb[0].mxu0
      %v3937 = vpop.f32.mrb[0].mxu0
      %3938 = vdwg.mxu0
      %v3939 = vmul.f32 %v3934, 0.5
      %v3940 = vmul.f32 %v3934, 0.70710677
      %v3941 = verf.f32.pop %v3940
      %v3942 = vadd.f32 %v3941, 1.0
      %v3943 = vmul.f32 %v3939, %v3942
      %v3944 = vpack.c.bf16 %v3943, %v3943
      %s3945 = scalar_lea.vmem %s15, 32
      %v3946 = vld [vmem:[%s3945] sm:$0xf]
      %v3947 = vld [vmem:[%s3945 + $0x4] sm:$0xf]
      %v3948 = vld [vmem:[%s3945 + $0x8] sm:$0xf]
      %v3949 = vld [vmem:[%s3945 + $0xc] sm:$0xf]
      %v3950 = vld [vmem:[%s3945 + $0x10] sm:$0xf]
      %v3951 = vld [vmem:[%s3945 + $0x14] sm:$0xf]
      %v3952 = vld [vmem:[%s3945 + $0x18] sm:$0xf]
      %v3953 = vld [vmem:[%s3945 + $0x1c] sm:$0xf]
      %v3954 = vld [vmem:[%s16 + $0x1] sm:$0x1]
      %v3955 = vlaneseq
      %v3956 = vshrl.u32 %v3955, 7
      %v3957 = vsub.s32 0, %v3956
      %v3958 = vrot.slane %v3954, %v3957
      %v3967 = vunpack.c.l.b16 %v3946
      %v3968 = vunpack.c.l.b16 %v3947
      %v3969 = vunpack.c.l.b16 %v3948
      %v3970 = vunpack.c.l.b16 %v3949
      %v3971 = vunpack.c.l.b16 %v3950
      %v3972 = vunpack.c.l.b16 %v3951
      %v3973 = vunpack.c.l.b16 %v3952
      %v3974 = vunpack.c.l.b16 %v3953
      %v3975 = vpack.c.b16 %v3968, %v3967
      %v3976 = vpack.c.b16 %v3970, %v3969
      %v3977 = vpack.c.b16 %v3972, %v3971
      %v3978 = vpack.c.b16 %v3974, %v3973
      %v3984 = vsel %vm2377, %v3944, 0
      %3986 = vmatprep.subr.bf16.mxu0 0
      %3987 = vmatpush1.bf16.msra.mxu0 %v3975
      %3988 = vmatprep.subr.bf16.mxu0 0
      %3989 = vmatpush1.bf16.msra.mxu0 %v3976
      %3990 = vmatprep.subr.bf16.mxu0 0
      %3991 = vmatpush1.bf16.msra.mxu0 %v3977
      %3992 = vmatprep.subr.bf16.mxu0 0
      %3993 = vmatpush1.bf16.msra.mxu0 %v3978
      %3994 = vmatprep.subr.bf16.mxu0 0
      %3995 = vmatpush1.bf16.msra.mxu0 0
      %3996 = vmatprep.subr.bf16.mxu0 0
      %3997 = vmatpush1.bf16.msra.mxu0 0
      %3998 = vmatprep.subr.bf16.mxu0 0
      %3999 = vmatpush1.bf16.msra.mxu0 0
      %4000 = vmatprep.subr.bf16.mxu0 0
      %4001 = vmatpush1.bf16.msra.mxu0 0
      %4002 = vmatprep.subr.bf16.mxu0 0
      %4003 = vmatpush1.bf16.msra.mxu0 0
      %4004 = vmatprep.subr.bf16.mxu0 0
      %4005 = vmatpush1.bf16.msra.mxu0 0
      %4006 = vmatprep.subr.bf16.mxu0 0
      %4007 = vmatpush1.bf16.msra.mxu0 0
      %4008 = vmatprep.subr.bf16.mxu0 0
      %4009 = vmatpush1.bf16.msra.mxu0 0
      %4010 = vmatprep.subr.bf16.mxu0 0
      %4011 = vmatpush1.bf16.msra.mxu0 0
      %4012 = vmatprep.subr.bf16.mxu0 0
      %4013 = vmatpush1.bf16.msra.mxu0 0
      %4014 = vmatprep.subr.bf16.mxu0 0
      %4015 = vmatpush1.bf16.msra.mxu0 0
      %4016 = vmatprep.subr.bf16.mxu0 0
      %4017 = vmatpush1.bf16.msra.mxu0 0
      %4018 = vmatprep.mubr.bf16.mxu0 0
      %4019 = vmatmul.mubr.bf16.gmra.mrb[0].mxu0 %v3984
      %v4020 = vpop.f32.mrb[0].mxu0
      %v4021 = vadd.f32 %v3958, %v4020
      %v4022 = vpop.f32.mrb[0].mxu0
      %v4023 = vpop.f32.mrb[0].mxu0
      %v4024 = vpop.f32.mrb[0].mxu0
      %4025 = vdwg.mxu0
      %v4026 = vadd.f32 %v3872, %v4021
      %v4027 = vld [vmem:[%s17 + $0x1] sm:$0x1]
      %v4028 = vld [vmem:[%s18 + $0x1] sm:$0x1]
      %v4029 = vsel %vm903, %v4026, 0.0
      %4030 = vadd.xlane.f32.xlu0 %v4029
      %v4031 = vpop.xlane.xlu0 %4030
      %v4032 = vmul.f32 %v4031, %v2248
      %v4033 = vsub.f32 %v4026, %v4032
      %v4034 = vmul.f32 %v4033, %v4033
      %v4035 = vsel %vm903, %v4034, 0.0
      %4036 = vadd.xlane.f32.xlu0 %v4035
      %v4037 = vpop.xlane.xlu0 %4036
      %v4038 = vmul.f32 %v4037, %v2248
      %v4039 = vadd.f32 %v4038, 1e-05
      %v4040 = vrsqrt.pop %v4039
      %v4041 = vmul.f32 %v4033, %v4040
      %v4042 = vlaneseq
      %v4043 = vshrl.u32 %v4042, 7
      %v4044 = vsub.s32 0, %v4043
      %v4045 = vrot.slane %v4027, %v4044
      %v4046 = vmul.f32 %v4041, %v4045
      %v4047 = vlaneseq
      %v4048 = vshrl.u32 %v4047, 7
      %v4049 = vsub.s32 0, %v4048
      %v4050 = vrot.slane %v4028, %v4049
      %v4051 = vadd.f32 %v4046, %v4050
      %v4052 = vld [vmem:[%s19] sm:$0x1]
      %v4053 = vld [vmem:[%s20] sm:$0x1]
      %v4054 = vsel %vm903, %v4051, 0.0
      %4055 = vadd.xlane.f32.xlu0 %v4054
      %v4056 = vpop.xlane.xlu0 %4055
      %v4057 = vmul.f32 %v4056, %v2248
      %v4058 = vsub.f32 %v4051, %v4057
      %v4059 = vmul.f32 %v4058, %v4058
      %v4060 = vsel %vm903, %v4059, 0.0
      %4061 = vadd.xlane.f32.xlu0 %v4060
      %v4062 = vpop.xlane.xlu0 %4061
      %v4063 = vmul.f32 %v4062, %v2248
      %v4064 = vadd.f32 %v4063, 1e-05
      %v4065 = vrsqrt.pop %v4064
      %v4066 = vmul.f32 %v4058, %v4065
      %v4068 = vlaneseq
      %v4069 = vshrl.u32 %v4068, 7
      %v4070 = vsub.s32 0, %v4069
      %v4071 = vrot.slane %v4052, %v4070
      %v4073 = vmul.f32 %v4066, %v4071
      %v4075 = vlaneseq
      %v4076 = vshrl.u32 %v4075, 7
      %v4077 = vsub.s32 0, %v4076
      %v4078 = vrot.slane %v4053, %v4077
      %v4080 = vadd.f32 %v4073, %v4078
      %v4081 = vpack.c.bf16 %v4080, %v4080
      %v4082 = vld [vmem:[%s22] sm:$0xf]
      %v4083 = vld [vmem:[%s22 + $0x4] sm:$0xf]
      %v4084 = vld [vmem:[%s22 + $0x8] sm:$0xf]
      %v4085 = vld [vmem:[%s22 + $0xc] sm:$0xf]
      %v4090 = vunpack.c.l.b16 %v4082
      %v4091 = vunpack.c.l.b16 %v4083
      %v4092 = vunpack.c.l.b16 %v4084
      %v4093 = vunpack.c.l.b16 %v4085
      %v4094 = vpack.c.b16 %v4091, %v4090
      %v4095 = vpack.c.b16 %v4093, %v4092
      %v4099 = vsel %vm903, %v4081, 0
      %4101 = vmatprep.subr.bf16.mxu0 0
      %4102 = vmatpush1.bf16.msra.mxu0 %v4094
      %4103 = vmatprep.subr.bf16.mxu0 0
      %4104 = vmatpush1.bf16.msra.mxu0 %v4095
      %4105 = vmatprep.subr.bf16.mxu0 0
      %4106 = vmatpush1.bf16.msra.mxu0 0
      %4107 = vmatprep.subr.bf16.mxu0 0
      %4108 = vmatpush1.bf16.msra.mxu0 0
      %4109 = vmatprep.subr.bf16.mxu0 0
      %4110 = vmatpush1.bf16.msra.mxu0 0
      %4111 = vmatprep.subr.bf16.mxu0 0
      %4112 = vmatpush1.bf16.msra.mxu0 0
      %4113 = vmatprep.subr.bf16.mxu0 0
      %4114 = vmatpush1.bf16.msra.mxu0 0
      %4115 = vmatprep.subr.bf16.mxu0 0
      %4116 = vmatpush1.bf16.msra.mxu0 0
      %4117 = vmatprep.subr.bf16.mxu0 0
      %4118 = vmatpush1.bf16.msra.mxu0 0
      %4119 = vmatprep.subr.bf16.mxu0 0
      %4120 = vmatpush1.bf16.msra.mxu0 0
      %4121 = vmatprep.subr.bf16.mxu0 0
      %4122 = vmatpush1.bf16.msra.mxu0 0
      %4123 = vmatprep.subr.bf16.mxu0 0
      %4124 = vmatpush1.bf16.msra.mxu0 0
      %4125 = vmatprep.subr.bf16.mxu0 0
      %4126 = vmatpush1.bf16.msra.mxu0 0
      %4127 = vmatprep.subr.bf16.mxu0 0
      %4128 = vmatpush1.bf16.msra.mxu0 0
      %4129 = vmatprep.subr.bf16.mxu0 0
      %4130 = vmatpush1.bf16.msra.mxu0 0
      %4131 = vmatprep.subr.bf16.mxu0 0
      %4132 = vmatpush1.bf16.msra.mxu0 0
      %4133 = vmatprep.mubr.bf16.mxu0 0
      %4134 = vmatmul.mubr.bf16.gmra.mrb[0].mxu0 %v4099
      %v4135 = vpop.f32.mrb[0].mxu0
      %v4136 = vadd.f32 0.0, %v4135
      %v4137 = vpop.f32.mrb[0].mxu0
      %v4138 = vpop.f32.mrb[0].mxu0
      %v4139 = vpop.f32.mrb[0].mxu0
      %4140 = vdwg.mxu0
      %vm4141 = vcmask 80896
      %v4142 = vsel %vm4141, %v4136, -inf
      %4143 = vmax.xlane.f32.xlu0 %v4142
      %v4144 = vpop.xlane.xlu0 %4143
      %v4145 = vsub.f32 %v4136, %v4144
      %v4146 = vmul.f32 %v4145, 1.442695
      %v4147 = vpow.pop %v4146
      %v4148 = vsel %vm4141, %v4147, 0.0
      %4149 = vadd.xlane.f32.xlu0 %v4148
      %v4150 = vpop.xlane.xlu0 %4149
      %v4151 = vrcp.pop %v4150
      %v4152 = vmul.f32 %v4147, %v4151
      %v4153 = vpack.c.bf16 %v4152, %v4152
      %v4154 = vld [vmem:[%s21] sm:$0xf]
      %v4155 = vld [vmem:[%s21 + $0x4] sm:$0x1]
      %v4158 = vunpack.c.l.b16 %v4154
      %v4159 = vunpack.c.l.b16 %v4155
      %v4160 = vpack.c.b16 %v4159, %v4158
      %v4162 = vsel %vm4141, %v4153, 0
      %vm4164 = vcmask 1044480
      %v4166 = vsel %vm4164, %v4160, 0
      %4168 = vmatprep.subr.bf16.mxu0 0
      %4169 = vmatpush1.bf16.msra.mxu0 %v4166
      %4170 = vmatprep.subr.bf16.mxu0 0
      %4171 = vmatpush1.bf16.msra.mxu0 0
      %4172 = vmatprep.subr.bf16.mxu0 0
      %4173 = vmatpush1.bf16.msra.mxu0 0
      %4174 = vmatprep.subr.bf16.mxu0 0
      %4175 = vmatpush1.bf16.msra.mxu0 0
      %4176 = vmatprep.subr.bf16.mxu0 0
      %4177 = vmatpush1.bf16.msra.mxu0 0
      %4178 = vmatprep.subr.bf16.mxu0 0
      %4179 = vmatpush1.bf16.msra.mxu0 0
      %4180 = vmatprep.subr.bf16.mxu0 0
      %4181 = vmatpush1.bf16.msra.mxu0 0
      %4182 = vmatprep.subr.bf16.mxu0 0
      %4183 = vmatpush1.bf16.msra.mxu0 0
      %4184 = vmatprep.subr.bf16.mxu0 0
      %4185 = vmatpush1.bf16.msra.mxu0 0
      %4186 = vmatprep.subr.bf16.mxu0 0
      %4187 = vmatpush1.bf16.msra.mxu0 0
      %4188 = vmatprep.subr.bf16.mxu0 0
      %4189 = vmatpush1.bf16.msra.mxu0 0
      %4190 = vmatprep.subr.bf16.mxu0 0
      %4191 = vmatpush1.bf16.msra.mxu0 0
      %4192 = vmatprep.subr.bf16.mxu0 0
      %4193 = vmatpush1.bf16.msra.mxu0 0
      %4194 = vmatprep.subr.bf16.mxu0 0
      %4195 = vmatpush1.bf16.msra.mxu0 0
      %4196 = vmatprep.subr.bf16.mxu0 0
      %4197 = vmatpush1.bf16.msra.mxu0 0
      %4198 = vmatprep.subr.bf16.mxu0 0
      %4199 = vmatpush1.bf16.msra.mxu0 0
      %4200 = vmatprep.mubr.bf16.mxu0 0
      %4201 = vmatmul.mubr.bf16.gmra.mrb[0].mxu0 %v4162
      %v4202 = vpop.f32.mrb[0].mxu0
      %v4203 = vadd.f32 0.0, %v4202
      %v4204 = vpop.f32.mrb[0].mxu0
      %v4205 = vpop.f32.mrb[0].mxu0
      %v4206 = vpop.f32.mrb[0].mxu0
      %4207 = vdwg.mxu0
      %v4208 = vld [vmem:[%s23] sm:$0xf]
      %v4209 = vld [vmem:[%s23 + $0x4] sm:$0xf]
      %v4210 = vld [vmem:[%s23 + $0x8] sm:$0xf]
      %v4211 = vld [vmem:[%s23 + $0xc] sm:$0xf]
      %v4212 = vpack.c.bf16 %v4203, %v4203
      %v4213 = vld [vmem:[%s24] sm:$0xf]
      %v4214 = vld [vmem:[%s24 + $0x4] sm:$0xf]
      %v4215 = vld [vmem:[%s24 + $0x8] sm:$0xf]
      %v4216 = vld [vmem:[%s24 + $0xc] sm:$0xf]
      %v4221 = vunpack.c.l.b16 %v4213
      %v4222 = vunpack.c.l.b16 %v4214
      %v4223 = vunpack.c.l.b16 %v4215
      %v4224 = vunpack.c.l.b16 %v4216
      %v4225 = vpack.c.b16 %v4222, %v4221
      %v4226 = vpack.c.b16 %v4224, %v4223
      %v4230 = vsel %vm903, %v4212, 0
      %4232 = vmatprep.subr.bf16.mxu0 0
      %4233 = vmatpush1.bf16.msra.mxu0 %v4225
      %4234 = vmatprep.subr.bf16.mxu0 0
      %4235 = vmatpush1.bf16.msra.mxu0 %v4226
      %4236 = vmatprep.subr.bf16.mxu0 0
      %4237 = vmatpush1.bf16.msra.mxu0 0
      %4238 = vmatprep.subr.bf16.mxu0 0
      %4239 = vmatpush1.bf16.msra.mxu0 0
      %4240 = vmatprep.subr.bf16.mxu0 0
      %4241 = vmatpush1.bf16.msra.mxu0 0
      %4242 = vmatprep.subr.bf16.mxu0 0
      %4243 = vmatpush1.bf16.msra.mxu0 0
      %4244 = vmatprep.subr.bf16.mxu0 0
      %4245 = vmatpush1.bf16.msra.mxu0 0
      %4246 = vmatprep.subr.bf16.mxu0 0
      %4247 = vmatpush1.bf16.msra.mxu0 0
      %4248 = vmatprep.subr.bf16.mxu0 0
      %4249 = vmatpush1.bf16.msra.mxu0 0
      %4250 = vmatprep.subr.bf16.mxu0 0
      %4251 = vmatpush1.bf16.msra.mxu0 0
      %4252 = vmatprep.subr.bf16.mxu0 0
      %4253 = vmatpush1.bf16.msra.mxu0 0
      %4254 = vmatprep.subr.bf16.mxu0 0
      %4255 = vmatpush1.bf16.msra.mxu0 0
      %4256 = vmatprep.subr.bf16.mxu0 0
      %4257 = vmatpush1.bf16.msra.mxu0 0
      %4258 = vmatprep.subr.bf16.mxu0 0
      %4259 = vmatpush1.bf16.msra.mxu0 0
      %4260 = vmatprep.subr.bf16.mxu0 0
      %4261 = vmatpush1.bf16.msra.mxu0 0
      %4262 = vmatprep.subr.bf16.mxu0 0
      %4263 = vmatpush1.bf16.msra.mxu0 0
      %4264 = vmatprep.mubr.bf16.mxu0 0
      %4265 = vmatmul.mubr.bf16.gmra.mrb[0].mxu0 %v4230
      %v4266 = vpop.f32.mrb[0].mxu0
      %v4267 = vadd.f32 0.0, %v4266
      %v4268 = vpop.f32.mrb[0].mxu0
      %v4269 = vpop.f32.mrb[0].mxu0
      %v4270 = vpop.f32.mrb[0].mxu0
      %4271 = vdwg.mxu0
      %v4276 = vunpack.c.l.b16 %v4208
      %v4277 = vunpack.c.l.b16 %v4209
      %v4278 = vunpack.c.l.b16 %v4210
      %v4279 = vunpack.c.l.b16 %v4211
      %v4280 = vpack.c.b16 %v4277, %v4276
      %v4281 = vpack.c.b16 %v4279, %v4278
      %4284 = vmatprep.subr.bf16.mxu0 0
      %4285 = vmatpush1.bf16.msra.mxu0 %v4280
      %4286 = vmatprep.subr.bf16.mxu0 0
      %4287 = vmatpush1.bf16.msra.mxu0 %v4281
      %4288 = vmatprep.subr.bf16.mxu0 0
      %4289 = vmatpush1.bf16.msra.mxu0 0
      %4290 = vmatprep.subr.bf16.mxu0 0
      %4291 = vmatpush1.bf16.msra.mxu0 0
      %4292 = vmatprep.subr.bf16.mxu0 0
      %4293 = vmatpush1.bf16.msra.mxu0 0
      %4294 = vmatprep.subr.bf16.mxu0 0
      %4295 = vmatpush1.bf16.msra.mxu0 0
      %4296 = vmatprep.subr.bf16.mxu0 0
      %4297 = vmatpush1.bf16.msra.mxu0 0
      %4298 = vmatprep.subr.bf16.mxu0 0
      %4299 = vmatpush1.bf16.msra.mxu0 0
      %4300 = vmatprep.subr.bf16.mxu0 0
      %4301 = vmatpush1.bf16.msra.mxu0 0
      %4302 = vmatprep.subr.bf16.mxu0 0
      %4303 = vmatpush1.bf16.msra.mxu0 0
      %4304 = vmatprep.subr.bf16.mxu0 0
      %4305 = vmatpush1.bf16.msra.mxu0 0
      %4306 = vmatprep.subr.bf16.mxu0 0
      %4307 = vmatpush1.bf16.msra.mxu0 0
      %4308 = vmatprep.subr.bf16.mxu0 0
      %4309 = vmatpush1.bf16.msra.mxu0 0
      %4310 = vmatprep.subr.bf16.mxu0 0
      %4311 = vmatpush1.bf16.msra.mxu0 0
      %4312 = vmatprep.subr.bf16.mxu0 0
      %4313 = vmatpush1.bf16.msra.mxu0 0
      %4314 = vmatprep.subr.bf16.mxu0 0
      %4315 = vmatpush1.bf16.msra.mxu0 0
      %4316 = vmatprep.mubr.bf16.mxu0 0
      %4317 = vmatmul.mubr.bf16.gmra.mrb[0].mxu0 %v4099
      %v4318 = vpop.f32.mrb[0].mxu0
      %v4319 = vadd.f32 %v4267, %v4318
      %v4320 = vpop.f32.mrb[0].mxu0
      %v4321 = vpop.f32.mrb[0].mxu0
      %v4322 = vpop.f32.mrb[0].mxu0
      %4323 = vdwg.mxu0
      %v4324 = vld [vmem:[%s25] sm:$0x1]
      %v4326 = vlaneseq
      %v4327 = vshrl.u32 %v4326, 7
      %v4328 = vsub.s32 0, %v4327
      %v4329 = vrot.slane %v4324, %v4328
      %v4331 = vadd.f32 %v4319, %v4329
      %4332 = vst.msk [vmem:[%s786] sm:$0xff] %vm903, %v4080
      %4334 = vrot.lane.b32.xlu0 %v4331, 32
      %v4335 = vpop.permute.xlu0 %4334
      %vm4337 = vcmask 294144
      %4338 = vst.msk [vmem:[%s786] sm:$0xff] %vm4337, %v4335
      %4340 = vrot.lane.b32.xlu0 %v4152, 36
      %v4341 = vpop.permute.xlu0 %4340
      %vm4343 = vcmask 376096
      %4344 = vst.msk [vmem:[%s786] sm:$0xff] %vm4343, %v4341
      %p4345 = scmp.lt.s32.totalorder %s37, 1
      %s4346 = scalar_select %p4345, %s37, 1
      %s4347 = smul.addr %s4346, 8
      %s4348 = scalar_lea.vmem %s26, %s4347
      // Predicated region
      $region125: #{memto_forward.1} parent=123 // pred_check
        %p4349 = pneg %p606
      $region126: #{memto_forward.1} parent=123 // pred_check_branch
        %4351 = sbr.rel (%p4349) target = $region128
      $region127: #{memto_forward.1} parent=123 // pred_region
        _
      $region128: #{memto_forward.1} parent=123 // pred_fallthru
        _
    $region124: #{memto_forward.1} parent=5 // pred_fallthru
      _
    %p4352 = scmp.le.s32.totalorder 2, %s32
    // Predicated region
    $region129: #{memto_forward.1} parent=5 // pred_check
      %p4353 = pneg %p4352
    $region130: #{memto_forward.1} parent=5 // pred_check_branch
      %4355 = sbr.rel (%p4353) target = $region132
    $region131: #{memto_forward.1} parent=5 // pred_region
      %s4356 = ssub.s32 %s32, 2
      // Predicated region
      $region133: #{memto_forward.1} parent=131 // pred_check
        %p4357 = pneg %p612
      $region134: #{memto_forward.1} parent=131 // pred_check_branch
        %4359 = sbr.rel (%p4357) target = $region136
      $region135: #{memto_forward.1} parent=131 // pred_region
        %p4360 = scmp.lt.s32.totalorder %s38, 1
        %s4361 = scalar_select %p4360, %s38, 1
        %s4362 = smul.addr %s4361, 8
        %s4363 = scalar_lea.vmem %s26, %s4362
      $region136: #{memto_forward.1} parent=131 // pred_fallthru
        _
    $region132: #{memto_forward.1} parent=5 // pred_fallthru
      _
  $region6: #{memto_forward.1} parent=0 // loop_footer
    %s36 = sadd.s32 1, %s32
  $region7: #{memto_forward.1} parent=0 // loop_footer_branch
    %31 = sbr.rel target = $region3
  $region8: #{memto_forward.1} parent=0 // loop_exit
    _

</llo_original>
